<compile_context>
chip_gen: v7x
topology: tpu7x:2x2x1
jax: 0.10.0
libtpu: 0.0.40
codegen_flags: <defaults>
</compile_context>

<pallas_src>
import functools

import jax
import jax.numpy as jnp
from jax.experimental import pallas as pl
from jax.experimental.pallas import tpu as pltpu


def _attention_kernel(wqkv_ref, wmlp_ref, vec_ref, x_ref, out_ref, *, H, S, BB):
    """One batch block.  Everything below keeps the BB batch lanes on the 128-lane axis."""
    f32 = jnp.float32
    bf16 = jnp.bfloat16

    # ---- fused embedding + QKV projection: ONE dense MXU matmul (bf16 in, f32 acc) ----
    # wqkv_ref: (S*3H, S*W) block-diagonal per position, q rows pre-scaled by 1/sqrt(H)
    # x_ref:    (S*W, BB)   bf16, batch on lanes
    qkv = jnp.dot(wqkv_ref[...], x_ref[...], preferred_element_type=f32)      # (S*3H, BB)
    qkv = qkv.reshape(S, 3 * H, BB) + vec_ref[0:3 * H, :][None, :, :]          # + b_xqkv

    q = qkv[:, 0:H, :]            # (S, H, BB)   (already scaled by 1/sqrt(H))
    k = qkv[:, H:2 * H, :]        # (S, H, BB)
    v = qkv[:, 2 * H:3 * H, :]    # (S, H, BB)

    # ---- single-head self attention, entirely on the VPU/XLU (no per-batch matmuls) ----
    a_rows = []
    for i in range(S):
        qi = q[i]                                                   # (H, BB)
        s_i = jnp.sum(qi[None, :, :] * k, axis=1)                   # (S, BB) scores vs keys
        s_i = s_i - jnp.max(s_i, axis=0, keepdims=True)             # numerically stable
        p_i = jnp.exp(s_i)
        p_i = p_i * pl.reciprocal(jnp.sum(p_i, axis=0, keepdims=True), approx=True)
        a_rows.append(jnp.sum(p_i[:, None, :] * v, axis=0))         # (H, BB)
    a = jnp.stack(a_rows, axis=0).reshape(S * H, BB)                # (S*H, BB)

    # ---- fused out_proj + fc_1: ONE dense MXU matmul (bf16 in, f32 acc), then ReLU ----
    h = jnp.dot(wmlp_ref[...], a.astype(bf16), preferred_element_type=f32)     # (S*2H, BB)
    h = h.reshape(S, 2 * H, BB) + vec_ref[3 * H:5 * H, :][None, :, :]           # + b_o1
    h = jnp.maximum(h, 0.0)

    # ---- fc_2 as a VPU multiply + sublane reduction (no 1-column MXU matmul) ----
    w2 = vec_ref[5 * H:7 * H, :][None, :, :]                                    # (1, 2H, 1)
    y = jnp.sum(h * w2, axis=1) + vec_ref[7 * H:7 * H + 1, :]                   # (S, BB)

    # Lane-dense (S, BB) output tile (seq on sublanes, batch on lanes): no transpose.
    out_ref[...] = y


def init_params(key, window_size, hidden_channels):
    """Deterministic synthetic parameters (torch Linear convention: W is (out, in))."""
    H = hidden_channels
    ks = jax.random.split(key, 7)
    scale = 0.1
    p = {
        "emb_w": scale * jax.random.normal(ks[0], (H, window_size), jnp.float32),
        "emb_b": scale * jax.random.normal(ks[1], (H,), jnp.float32),
        # nn.MultiheadAttention: in_proj_weight (3H, H), in_proj_bias (3H,)
        "in_proj_w": scale * jax.random.normal(ks[2], (3 * H, H), jnp.float32),
        "in_proj_b": scale * jax.random.normal(ks[3], (3 * H,), jnp.float32),
        "out_proj_w": scale * jax.random.normal(ks[4], (H, H), jnp.float32),
        "out_proj_b": jnp.zeros((H,), jnp.float32),
        "fc1_w": scale * jax.random.normal(ks[5], (2 * H, H), jnp.float32),
        "fc1_b": jnp.zeros((2 * H,), jnp.float32),
        "fc2_w": scale * jax.random.normal(ks[6], (1, 2 * H), jnp.float32),
        "fc2_b": jnp.zeros((1,), jnp.float32),
    }
    return p


def _fold_params(params, window_size, hidden_channels, seq_len):
    """Algebraically fold weights and pack them into resident slabs (bf16 for the MXU)."""
    W, H, S = window_size, hidden_channels, seq_len
    f32 = jnp.float32

    emb_w = params["emb_w"].astype(f32)        # (H, W)
    emb_b = params["emb_b"].astype(f32)        # (H,)
    in_w = params["in_proj_w"].astype(f32)     # (3H, H)
    in_b = params["in_proj_b"].astype(f32)     # (3H,)
    out_w = params["out_proj_w"].astype(f32)   # (H, H)
    out_b = params["out_proj_b"].astype(f32)   # (H,)
    fc1_w = params["fc1_w"].astype(f32)        # (2H, H)
    fc1_b = params["fc1_b"].astype(f32)        # (2H,)
    fc2_w = params["fc2_w"].astype(f32)        # (1, 2H)
    fc2_b = params["fc2_b"].astype(f32)        # (1,)

    # Fused embedding + in_proj (feature-major):  qkv = W_xqkv @ window + b_xqkv
    w_xqkv = in_w @ emb_w                      # (3H, W)
    b_xqkv = in_w @ emb_b + in_b               # (3H,)
    # Fold the 1/sqrt(H) attention scale into the q rows.
    scale = 1.0 / (float(H) ** 0.5)
    w_xqkv = w_xqkv.at[:H].multiply(scale)
    b_xqkv = b_xqkv.at[:H].multiply(scale)

    # Fused out_proj + fc_1 (feature-major):  h_pre = W_o1 @ attn_out + b_o1
    w_o1 = fc1_w @ out_w                       # (2H, H)
    b_o1 = fc1_w @ out_b + fc1_b               # (2H,)

    # Block-diagonal (per sequence position) copies -> one dense matmul per projection
    # with batch on the 128-lane axis.  Slab sizes stay small and resident.
    wqkv_big = jnp.kron(jnp.eye(S, dtype=f32), w_xqkv).astype(jnp.bfloat16)   # (S*3H, S*W)
    wmlp_big = jnp.kron(jnp.eye(S, dtype=f32), w_o1).astype(jnp.bfloat16)     # (S*2H, S*H)

    # Column-oriented f32 vector slab (values vary along sublanes, broadcast along lanes):
    #   rows [0, 3H)     b_xqkv
    #   rows [3H, 5H)    b_o1
    #   rows [5H, 7H)    fc2 weight
    #   row  7H          fc2 bias
    vec_pack = jnp.zeros((7 * H + 8, 1), f32)
    vec_pack = (vec_pack.at[0:3 * H, 0].set(b_xqkv)
                        .at[3 * H:5 * H, 0].set(b_o1)
                        .at[5 * H:7 * H, 0].set(fc2_w[0])
                        .at[7 * H, 0].set(fc2_b[0]))
    return wqkv_big, wmlp_big, vec_pack


def _choose_batch_block(b_pad, block_batch):
    """Pick BB: multiple of 128, divides b_pad, <= block_batch, prefer >=2 grid steps."""
    m = b_pad // 128
    max_d = max(1, block_batch // 128)
    d = 1
    for cand in range(min(m, max_d), 0, -1):
        if m % cand == 0:
            d = cand
            break
    if m >= 2 and d == m:
        # Ensure at least two grid steps so the "parallel" axis can shard (v7x has 2 TCs).
        for cand in range(min(m // 2, max_d), 0, -1):
            if m % cand == 0:
                d = cand
                break
    return 128 * d


def attention_forward(x_sbw, params, hidden_channels, block_batch=1024):
    """x_sbw: (S, B, W) float32, seq-major like torch batch_first=False. Returns (S, B)."""
    S, B, W = x_sbw.shape
    H = hidden_channels
    assert H % 8 == 0, "hidden_channels must be a multiple of 8"

    wqkv_big, wmlp_big, vec_pack = _fold_params(params, W, H, S)

    # Pad the batch only to a multiple of 128 lanes, then choose a compatible block.
    B_pad = max(128, ((B + 127) // 128) * 128)
    BB = _choose_batch_block(B_pad, block_batch)
    nb = B_pad // BB

    # One fused wrapper pass: (S, B, W) -> (S*W, B_pad) bf16 with batch on the minor
    # (lane) axis.  This keeps every kernel block lane-dense and relayout-free.
    xt = jnp.swapaxes(x_sbw, 1, 2).astype(jnp.bfloat16).reshape(S * W, B)
    if B_pad != B:
        xt = jnp.pad(xt, ((0, 0), (0, B_pad - B)))

    kernel = functools.partial(_attention_kernel, H=H, S=S, BB=BB)
    out = pl.pallas_call(
        kernel,
        out_shape=jax.ShapeDtypeStruct((S, B_pad), jnp.float32),
        grid_spec=pltpu.PrefetchScalarGridSpec(
            num_scalar_prefetch=0,
            grid=(nb,),
            in_specs=[
                pl.BlockSpec((S * 3 * H, S * W), lambda b: (0, 0)),   # qkv weight (resident)
                pl.BlockSpec((S * 2 * H, S * H), lambda b: (0, 0)),   # mlp weight (resident)
                pl.BlockSpec((7 * H + 8, 1), lambda b: (0, 0)),       # bias/vector slab
                pl.BlockSpec((S * W, BB), lambda b: (0, b)),          # batch block of x
            ],
            out_specs=pl.BlockSpec((S, BB), lambda b: (0, b)),        # lane-dense output
        ),
        compiler_params=pltpu.CompilerParams(
            dimension_semantics=("parallel",),
            vmem_limit_bytes=48 * 1024 * 1024,
        ),
    )(wqkv_big, wmlp_big, vec_pack, xt)

    return out[:, :B]   # (S, B), already seq-major like torch


def attention_forward_ref(x_sbw, params, hidden_channels):
    """Pure-JAX reference matching torch semantics exactly (unfolded f32 weights)."""
    H = hidden_channels
    e = jnp.einsum("sbw,hw->sbh", x_sbw, params["emb_w"]) + params["emb_b"]
    q = jnp.einsum("sbh,oh->sbo", e, params["in_proj_w"][0 * H:1 * H]) + params["in_proj_b"][0 * H:1 * H]
    k = jnp.einsum("sbh,oh->sbo", e, params["in_proj_w"][1 * H:2 * H]) + params["in_proj_b"][1 * H:2 * H]
    v = jnp.einsum("sbh,oh->sbo", e, params["in_proj_w"][2 * H:3 * H]) + params["in_proj_b"][2 * H:3 * H]
    s = jnp.einsum("sbh,tbh->bst", q, k) / jnp.sqrt(jnp.float32(H))
    p = jax.nn.softmax(s, axis=-1)
    a = jnp.einsum("bst,tbh->sbh", p, v)
    o = jnp.einsum("sbh,oh->sbo", a, params["out_proj_w"]) + params["out_proj_b"]
    h = jnp.maximum(jnp.einsum("sbh,oh->sbo", o, params["fc1_w"]) + params["fc1_b"], 0.0)
    y = jnp.einsum("sbh,oh->sbo", h, params["fc2_w"]) + params["fc2_b"]
    return y[..., 0]


if __name__ == "__main__":
    window_size = 16
    hidden_channels = 32
    seq_len = 8
    batch = 2

    key = jax.random.PRNGKey(0)
    k_x, k_p = jax.random.split(key)
    # torch-style input: (S, B, window_size)
    x = jax.random.normal(k_x, (seq_len, batch, window_size), jnp.float32)
    params = init_params(k_p, window_size, hidden_channels)

    out = attention_forward(x, params, hidden_channels)
    out = jax.block_until_ready(out)

    ref = attention_forward_ref(x, params, hidden_channels)
    assert out.shape == (seq_len, batch)
    # bf16 MXU operands + approx (EUP) softmax reciprocal + algebraic weight folding
    # -> slightly looser tolerance vs the exact f32 reference.
    assert jnp.allclose(out, ref, atol=5e-3, rtol=5e-2), "mismatch vs reference"

    print("KERNEL_OK")
</pallas_src>

<mosaic_0001>
module attributes {stable_mosaic.version = 11 : i64} {
  func.func @_attention_kernel(%arg0: i32, %arg1: memref<768x128xbf16, #tpu.memory_space<vmem>>, %arg2: memref<512x256xbf16, #tpu.memory_space<vmem>>, %arg3: memref<232x1xf32, #tpu.memory_space<vmem>>, %arg4: memref<128x128xbf16, #tpu.memory_space<vmem>>, %arg5: memref<8x128xf32, #tpu.memory_space<vmem>>) attributes {dimension_semantics = [#tpu.dimension_semantics<parallel>], iteration_bounds = array<i64: 1>, scalar_prefetch = 0 : i64, scratch_operands = 0 : i64, tpu.core_type = #tpu.core_type<tc>, window_params = [{pipeline_mode = #tpu.pipeline_mode<synchronous>, transform_indices = @transform_0, window_bounds = array<i64: 768, 128>}, {pipeline_mode = #tpu.pipeline_mode<synchronous>, transform_indices = @transform_1, window_bounds = array<i64: 512, 256>}, {pipeline_mode = #tpu.pipeline_mode<synchronous>, transform_indices = @transform_2, window_bounds = array<i64: 232, 1>}, {transform_indices = @transform_3, window_bounds = array<i64: 128, 128>}, {transform_indices = @transform_4, window_bounds = array<i64: 8, 128>}]} {
    %c0 = arith.constant 0 : index
    %c0_0 = arith.constant 0 : index
    %0 = vector.load %arg1[%c0, %c0_0] : memref<768x128xbf16, #tpu.memory_space<vmem>>, vector<768x128xbf16>
    %c0_1 = arith.constant 0 : index
    %c0_2 = arith.constant 0 : index
    %1 = vector.load %arg4[%c0_1, %c0_2] : memref<128x128xbf16, #tpu.memory_space<vmem>>, vector<128x128xbf16>
    %cst = arith.constant dense<0.000000e+00> : vector<768x128xf32>
    %2 = tpu.matmul %0, %1, %cst {dimension_numbers = #tpu.dot_dimension_numbers<[1], [0], [0], [1], [0, 0, 1, 1], [], []>} : vector<768x128xbf16>, vector<128x128xbf16>, vector<768x128xf32> -> vector<768x128xf32>
    %3 = vector.shape_cast %2 : vector<768x128xf32> to vector<8x96x128xf32>
    %c0_3 = arith.constant 0 : index
    %c0_4 = arith.constant 0 : index
    %4 = vector.load %arg3[%c0_3, %c0_4] : memref<232x1xf32, #tpu.memory_space<vmem>>, vector<96x1xf32>
    %5 = vector.shape_cast %4 : vector<96x1xf32> to vector<1x96x1xf32>
    %6 = vector.broadcast %5 : vector<1x96x1xf32> to vector<8x96x128xf32>
    %7 = arith.addf %3, %6 : vector<8x96x128xf32>
    %8 = vector.extract_strided_slice %7 {offsets = [0, 0, 0], sizes = [8, 32, 128], strides = [1, 1, 1]} : vector<8x96x128xf32> to vector<8x32x128xf32>
    %9 = vector.extract_strided_slice %7 {offsets = [0, 32, 0], sizes = [8, 32, 128], strides = [1, 1, 1]} : vector<8x96x128xf32> to vector<8x32x128xf32>
    %10 = vector.extract_strided_slice %7 {offsets = [0, 64, 0], sizes = [8, 32, 128], strides = [1, 1, 1]} : vector<8x96x128xf32> to vector<8x32x128xf32>
    %11 = vector.extract_strided_slice %8 {offsets = [0, 0, 0], sizes = [1, 32, 128], strides = [1, 1, 1]} : vector<8x32x128xf32> to vector<1x32x128xf32>
    %12 = vector.shape_cast %11 : vector<1x32x128xf32> to vector<32x128xf32>
    %13 = vector.shape_cast %12 : vector<32x128xf32> to vector<1x32x128xf32>
    %14 = vector.broadcast %13 : vector<1x32x128xf32> to vector<8x32x128xf32>
    %15 = arith.mulf %14, %9 : vector<8x32x128xf32>
    %cst_5 = arith.constant dense<0.000000e+00> : vector<8x128xf32>
    %16 = vector.multi_reduction <add>, %15, %cst_5 [1] : vector<8x32x128xf32> to vector<8x128xf32>
    %cst_6 = arith.constant dense<0xFF800000> : vector<128xf32>
    %17 = vector.multi_reduction <maximumf>, %16, %cst_6 [0] : vector<8x128xf32> to vector<128xf32>
    %18 = vector.shape_cast %17 : vector<128xf32> to vector<1x128xf32>
    %19 = vector.broadcast %18 : vector<1x128xf32> to vector<8x128xf32>
    %20 = arith.subf %16, %19 : vector<8x128xf32>
    %21 = math.exp %20 : vector<8x128xf32>
    %cst_7 = arith.constant dense<0.000000e+00> : vector<128xf32>
    %22 = vector.multi_reduction <add>, %21, %cst_7 [0] : vector<8x128xf32> to vector<128xf32>
    %23 = vector.shape_cast %22 : vector<128xf32> to vector<1x128xf32>
    %24 = tpu.reciprocal %23 {approx = true} : vector<1x128xf32> -> vector<1x128xf32>
    %25 = vector.broadcast %24 : vector<1x128xf32> to vector<8x128xf32>
    %26 = arith.mulf %21, %25 : vector<8x128xf32>
    %27 = vector.shape_cast %26 : vector<8x128xf32> to vector<8x1x128xf32>
    %28 = vector.broadcast %27 : vector<8x1x128xf32> to vector<8x32x128xf32>
    %29 = arith.mulf %28, %10 : vector<8x32x128xf32>
    %cst_8 = arith.constant dense<0.000000e+00> : vector<32x128xf32>
    %30 = vector.multi_reduction <add>, %29, %cst_8 [0] : vector<8x32x128xf32> to vector<32x128xf32>
    %31 = vector.extract_strided_slice %8 {offsets = [1, 0, 0], sizes = [1, 32, 128], strides = [1, 1, 1]} : vector<8x32x128xf32> to vector<1x32x128xf32>
    %32 = vector.shape_cast %31 : vector<1x32x128xf32> to vector<32x128xf32>
    %33 = vector.shape_cast %32 : vector<32x128xf32> to vector<1x32x128xf32>
    %34 = vector.broadcast %33 : vector<1x32x128xf32> to vector<8x32x128xf32>
    %35 = arith.mulf %34, %9 : vector<8x32x128xf32>
    %cst_9 = arith.constant dense<0.000000e+00> : vector<8x128xf32>
    %36 = vector.multi_reduction <add>, %35, %cst_9 [1] : vector<8x32x128xf32> to vector<8x128xf32>
    %cst_10 = arith.constant dense<0xFF800000> : vector<128xf32>
    %37 = vector.multi_reduction <maximumf>, %36, %cst_10 [0] : vector<8x128xf32> to vector<128xf32>
    %38 = vector.shape_cast %37 : vector<128xf32> to vector<1x128xf32>
    %39 = vector.broadcast %38 : vector<1x128xf32> to vector<8x128xf32>
    %40 = arith.subf %36, %39 : vector<8x128xf32>
    %41 = math.exp %40 : vector<8x128xf32>
    %cst_11 = arith.constant dense<0.000000e+00> : vector<128xf32>
    %42 = vector.multi_reduction <add>, %41, %cst_11 [0] : vector<8x128xf32> to vector<128xf32>
    %43 = vector.shape_cast %42 : vector<128xf32> to vector<1x128xf32>
    %44 = tpu.reciprocal %43 {approx = true} : vector<1x128xf32> -> vector<1x128xf32>
    %45 = vector.broadcast %44 : vector<1x128xf32> to vector<8x128xf32>
    %46 = arith.mulf %41, %45 : vector<8x128xf32>
    %47 = vector.shape_cast %46 : vector<8x128xf32> to vector<8x1x128xf32>
    %48 = vector.broadcast %47 : vector<8x1x128xf32> to vector<8x32x128xf32>
    %49 = arith.mulf %48, %10 : vector<8x32x128xf32>
    %cst_12 = arith.constant dense<0.000000e+00> : vector<32x128xf32>
    %50 = vector.multi_reduction <add>, %49, %cst_12 [0] : vector<8x32x128xf32> to vector<32x128xf32>
    %51 = vector.extract_strided_slice %8 {offsets = [2, 0, 0], sizes = [1, 32, 128], strides = [1, 1, 1]} : vector<8x32x128xf32> to vector<1x32x128xf32>
    %52 = vector.shape_cast %51 : vector<1x32x128xf32> to vector<32x128xf32>
    %53 = vector.shape_cast %52 : vector<32x128xf32> to vector<1x32x128xf32>
    %54 = vector.broadcast %53 : vector<1x32x128xf32> to vector<8x32x128xf32>
    %55 = arith.mulf %54, %9 : vector<8x32x128xf32>
    %cst_13 = arith.constant dense<0.000000e+00> : vector<8x128xf32>
    %56 = vector.multi_reduction <add>, %55, %cst_13 [1] : vector<8x32x128xf32> to vector<8x128xf32>
    %cst_14 = arith.constant dense<0xFF800000> : vector<128xf32>
    %57 = vector.multi_reduction <maximumf>, %56, %cst_14 [0] : vector<8x128xf32> to vector<128xf32>
    %58 = vector.shape_cast %57 : vector<128xf32> to vector<1x128xf32>
    %59 = vector.broadcast %58 : vector<1x128xf32> to vector<8x128xf32>
    %60 = arith.subf %56, %59 : vector<8x128xf32>
    %61 = math.exp %60 : vector<8x128xf32>
    %cst_15 = arith.constant dense<0.000000e+00> : vector<128xf32>
    %62 = vector.multi_reduction <add>, %61, %cst_15 [0] : vector<8x128xf32> to vector<128xf32>
    %63 = vector.shape_cast %62 : vector<128xf32> to vector<1x128xf32>
    %64 = tpu.reciprocal %63 {approx = true} : vector<1x128xf32> -> vector<1x128xf32>
    %65 = vector.broadcast %64 : vector<1x128xf32> to vector<8x128xf32>
    %66 = arith.mulf %61, %65 : vector<8x128xf32>
    %67 = vector.shape_cast %66 : vector<8x128xf32> to vector<8x1x128xf32>
    %68 = vector.broadcast %67 : vector<8x1x128xf32> to vector<8x32x128xf32>
    %69 = arith.mulf %68, %10 : vector<8x32x128xf32>
    %cst_16 = arith.constant dense<0.000000e+00> : vector<32x128xf32>
    %70 = vector.multi_reduction <add>, %69, %cst_16 [0] : vector<8x32x128xf32> to vector<32x128xf32>
    %71 = vector.extract_strided_slice %8 {offsets = [3, 0, 0], sizes = [1, 32, 128], strides = [1, 1, 1]} : vector<8x32x128xf32> to vector<1x32x128xf32>
    %72 = vector.shape_cast %71 : vector<1x32x128xf32> to vector<32x128xf32>
    %73 = vector.shape_cast %72 : vector<32x128xf32> to vector<1x32x128xf32>
    %74 = vector.broadcast %73 : vector<1x32x128xf32> to vector<8x32x128xf32>
    %75 = arith.mulf %74, %9 : vector<8x32x128xf32>
    %cst_17 = arith.constant dense<0.000000e+00> : vector<8x128xf32>
    %76 = vector.multi_reduction <add>, %75, %cst_17 [1] : vector<8x32x128xf32> to vector<8x128xf32>
    %cst_18 = arith.constant dense<0xFF800000> : vector<128xf32>
    %77 = vector.multi_reduction <maximumf>, %76, %cst_18 [0] : vector<8x128xf32> to vector<128xf32>
    %78 = vector.shape_cast %77 : vector<128xf32> to vector<1x128xf32>
    %79 = vector.broadcast %78 : vector<1x128xf32> to vector<8x128xf32>
    %80 = arith.subf %76, %79 : vector<8x128xf32>
    %81 = math.exp %80 : vector<8x128xf32>
    %cst_19 = arith.constant dense<0.000000e+00> : vector<128xf32>
    %82 = vector.multi_reduction <add>, %81, %cst_19 [0] : vector<8x128xf32> to vector<128xf32>
    %83 = vector.shape_cast %82 : vector<128xf32> to vector<1x128xf32>
    %84 = tpu.reciprocal %83 {approx = true} : vector<1x128xf32> -> vector<1x128xf32>
    %85 = vector.broadcast %84 : vector<1x128xf32> to vector<8x128xf32>
    %86 = arith.mulf %81, %85 : vector<8x128xf32>
    %87 = vector.shape_cast %86 : vector<8x128xf32> to vector<8x1x128xf32>
    %88 = vector.broadcast %87 : vector<8x1x128xf32> to vector<8x32x128xf32>
    %89 = arith.mulf %88, %10 : vector<8x32x128xf32>
    %cst_20 = arith.constant dense<0.000000e+00> : vector<32x128xf32>
    %90 = vector.multi_reduction <add>, %89, %cst_20 [0] : vector<8x32x128xf32> to vector<32x128xf32>
    %91 = vector.extract_strided_slice %8 {offsets = [4, 0, 0], sizes = [1, 32, 128], strides = [1, 1, 1]} : vector<8x32x128xf32> to vector<1x32x128xf32>
    %92 = vector.shape_cast %91 : vector<1x32x128xf32> to vector<32x128xf32>
    %93 = vector.shape_cast %92 : vector<32x128xf32> to vector<1x32x128xf32>
    %94 = vector.broadcast %93 : vector<1x32x128xf32> to vector<8x32x128xf32>
    %95 = arith.mulf %94, %9 : vector<8x32x128xf32>
    %cst_21 = arith.constant dense<0.000000e+00> : vector<8x128xf32>
    %96 = vector.multi_reduction <add>, %95, %cst_21 [1] : vector<8x32x128xf32> to vector<8x128xf32>
    %cst_22 = arith.constant dense<0xFF800000> : vector<128xf32>
    %97 = vector.multi_reduction <maximumf>, %96, %cst_22 [0] : vector<8x128xf32> to vector<128xf32>
    %98 = vector.shape_cast %97 : vector<128xf32> to vector<1x128xf32>
    %99 = vector.broadcast %98 : vector<1x128xf32> to vector<8x128xf32>
    %100 = arith.subf %96, %99 : vector<8x128xf32>
    %101 = math.exp %100 : vector<8x128xf32>
    %cst_23 = arith.constant dense<0.000000e+00> : vector<128xf32>
    %102 = vector.multi_reduction <add>, %101, %cst_23 [0] : vector<8x128xf32> to vector<128xf32>
    %103 = vector.shape_cast %102 : vector<128xf32> to vector<1x128xf32>
    %104 = tpu.reciprocal %103 {approx = true} : vector<1x128xf32> -> vector<1x128xf32>
    %105 = vector.broadcast %104 : vector<1x128xf32> to vector<8x128xf32>
    %106 = arith.mulf %101, %105 : vector<8x128xf32>
    %107 = vector.shape_cast %106 : vector<8x128xf32> to vector<8x1x128xf32>
    %108 = vector.broadcast %107 : vector<8x1x128xf32> to vector<8x32x128xf32>
    %109 = arith.mulf %108, %10 : vector<8x32x128xf32>
    %cst_24 = arith.constant dense<0.000000e+00> : vector<32x128xf32>
    %110 = vector.multi_reduction <add>, %109, %cst_24 [0] : vector<8x32x128xf32> to vector<32x128xf32>
    %111 = vector.extract_strided_slice %8 {offsets = [5, 0, 0], sizes = [1, 32, 128], strides = [1, 1, 1]} : vector<8x32x128xf32> to vector<1x32x128xf32>
    %112 = vector.shape_cast %111 : vector<1x32x128xf32> to vector<32x128xf32>
    %113 = vector.shape_cast %112 : vector<32x128xf32> to vector<1x32x128xf32>
    %114 = vector.broadcast %113 : vector<1x32x128xf32> to vector<8x32x128xf32>
    %115 = arith.mulf %114, %9 : vector<8x32x128xf32>
    %cst_25 = arith.constant dense<0.000000e+00> : vector<8x128xf32>
    %116 = vector.multi_reduction <add>, %115, %cst_25 [1] : vector<8x32x128xf32> to vector<8x128xf32>
    %cst_26 = arith.constant dense<0xFF800000> : vector<128xf32>
    %117 = vector.multi_reduction <maximumf>, %116, %cst_26 [0] : vector<8x128xf32> to vector<128xf32>
    %118 = vector.shape_cast %117 : vector<128xf32> to vector<1x128xf32>
    %119 = vector.broadcast %118 : vector<1x128xf32> to vector<8x128xf32>
    %120 = arith.subf %116, %119 : vector<8x128xf32>
    %121 = math.exp %120 : vector<8x128xf32>
    %cst_27 = arith.constant dense<0.000000e+00> : vector<128xf32>
    %122 = vector.multi_reduction <add>, %121, %cst_27 [0] : vector<8x128xf32> to vector<128xf32>
    %123 = vector.shape_cast %122 : vector<128xf32> to vector<1x128xf32>
    %124 = tpu.reciprocal %123 {approx = true} : vector<1x128xf32> -> vector<1x128xf32>
    %125 = vector.broadcast %124 : vector<1x128xf32> to vector<8x128xf32>
    %126 = arith.mulf %121, %125 : vector<8x128xf32>
    %127 = vector.shape_cast %126 : vector<8x128xf32> to vector<8x1x128xf32>
    %128 = vector.broadcast %127 : vector<8x1x128xf32> to vector<8x32x128xf32>
    %129 = arith.mulf %128, %10 : vector<8x32x128xf32>
    %cst_28 = arith.constant dense<0.000000e+00> : vector<32x128xf32>
    %130 = vector.multi_reduction <add>, %129, %cst_28 [0] : vector<8x32x128xf32> to vector<32x128xf32>
    %131 = vector.extract_strided_slice %8 {offsets = [6, 0, 0], sizes = [1, 32, 128], strides = [1, 1, 1]} : vector<8x32x128xf32> to vector<1x32x128xf32>
    %132 = vector.shape_cast %131 : vector<1x32x128xf32> to vector<32x128xf32>
    %133 = vector.shape_cast %132 : vector<32x128xf32> to vector<1x32x128xf32>
    %134 = vector.broadcast %133 : vector<1x32x128xf32> to vector<8x32x128xf32>
    %135 = arith.mulf %134, %9 : vector<8x32x128xf32>
    %cst_29 = arith.constant dense<0.000000e+00> : vector<8x128xf32>
    %136 = vector.multi_reduction <add>, %135, %cst_29 [1] : vector<8x32x128xf32> to vector<8x128xf32>
    %cst_30 = arith.constant dense<0xFF800000> : vector<128xf32>
    %137 = vector.multi_reduction <maximumf>, %136, %cst_30 [0] : vector<8x128xf32> to vector<128xf32>
    %138 = vector.shape_cast %137 : vector<128xf32> to vector<1x128xf32>
    %139 = vector.broadcast %138 : vector<1x128xf32> to vector<8x128xf32>
    %140 = arith.subf %136, %139 : vector<8x128xf32>
    %141 = math.exp %140 : vector<8x128xf32>
    %cst_31 = arith.constant dense<0.000000e+00> : vector<128xf32>
    %142 = vector.multi_reduction <add>, %141, %cst_31 [0] : vector<8x128xf32> to vector<128xf32>
    %143 = vector.shape_cast %142 : vector<128xf32> to vector<1x128xf32>
    %144 = tpu.reciprocal %143 {approx = true} : vector<1x128xf32> -> vector<1x128xf32>
    %145 = vector.broadcast %144 : vector<1x128xf32> to vector<8x128xf32>
    %146 = arith.mulf %141, %145 : vector<8x128xf32>
    %147 = vector.shape_cast %146 : vector<8x128xf32> to vector<8x1x128xf32>
    %148 = vector.broadcast %147 : vector<8x1x128xf32> to vector<8x32x128xf32>
    %149 = arith.mulf %148, %10 : vector<8x32x128xf32>
    %cst_32 = arith.constant dense<0.000000e+00> : vector<32x128xf32>
    %150 = vector.multi_reduction <add>, %149, %cst_32 [0] : vector<8x32x128xf32> to vector<32x128xf32>
    %151 = vector.extract_strided_slice %8 {offsets = [7, 0, 0], sizes = [1, 32, 128], strides = [1, 1, 1]} : vector<8x32x128xf32> to vector<1x32x128xf32>
    %152 = vector.shape_cast %151 : vector<1x32x128xf32> to vector<32x128xf32>
    %153 = vector.shape_cast %152 : vector<32x128xf32> to vector<1x32x128xf32>
    %154 = vector.broadcast %153 : vector<1x32x128xf32> to vector<8x32x128xf32>
    %155 = arith.mulf %154, %9 : vector<8x32x128xf32>
    %cst_33 = arith.constant dense<0.000000e+00> : vector<8x128xf32>
    %156 = vector.multi_reduction <add>, %155, %cst_33 [1] : vector<8x32x128xf32> to vector<8x128xf32>
    %cst_34 = arith.constant dense<0xFF800000> : vector<128xf32>
    %157 = vector.multi_reduction <maximumf>, %156, %cst_34 [0] : vector<8x128xf32> to vector<128xf32>
    %158 = vector.shape_cast %157 : vector<128xf32> to vector<1x128xf32>
    %159 = vector.broadcast %158 : vector<1x128xf32> to vector<8x128xf32>
    %160 = arith.subf %156, %159 : vector<8x128xf32>
    %161 = math.exp %160 : vector<8x128xf32>
    %cst_35 = arith.constant dense<0.000000e+00> : vector<128xf32>
    %162 = vector.multi_reduction <add>, %161, %cst_35 [0] : vector<8x128xf32> to vector<128xf32>
    %163 = vector.shape_cast %162 : vector<128xf32> to vector<1x128xf32>
    %164 = tpu.reciprocal %163 {approx = true} : vector<1x128xf32> -> vector<1x128xf32>
    %165 = vector.broadcast %164 : vector<1x128xf32> to vector<8x128xf32>
    %166 = arith.mulf %161, %165 : vector<8x128xf32>
    %167 = vector.shape_cast %166 : vector<8x128xf32> to vector<8x1x128xf32>
    %168 = vector.broadcast %167 : vector<8x1x128xf32> to vector<8x32x128xf32>
    %169 = arith.mulf %168, %10 : vector<8x32x128xf32>
    %cst_36 = arith.constant dense<0.000000e+00> : vector<32x128xf32>
    %170 = vector.multi_reduction <add>, %169, %cst_36 [0] : vector<8x32x128xf32> to vector<32x128xf32>
    %171 = vector.shape_cast %30 : vector<32x128xf32> to vector<1x32x128xf32>
    %172 = vector.shape_cast %50 : vector<32x128xf32> to vector<1x32x128xf32>
    %173 = vector.shape_cast %70 : vector<32x128xf32> to vector<1x32x128xf32>
    %174 = vector.shape_cast %90 : vector<32x128xf32> to vector<1x32x128xf32>
    %175 = vector.shape_cast %110 : vector<32x128xf32> to vector<1x32x128xf32>
    %176 = vector.shape_cast %130 : vector<32x128xf32> to vector<1x32x128xf32>
    %177 = vector.shape_cast %150 : vector<32x128xf32> to vector<1x32x128xf32>
    %178 = vector.shape_cast %170 : vector<32x128xf32> to vector<1x32x128xf32>
    %179 = tpu.concatenate %171, %172, %173, %174, %175, %176, %177, %178 in 0 : vector<1x32x128xf32>, vector<1x32x128xf32>, vector<1x32x128xf32>, vector<1x32x128xf32>, vector<1x32x128xf32>, vector<1x32x128xf32>, vector<1x32x128xf32>, vector<1x32x128xf32> -> vector<8x32x128xf32>
    %180 = vector.shape_cast %179 : vector<8x32x128xf32> to vector<256x128xf32>
    %c0_37 = arith.constant 0 : index
    %c0_38 = arith.constant 0 : index
    %181 = vector.load %arg2[%c0_37, %c0_38] : memref<512x256xbf16, #tpu.memory_space<vmem>>, vector<512x256xbf16>
    %182 = arith.truncf %180 : vector<256x128xf32> to vector<256x128xbf16>
    %cst_39 = arith.constant dense<0.000000e+00> : vector<512x128xf32>
    %183 = tpu.matmul %181, %182, %cst_39 {dimension_numbers = #tpu.dot_dimension_numbers<[1], [0], [0], [1], [0, 0, 1, 1], [], []>} : vector<512x256xbf16>, vector<256x128xbf16>, vector<512x128xf32> -> vector<512x128xf32>
    %184 = vector.shape_cast %183 : vector<512x128xf32> to vector<8x64x128xf32>
    %c96 = arith.constant 96 : index
    %c0_40 = arith.constant 0 : index
    %185 = vector.load %arg3[%c96, %c0_40] : memref<232x1xf32, #tpu.memory_space<vmem>>, vector<64x1xf32>
    %186 = vector.shape_cast %185 : vector<64x1xf32> to vector<1x64x1xf32>
    %187 = vector.broadcast %186 : vector<1x64x1xf32> to vector<8x64x128xf32>
    %188 = arith.addf %184, %187 : vector<8x64x128xf32>
    %cst_41 = arith.constant 0.000000e+00 : f32
    %189 = vector.broadcast %cst_41 : f32 to vector<8x64x128xf32>
    %190 = arith.maximumf %188, %189 : vector<8x64x128xf32>
    %c160 = arith.constant 160 : index
    %c0_42 = arith.constant 0 : index
    %191 = vector.load %arg3[%c160, %c0_42] : memref<232x1xf32, #tpu.memory_space<vmem>>, vector<64x1xf32>
    %192 = vector.shape_cast %191 : vector<64x1xf32> to vector<1x64x1xf32>
    %193 = vector.broadcast %192 : vector<1x64x1xf32> to vector<8x64x128xf32>
    %194 = arith.mulf %190, %193 : vector<8x64x128xf32>
    %cst_43 = arith.constant dense<0.000000e+00> : vector<8x128xf32>
    %195 = vector.multi_reduction <add>, %194, %cst_43 [1] : vector<8x64x128xf32> to vector<8x128xf32>
    %c224 = arith.constant 224 : index
    %c0_44 = arith.constant 0 : index
    %196 = vector.load %arg3[%c224, %c0_44] : memref<232x1xf32, #tpu.memory_space<vmem>>, vector<1x1xf32>
    %197 = vector.broadcast %196 : vector<1x1xf32> to vector<8x128xf32>
    %198 = arith.addf %195, %197 : vector<8x128xf32>
    %c0_45 = arith.constant 0 : index
    %c0_46 = arith.constant 0 : index
    %199 = vector.load %arg5[%c0_45, %c0_46] : memref<8x128xf32, #tpu.memory_space<vmem>>, vector<8x128xf32>
    tpu.vector_store %arg5[%c0_45, %c0_46], %198 {strides = array<i32>} : memref<8x128xf32, #tpu.memory_space<vmem>>, vector<8x128xf32>,
    return
  }
  func.func @transform_0(%arg0: i32) -> (i32, i32) {
    %c0_i32 = arith.constant 0 : i32
    %c0_i32_0 = arith.constant 0 : i32
    %c0_i32_1 = arith.constant 0 : i32
    return %c0_i32, %c0_i32_0 : i32, i32
  }
  func.func @transform_1(%arg0: i32) -> (i32, i32) {
    %c0_i32 = arith.constant 0 : i32
    %c0_i32_0 = arith.constant 0 : i32
    %c0_i32_1 = arith.constant 0 : i32
    return %c0_i32, %c0_i32_0 : i32, i32
  }
  func.func @transform_2(%arg0: i32) -> (i32, i32) {
    %c0_i32 = arith.constant 0 : i32
    %c0_i32_0 = arith.constant 0 : i32
    %c0_i32_1 = arith.constant 0 : i32
    return %c0_i32, %c0_i32_0 : i32, i32
  }
  func.func @transform_3(%arg0: i32) -> (i32, i32) {
    %c0_i32 = arith.constant 0 : i32
    %c0_i32_0 = arith.constant 0 : i32
    return %c0_i32, %arg0 : i32, i32
  }
  func.func @transform_4(%arg0: i32) -> (i32, i32) {
    %c0_i32 = arith.constant 0 : i32
    %c0_i32_0 = arith.constant 0 : i32
    return %c0_i32, %arg0 : i32, i32
  }
}

</mosaic_0001>

<llo_original>
// kernel: tpu_custom_call.1
$region0: #{tpu_custom_call.1}
  #allocation0 [shape = 'u32[]', space=smem, size = 0x4, offset = 0x4, fixed_abs, tag = 'smem constant byte address 0x4 - core index']
  #allocation1 [shape = 'u32[144,128]{1,0:T(1,128)}', space=vmem, size = 0x12000, scoped, tag = 'internal scratch']
  %s0 = inlined_call_operand.hbm [shape: bf16[768,128], index: 0, kind: input, shape index: {}]
  %s1 = inlined_call_operand.hbm [shape: bf16[512,256], index: 1, kind: input, shape index: {}]
  %s2 = inlined_call_operand.vmem [shape: f32[232,1], index: 2, kind: input, shape index: {}]
  %s3 = inlined_call_operand.vmem [shape: bf16[128,128], index: 3, kind: input, shape index: {}]
  %s4 = inlined_call_operand.hbm [shape: f32[8,128], index: 4, kind: output, shape index: {}]
  %s5 = sld [smem:[#allocation0]]
  $region34: #{tpu_custom_call.1} parent=0
    _
  %s7 = ssub.s32 1, %s5
  %s8 = scalar_select 0, %s7, %s5
  $region1: #{tpu_custom_call.1} parent=0
    #allocation2 [shape = 'u8[196608]{0}', space=vmem, size = 0x30000, scoped, tag = 'input window, operand 0, single buffered']
    #allocation3 [shape = 's32[1]{0}', space=sflag, size = 0x4, scoped, tag = 'scoped memory for tpu_custom_call.1']
    #allocation4 [shape = 's32[1]{0}', space=sflag, size = 0x4, scoped, tag = 'scoped memory for tpu_custom_call.1']
    #allocation5 [shape = 'u8[262144]{0}', space=vmem, size = 0x40000, scoped, tag = 'input window, operand 1, single buffered']
    #allocation6 [shape = 's32[1]{0}', space=sflag, size = 0x4, scoped, tag = 'scoped memory for tpu_custom_call.1']
    #allocation7 [shape = 'u8[4096]{0}', space=vmem, size = 0x1000, scoped, tag = 'output window, operand 0, single buffered']
    %9 = vsyncpa [#allocation3], 0
    %10 = vsyncpa [#allocation6], 0
    %11 = vsyncpa [#allocation4], 0
    // Predicated region
    $region2: #{tpu_custom_call.1} parent=1 // pred_check
      _
    $region3: #{tpu_custom_call.1} parent=1 // pred_check_branch
      %13 = sbr.rel (0) target = $region5
    $region4: #{tpu_custom_call.1} parent=1 // pred_region
      %s15 = ssub.s32 6144, 6144
      %16 = vsyncadd [#allocation3], %s15
      %s17 = sshll.u32 [#allocation2], 4
      %s18 = int_to_ptr.vmem [resolvable:$true] %s17
      %23 = dma.hbm_to_vmem [thread:$0]  %s0, 6144, %s18, [#allocation3], 64, 64, 4
    $region5: #{tpu_custom_call.1} parent=1 // pred_fallthru
      _
    // Predicated region
    $region6: #{tpu_custom_call.1} parent=1 // pred_check
      _
    $region7: #{tpu_custom_call.1} parent=1 // pred_check_branch
      %25 = sbr.rel (0) target = $region9
    $region8: #{tpu_custom_call.1} parent=1 // pred_region
      %s27 = ssub.s32 8192, 8192
      %28 = vsyncadd [#allocation6], %s27
      %s29 = sshll.u32 [#allocation5], 4
      %s30 = int_to_ptr.vmem [resolvable:$true] %s29
      %35 = dma.hbm_to_vmem [thread:$0]  %s1, 8192, %s30, [#allocation6], 128, 128, 8
    $region9: #{tpu_custom_call.1} parent=1 // pred_fallthru
      _
    // Predicated region
    $region10: #{tpu_custom_call.1} parent=1 // pred_check
      _
    $region11: #{tpu_custom_call.1} parent=1 // pred_check_branch
      %37 = sbr.rel (0) target = $region13
    $region12: #{tpu_custom_call.1} parent=1 // pred_region
      _
    $region13: #{tpu_custom_call.1} parent=1 // pred_fallthru
      _
    // Predicated region
    $region14: #{tpu_custom_call.1} parent=1 // pred_check
      _
    $region15: #{tpu_custom_call.1} parent=1 // pred_check_branch
      %39 = sbr.rel (0) target = $region17
    $region16: #{tpu_custom_call.1} parent=1 // pred_region
      _
    $region17: #{tpu_custom_call.1} parent=1 // pred_fallthru
      _
    // Predicated region
    $region18: #{tpu_custom_call.1} parent=1 // pred_check
      _
    $region19: #{tpu_custom_call.1} parent=1 // pred_check_branch
      %41 = sbr.rel (0) target = $region21
    $region20: #{tpu_custom_call.1} parent=1 // pred_region
      %42 = dma.done [#allocation3], 6144
    $region21: #{tpu_custom_call.1} parent=1 // pred_fallthru
      _
    // Predicated region
    $region22: #{tpu_custom_call.1} parent=1 // pred_check
      _
    $region23: #{tpu_custom_call.1} parent=1 // pred_check_branch
      %44 = sbr.rel (0) target = $region25
    $region24: #{tpu_custom_call.1} parent=1 // pred_region
      %45 = dma.done [#allocation6], 8192
    $region25: #{tpu_custom_call.1} parent=1 // pred_fallthru
      _
    %v47 = vld [vmem:[#allocation2] sm:$0xf]
    %v48 = vld [vmem:[#allocation2 + $0x4] sm:$0xf]
    %v49 = vld [vmem:[#allocation2 + $0x8] sm:$0xf]
    %v50 = vld [vmem:[#allocation2 + $0xc] sm:$0xf]
    %v51 = vld [vmem:[#allocation2 + $0x10] sm:$0xf]
    %v52 = vld [vmem:[#allocation2 + $0x14] sm:$0xf]
    %v53 = vld [vmem:[#allocation2 + $0x18] sm:$0xf]
    %v54 = vld [vmem:[#allocation2 + $0x1c] sm:$0xf]
    %v55 = vld [vmem:[#allocation2 + $0x20] sm:$0xf]
    %v56 = vld [vmem:[#allocation2 + $0x24] sm:$0xf]
    %v57 = vld [vmem:[#allocation2 + $0x28] sm:$0xf]
    %v58 = vld [vmem:[#allocation2 + $0x2c] sm:$0xf]
    %v59 = vld [vmem:[#allocation2 + $0x30] sm:$0xf]
    %v60 = vld [vmem:[#allocation2 + $0x34] sm:$0xf]
    %v61 = vld [vmem:[#allocation2 + $0x38] sm:$0xf]
    %v62 = vld [vmem:[#allocation2 + $0x3c] sm:$0xf]
    %v63 = vld [vmem:[#allocation2 + $0x40] sm:$0xf]
    %v64 = vld [vmem:[#allocation2 + $0x44] sm:$0xf]
    %v65 = vld [vmem:[#allocation2 + $0x48] sm:$0xf]
    %v66 = vld [vmem:[#allocation2 + $0x4c] sm:$0xf]
    %v67 = vld [vmem:[#allocation2 + $0x50] sm:$0xf]
    %v68 = vld [vmem:[#allocation2 + $0x54] sm:$0xf]
    %v69 = vld [vmem:[#allocation2 + $0x58] sm:$0xf]
    %v70 = vld [vmem:[#allocation2 + $0x5c] sm:$0xf]
    %v71 = vld [vmem:[#allocation2 + $0x60] sm:$0xf]
    %v72 = vld [vmem:[#allocation2 + $0x64] sm:$0xf]
    %v73 = vld [vmem:[#allocation2 + $0x68] sm:$0xf]
    %v74 = vld [vmem:[#allocation2 + $0x6c] sm:$0xf]
    %v75 = vld [vmem:[#allocation2 + $0x70] sm:$0xf]
    %v76 = vld [vmem:[#allocation2 + $0x74] sm:$0xf]
    %v77 = vld [vmem:[#allocation2 + $0x78] sm:$0xf]
    %v78 = vld [vmem:[#allocation2 + $0x7c] sm:$0xf]
    %v79 = vld [vmem:[#allocation2 + $0x80] sm:$0xf]
    %v80 = vld [vmem:[#allocation2 + $0x84] sm:$0xf]
    %v81 = vld [vmem:[#allocation2 + $0x88] sm:$0xf]
    %v82 = vld [vmem:[#allocation2 + $0x8c] sm:$0xf]
    %v83 = vld [vmem:[#allocation2 + $0x90] sm:$0xf]
    %v84 = vld [vmem:[#allocation2 + $0x94] sm:$0xf]
    %v85 = vld [vmem:[#allocation2 + $0x98] sm:$0xf]
    %v86 = vld [vmem:[#allocation2 + $0x9c] sm:$0xf]
    %v87 = vld [vmem:[#allocation2 + $0xa0] sm:$0xf]
    %v88 = vld [vmem:[#allocation2 + $0xa4] sm:$0xf]
    %v89 = vld [vmem:[#allocation2 + $0xa8] sm:$0xf]
    %v90 = vld [vmem:[#allocation2 + $0xac] sm:$0xf]
    %v91 = vld [vmem:[#allocation2 + $0xb0] sm:$0xf]
    %v92 = vld [vmem:[#allocation2 + $0xb4] sm:$0xf]
    %v93 = vld [vmem:[#allocation2 + $0xb8] sm:$0xf]
    %v94 = vld [vmem:[#allocation2 + $0xbc] sm:$0xf]
    %v95 = vld [vmem:[#allocation2 + $0xc0] sm:$0xf]
    %v96 = vld [vmem:[#allocation2 + $0xc4] sm:$0xf]
    %v97 = vld [vmem:[#allocation2 + $0xc8] sm:$0xf]
    %v98 = vld [vmem:[#allocation2 + $0xcc] sm:$0xf]
    %v99 = vld [vmem:[#allocation2 + $0xd0] sm:$0xf]
    %v100 = vld [vmem:[#allocation2 + $0xd4] sm:$0xf]
    %v101 = vld [vmem:[#allocation2 + $0xd8] sm:$0xf]
    %v102 = vld [vmem:[#allocation2 + $0xdc] sm:$0xf]
    %v103 = vld [vmem:[#allocation2 + $0xe0] sm:$0xf]
    %v104 = vld [vmem:[#allocation2 + $0xe4] sm:$0xf]
    %v105 = vld [vmem:[#allocation2 + $0xe8] sm:$0xf]
    %v106 = vld [vmem:[#allocation2 + $0xec] sm:$0xf]
    %v107 = vld [vmem:[#allocation2 + $0xf0] sm:$0xf]
    %v108 = vld [vmem:[#allocation2 + $0xf4] sm:$0xf]
    %v109 = vld [vmem:[#allocation2 + $0xf8] sm:$0xf]
    %v110 = vld [vmem:[#allocation2 + $0xfc] sm:$0xf]
    %v111 = vld [vmem:[#allocation2 + $0x100] sm:$0xf]
    %v112 = vld [vmem:[#allocation2 + $0x104] sm:$0xf]
    %v113 = vld [vmem:[#allocation2 + $0x108] sm:$0xf]
    %v114 = vld [vmem:[#allocation2 + $0x10c] sm:$0xf]
    %v115 = vld [vmem:[#allocation2 + $0x110] sm:$0xf]
    %v116 = vld [vmem:[#allocation2 + $0x114] sm:$0xf]
    %v117 = vld [vmem:[#allocation2 + $0x118] sm:$0xf]
    %v118 = vld [vmem:[#allocation2 + $0x11c] sm:$0xf]
    %v119 = vld [vmem:[#allocation2 + $0x120] sm:$0xf]
    %v120 = vld [vmem:[#allocation2 + $0x124] sm:$0xf]
    %v121 = vld [vmem:[#allocation2 + $0x128] sm:$0xf]
    %v122 = vld [vmem:[#allocation2 + $0x12c] sm:$0xf]
    %v123 = vld [vmem:[#allocation2 + $0x130] sm:$0xf]
    %v124 = vld [vmem:[#allocation2 + $0x134] sm:$0xf]
    %v125 = vld [vmem:[#allocation2 + $0x138] sm:$0xf]
    %v126 = vld [vmem:[#allocation2 + $0x13c] sm:$0xf]
    %v127 = vld [vmem:[#allocation2 + $0x140] sm:$0xf]
    %v128 = vld [vmem:[#allocation2 + $0x144] sm:$0xf]
    %v129 = vld [vmem:[#allocation2 + $0x148] sm:$0xf]
    %v130 = vld [vmem:[#allocation2 + $0x14c] sm:$0xf]
    %v131 = vld [vmem:[#allocation2 + $0x150] sm:$0xf]
    %v132 = vld [vmem:[#allocation2 + $0x154] sm:$0xf]
    %v133 = vld [vmem:[#allocation2 + $0x158] sm:$0xf]
    %v134 = vld [vmem:[#allocation2 + $0x15c] sm:$0xf]
    %v135 = vld [vmem:[#allocation2 + $0x160] sm:$0xf]
    %v136 = vld [vmem:[#allocation2 + $0x164] sm:$0xf]
    %v137 = vld [vmem:[#allocation2 + $0x168] sm:$0xf]
    %v138 = vld [vmem:[#allocation2 + $0x16c] sm:$0xf]
    %v139 = vld [vmem:[#allocation2 + $0x170] sm:$0xf]
    %v140 = vld [vmem:[#allocation2 + $0x174] sm:$0xf]
    %v141 = vld [vmem:[#allocation2 + $0x178] sm:$0xf]
    %v142 = vld [vmem:[#allocation2 + $0x17c] sm:$0xf]
    %v143 = vld [vmem:[%s3] sm:$0xf]
    %v144 = vld [vmem:[%s3 + $0x4] sm:$0xf]
    %v145 = vld [vmem:[%s3 + $0x8] sm:$0xf]
    %v146 = vld [vmem:[%s3 + $0xc] sm:$0xf]
    %v147 = vld [vmem:[%s3 + $0x10] sm:$0xf]
    %v148 = vld [vmem:[%s3 + $0x14] sm:$0xf]
    %v149 = vld [vmem:[%s3 + $0x18] sm:$0xf]
    %v150 = vld [vmem:[%s3 + $0x1c] sm:$0xf]
    %v151 = vld [vmem:[%s3 + $0x20] sm:$0xf]
    %v152 = vld [vmem:[%s3 + $0x24] sm:$0xf]
    %v153 = vld [vmem:[%s3 + $0x28] sm:$0xf]
    %v154 = vld [vmem:[%s3 + $0x2c] sm:$0xf]
    %v155 = vld [vmem:[%s3 + $0x30] sm:$0xf]
    %v156 = vld [vmem:[%s3 + $0x34] sm:$0xf]
    %v157 = vld [vmem:[%s3 + $0x38] sm:$0xf]
    %v158 = vld [vmem:[%s3 + $0x3c] sm:$0xf]
    %v255 = vunpack.c.l.b16 %v47
    %v256 = vunpack.c.l.b16 %v48
    %v257 = vunpack.c.l.b16 %v49
    %v258 = vunpack.c.l.b16 %v50
    %v259 = vunpack.c.l.b16 %v51
    %v260 = vunpack.c.l.b16 %v52
    %v261 = vunpack.c.l.b16 %v53
    %v262 = vunpack.c.l.b16 %v54
    %v263 = vunpack.c.l.b16 %v55
    %v264 = vunpack.c.l.b16 %v56
    %v265 = vunpack.c.l.b16 %v57
    %v266 = vunpack.c.l.b16 %v58
    %v267 = vunpack.c.l.b16 %v59
    %v268 = vunpack.c.l.b16 %v60
    %v269 = vunpack.c.l.b16 %v61
    %v270 = vunpack.c.l.b16 %v62
    %v271 = vunpack.c.l.b16 %v63
    %v272 = vunpack.c.l.b16 %v64
    %v273 = vunpack.c.l.b16 %v65
    %v274 = vunpack.c.l.b16 %v66
    %v275 = vunpack.c.l.b16 %v67
    %v276 = vunpack.c.l.b16 %v68
    %v277 = vunpack.c.l.b16 %v69
    %v278 = vunpack.c.l.b16 %v70
    %v279 = vunpack.c.l.b16 %v71
    %v280 = vunpack.c.l.b16 %v72
    %v281 = vunpack.c.l.b16 %v73
    %v282 = vunpack.c.l.b16 %v74
    %v283 = vunpack.c.l.b16 %v75
    %v284 = vunpack.c.l.b16 %v76
    %v285 = vunpack.c.l.b16 %v77
    %v286 = vunpack.c.l.b16 %v78
    %v287 = vunpack.c.l.b16 %v79
    %v288 = vunpack.c.l.b16 %v80
    %v289 = vunpack.c.l.b16 %v81
    %v290 = vunpack.c.l.b16 %v82
    %v291 = vunpack.c.l.b16 %v83
    %v292 = vunpack.c.l.b16 %v84
    %v293 = vunpack.c.l.b16 %v85
    %v294 = vunpack.c.l.b16 %v86
    %v295 = vunpack.c.l.b16 %v87
    %v296 = vunpack.c.l.b16 %v88
    %v297 = vunpack.c.l.b16 %v89
    %v298 = vunpack.c.l.b16 %v90
    %v299 = vunpack.c.l.b16 %v91
    %v300 = vunpack.c.l.b16 %v92
    %v301 = vunpack.c.l.b16 %v93
    %v302 = vunpack.c.l.b16 %v94
    %v303 = vunpack.c.l.b16 %v95
    %v304 = vunpack.c.l.b16 %v96
    %v305 = vunpack.c.l.b16 %v97
    %v306 = vunpack.c.l.b16 %v98
    %v307 = vunpack.c.l.b16 %v99
    %v308 = vunpack.c.l.b16 %v100
    %v309 = vunpack.c.l.b16 %v101
    %v310 = vunpack.c.l.b16 %v102
    %v311 = vunpack.c.l.b16 %v103
    %v312 = vunpack.c.l.b16 %v104
    %v313 = vunpack.c.l.b16 %v105
    %v314 = vunpack.c.l.b16 %v106
    %v315 = vunpack.c.l.b16 %v107
    %v316 = vunpack.c.l.b16 %v108
    %v317 = vunpack.c.l.b16 %v109
    %v318 = vunpack.c.l.b16 %v110
    %v319 = vunpack.c.l.b16 %v111
    %v320 = vunpack.c.l.b16 %v112
    %v321 = vunpack.c.l.b16 %v113
    %v322 = vunpack.c.l.b16 %v114
    %v323 = vunpack.c.l.b16 %v115
    %v324 = vunpack.c.l.b16 %v116
    %v325 = vunpack.c.l.b16 %v117
    %v326 = vunpack.c.l.b16 %v118
    %v327 = vunpack.c.l.b16 %v119
    %v328 = vunpack.c.l.b16 %v120
    %v329 = vunpack.c.l.b16 %v121
    %v330 = vunpack.c.l.b16 %v122
    %v331 = vunpack.c.l.b16 %v123
    %v332 = vunpack.c.l.b16 %v124
    %v333 = vunpack.c.l.b16 %v125
    %v334 = vunpack.c.l.b16 %v126
    %v335 = vunpack.c.l.b16 %v127
    %v336 = vunpack.c.l.b16 %v128
    %v337 = vunpack.c.l.b16 %v129
    %v338 = vunpack.c.l.b16 %v130
    %v339 = vunpack.c.l.b16 %v131
    %v340 = vunpack.c.l.b16 %v132
    %v341 = vunpack.c.l.b16 %v133
    %v342 = vunpack.c.l.b16 %v134
    %v343 = vunpack.c.l.b16 %v135
    %v344 = vunpack.c.l.b16 %v136
    %v345 = vunpack.c.l.b16 %v137
    %v346 = vunpack.c.l.b16 %v138
    %v347 = vunpack.c.l.b16 %v139
    %v348 = vunpack.c.l.b16 %v140
    %v349 = vunpack.c.l.b16 %v141
    %v350 = vunpack.c.l.b16 %v142
    %v351 = vpack.c.b16 %v256, %v255
    %v352 = vpack.c.b16 %v258, %v257
    %v353 = vpack.c.b16 %v260, %v259
    %v354 = vpack.c.b16 %v262, %v261
    %v355 = vpack.c.b16 %v264, %v263
    %v356 = vpack.c.b16 %v266, %v265
    %v357 = vpack.c.b16 %v268, %v267
    %v358 = vpack.c.b16 %v270, %v269
    %v359 = vpack.c.b16 %v272, %v271
    %v360 = vpack.c.b16 %v274, %v273
    %v361 = vpack.c.b16 %v276, %v275
    %v362 = vpack.c.b16 %v278, %v277
    %v363 = vpack.c.b16 %v280, %v279
    %v364 = vpack.c.b16 %v282, %v281
    %v365 = vpack.c.b16 %v284, %v283
    %v366 = vpack.c.b16 %v286, %v285
    %v367 = vpack.c.b16 %v288, %v287
    %v368 = vpack.c.b16 %v290, %v289
    %v369 = vpack.c.b16 %v292, %v291
    %v370 = vpack.c.b16 %v294, %v293
    %v371 = vpack.c.b16 %v296, %v295
    %v372 = vpack.c.b16 %v298, %v297
    %v373 = vpack.c.b16 %v300, %v299
    %v374 = vpack.c.b16 %v302, %v301
    %v375 = vpack.c.b16 %v304, %v303
    %v376 = vpack.c.b16 %v306, %v305
    %v377 = vpack.c.b16 %v308, %v307
    %v378 = vpack.c.b16 %v310, %v309
    %v379 = vpack.c.b16 %v312, %v311
    %v380 = vpack.c.b16 %v314, %v313
    %v381 = vpack.c.b16 %v316, %v315
    %v382 = vpack.c.b16 %v318, %v317
    %v383 = vpack.c.b16 %v320, %v319
    %v384 = vpack.c.b16 %v322, %v321
    %v385 = vpack.c.b16 %v324, %v323
    %v386 = vpack.c.b16 %v326, %v325
    %v387 = vpack.c.b16 %v328, %v327
    %v388 = vpack.c.b16 %v330, %v329
    %v389 = vpack.c.b16 %v332, %v331
    %v390 = vpack.c.b16 %v334, %v333
    %v391 = vpack.c.b16 %v336, %v335
    %v392 = vpack.c.b16 %v338, %v337
    %v393 = vpack.c.b16 %v340, %v339
    %v394 = vpack.c.b16 %v342, %v341
    %v395 = vpack.c.b16 %v344, %v343
    %v396 = vpack.c.b16 %v346, %v345
    %v397 = vpack.c.b16 %v348, %v347
    %v398 = vpack.c.b16 %v350, %v349
    %v463 = vunpack.c.l.b16 %v143
    %v464 = vunpack.c.l.b16 %v144
    %v465 = vunpack.c.l.b16 %v145
    %v466 = vunpack.c.l.b16 %v146
    %v467 = vunpack.c.l.b16 %v147
    %v468 = vunpack.c.l.b16 %v148
    %v469 = vunpack.c.l.b16 %v149
    %v470 = vunpack.c.l.b16 %v150
    %v471 = vunpack.c.l.b16 %v151
    %v472 = vunpack.c.l.b16 %v152
    %v473 = vunpack.c.l.b16 %v153
    %v474 = vunpack.c.l.b16 %v154
    %v475 = vunpack.c.l.b16 %v155
    %v476 = vunpack.c.l.b16 %v156
    %v477 = vunpack.c.l.b16 %v157
    %v478 = vunpack.c.l.b16 %v158
    %v479 = vpack.c.b16 %v464, %v463
    %v480 = vpack.c.b16 %v466, %v465
    %v481 = vpack.c.b16 %v468, %v467
    %v482 = vpack.c.b16 %v470, %v469
    %v483 = vpack.c.b16 %v472, %v471
    %v484 = vpack.c.b16 %v474, %v473
    %v485 = vpack.c.b16 %v476, %v475
    %v486 = vpack.c.b16 %v478, %v477
    %495 = vmatprep.subr.bf16.mxu0 0
    %496 = vmatpush1.bf16.msra.mxu0 %v479
    %497 = vmatprep.subr.bf16.mxu0 0
    %498 = vmatpush1.bf16.msra.mxu0 %v480
    %499 = vmatprep.subr.bf16.mxu0 0
    %500 = vmatpush1.bf16.msra.mxu0 %v481
    %501 = vmatprep.subr.bf16.mxu0 0
    %502 = vmatpush1.bf16.msra.mxu0 %v482
    %503 = vmatprep.subr.bf16.mxu0 0
    %504 = vmatpush1.bf16.msra.mxu0 %v483
    %505 = vmatprep.subr.bf16.mxu0 0
    %506 = vmatpush1.bf16.msra.mxu0 %v484
    %507 = vmatprep.subr.bf16.mxu0 0
    %508 = vmatpush1.bf16.msra.mxu0 %v485
    %509 = vmatprep.subr.bf16.mxu0 0
    %510 = vmatpush1.bf16.msra.mxu0 %v486
    %511 = vmatprep.subr.bf16.mxu0 0
    %512 = vmatpush1.bf16.msra.mxu0 0
    %513 = vmatprep.subr.bf16.mxu0 0
    %514 = vmatpush1.bf16.msra.mxu0 0
    %515 = vmatprep.subr.bf16.mxu0 0
    %516 = vmatpush1.bf16.msra.mxu0 0
    %517 = vmatprep.subr.bf16.mxu0 0
    %518 = vmatpush1.bf16.msra.mxu0 0
    %519 = vmatprep.subr.bf16.mxu0 0
    %520 = vmatpush1.bf16.msra.mxu0 0
    %521 = vmatprep.subr.bf16.mxu0 0
    %522 = vmatpush1.bf16.msra.mxu0 0
    %523 = vmatprep.subr.bf16.mxu0 0
    %524 = vmatpush1.bf16.msra.mxu0 0
    %525 = vmatprep.subr.bf16.mxu0 0
    %526 = vmatpush1.bf16.msra.mxu0 0
    %527 = vmatprep.mubr.bf16.mxu0 0
    %528 = vmatmul.mubr.bf16.gmra.mrb[0].mxu0 %v351
    %v529 = vpop.f32.mrb[0].mxu0
    %v530 = vadd.f32 0.0, %v529
    %v531 = vpop.f32.mrb[0].mxu0
    %v532 = vpop.f32.mrb[0].mxu0
    %v533 = vadd.f32 0.0, %v532
    %v534 = vpop.f32.mrb[0].mxu0
    %535 = vmatprep.mubr.bf16.mxu0 0
    %536 = vmatmul.mubr.bf16.gmra.mrb[0].mxu0 %v352
    %v537 = vpop.f32.mrb[0].mxu0
    %v538 = vadd.f32 0.0, %v537
    %v539 = vpop.f32.mrb[0].mxu0
    %v540 = vpop.f32.mrb[0].mxu0
    %v541 = vadd.f32 0.0, %v540
    %v542 = vpop.f32.mrb[0].mxu0
    %543 = vmatprep.mubr.bf16.mxu0 0
    %544 = vmatmul.mubr.bf16.gmra.mrb[0].mxu0 %v353
    %v545 = vpop.f32.mrb[0].mxu0
    %v546 = vadd.f32 0.0, %v545
    %v547 = vpop.f32.mrb[0].mxu0
    %v548 = vpop.f32.mrb[0].mxu0
    %v549 = vadd.f32 0.0, %v548
    %v550 = vpop.f32.mrb[0].mxu0
    %551 = vmatprep.mubr.bf16.mxu0 0
    %552 = vmatmul.mubr.bf16.gmra.mrb[0].mxu0 %v354
    %v553 = vpop.f32.mrb[0].mxu0
    %v554 = vadd.f32 0.0, %v553
    %v555 = vpop.f32.mrb[0].mxu0
    %v556 = vpop.f32.mrb[0].mxu0
    %v557 = vadd.f32 0.0, %v556
    %v558 = vpop.f32.mrb[0].mxu0
    %559 = vmatprep.mubr.bf16.mxu0 0
    %560 = vmatmul.mubr.bf16.gmra.mrb[0].mxu0 %v355
    %v561 = vpop.f32.mrb[0].mxu0
    %v562 = vadd.f32 0.0, %v561
    %v563 = vpop.f32.mrb[0].mxu0
    %v564 = vpop.f32.mrb[0].mxu0
    %v565 = vadd.f32 0.0, %v564
    %v566 = vpop.f32.mrb[0].mxu0
    %567 = vmatprep.mubr.bf16.mxu0 0
    %568 = vmatmul.mubr.bf16.gmra.mrb[0].mxu0 %v356
    %v569 = vpop.f32.mrb[0].mxu0
    %v570 = vadd.f32 0.0, %v569
    %v571 = vpop.f32.mrb[0].mxu0
    %v572 = vpop.f32.mrb[0].mxu0
    %v573 = vadd.f32 0.0, %v572
    %v574 = vpop.f32.mrb[0].mxu0
    %575 = vmatprep.mubr.bf16.mxu0 0
    %576 = vmatmul.mubr.bf16.gmra.mrb[0].mxu0 %v357
    %v577 = vpop.f32.mrb[0].mxu0
    %v578 = vadd.f32 0.0, %v577
    %v579 = vpop.f32.mrb[0].mxu0
    %v580 = vpop.f32.mrb[0].mxu0
    %v581 = vadd.f32 0.0, %v580
    %v582 = vpop.f32.mrb[0].mxu0
    %583 = vmatprep.mubr.bf16.mxu0 0
    %584 = vmatmul.mubr.bf16.gmra.mrb[0].mxu0 %v358
    %v585 = vpop.f32.mrb[0].mxu0
    %v586 = vadd.f32 0.0, %v585
    %v587 = vpop.f32.mrb[0].mxu0
    %v588 = vpop.f32.mrb[0].mxu0
    %v589 = vadd.f32 0.0, %v588
    %v590 = vpop.f32.mrb[0].mxu0
    %591 = vmatprep.mubr.bf16.mxu0 0
    %592 = vmatmul.mubr.bf16.gmra.mrb[0].mxu0 %v359
    %v593 = vpop.f32.mrb[0].mxu0
    %v594 = vadd.f32 0.0, %v593
    %v595 = vpop.f32.mrb[0].mxu0
    %v596 = vpop.f32.mrb[0].mxu0
    %v597 = vadd.f32 0.0, %v596
    %v598 = vpop.f32.mrb[0].mxu0
    %599 = vmatprep.mubr.bf16.mxu0 0
    %600 = vmatmul.mubr.bf16.gmra.mrb[0].mxu0 %v360
    %v601 = vpop.f32.mrb[0].mxu0
    %v602 = vadd.f32 0.0, %v601
    %v603 = vpop.f32.mrb[0].mxu0
    %v604 = vpop.f32.mrb[0].mxu0
    %v605 = vadd.f32 0.0, %v604
    %v606 = vpop.f32.mrb[0].mxu0
    %607 = vmatprep.mubr.bf16.mxu0 0
    %608 = vmatmul.mubr.bf16.gmra.mrb[0].mxu0 %v361
    %v609 = vpop.f32.mrb[0].mxu0
    %v610 = vadd.f32 0.0, %v609
    %v611 = vpop.f32.mrb[0].mxu0
    %v612 = vpop.f32.mrb[0].mxu0
    %v613 = vadd.f32 0.0, %v612
    %v614 = vpop.f32.mrb[0].mxu0
    %615 = vmatprep.mubr.bf16.mxu0 0
    %616 = vmatmul.mubr.bf16.gmra.mrb[0].mxu0 %v362
    %v617 = vpop.f32.mrb[0].mxu0
    %v618 = vadd.f32 0.0, %v617
    %v619 = vpop.f32.mrb[0].mxu0
    %v620 = vpop.f32.mrb[0].mxu0
    %v621 = vadd.f32 0.0, %v620
    %v622 = vpop.f32.mrb[0].mxu0
    %623 = vmatprep.mubr.bf16.mxu0 0
    %624 = vmatmul.mubr.bf16.gmra.mrb[0].mxu0 %v363
    %v625 = vpop.f32.mrb[0].mxu0
    %v626 = vadd.f32 0.0, %v625
    %v627 = vpop.f32.mrb[0].mxu0
    %v628 = vpop.f32.mrb[0].mxu0
    %v629 = vadd.f32 0.0, %v628
    %v630 = vpop.f32.mrb[0].mxu0
    %631 = vmatprep.mubr.bf16.mxu0 0
    %632 = vmatmul.mubr.bf16.gmra.mrb[0].mxu0 %v364
    %v633 = vpop.f32.mrb[0].mxu0
    %v634 = vadd.f32 0.0, %v633
    %v635 = vpop.f32.mrb[0].mxu0
    %v636 = vpop.f32.mrb[0].mxu0
    %v637 = vadd.f32 0.0, %v636
    %v638 = vpop.f32.mrb[0].mxu0
    %639 = vmatprep.mubr.bf16.mxu0 0
    %640 = vmatmul.mubr.bf16.gmra.mrb[0].mxu0 %v365
    %v641 = vpop.f32.mrb[0].mxu0
    %v642 = vadd.f32 0.0, %v641
    %v643 = vpop.f32.mrb[0].mxu0
    %v644 = vpop.f32.mrb[0].mxu0
    %v645 = vadd.f32 0.0, %v644
    %v646 = vpop.f32.mrb[0].mxu0
    %647 = vmatprep.mubr.bf16.mxu0 0
    %648 = vmatmul.mubr.bf16.gmra.mrb[0].mxu0 %v366
    %v649 = vpop.f32.mrb[0].mxu0
    %v650 = vadd.f32 0.0, %v649
    %v651 = vpop.f32.mrb[0].mxu0
    %v652 = vpop.f32.mrb[0].mxu0
    %v653 = vadd.f32 0.0, %v652
    %v654 = vpop.f32.mrb[0].mxu0
    %655 = vmatprep.mubr.bf16.mxu0 0
    %656 = vmatmul.mubr.bf16.gmra.mrb[0].mxu0 %v367
    %v657 = vpop.f32.mrb[0].mxu0
    %v658 = vadd.f32 0.0, %v657
    %v659 = vpop.f32.mrb[0].mxu0
    %v660 = vpop.f32.mrb[0].mxu0
    %v661 = vadd.f32 0.0, %v660
    %v662 = vpop.f32.mrb[0].mxu0
    %663 = vmatprep.mubr.bf16.mxu0 0
    %664 = vmatmul.mubr.bf16.gmra.mrb[0].mxu0 %v368
    %v665 = vpop.f32.mrb[0].mxu0
    %v666 = vadd.f32 0.0, %v665
    %v667 = vpop.f32.mrb[0].mxu0
    %v668 = vpop.f32.mrb[0].mxu0
    %v669 = vadd.f32 0.0, %v668
    %v670 = vpop.f32.mrb[0].mxu0
    %671 = vmatprep.mubr.bf16.mxu0 0
    %672 = vmatmul.mubr.bf16.gmra.mrb[0].mxu0 %v369
    %v673 = vpop.f32.mrb[0].mxu0
    %v674 = vadd.f32 0.0, %v673
    %v675 = vpop.f32.mrb[0].mxu0
    %v676 = vpop.f32.mrb[0].mxu0
    %v677 = vadd.f32 0.0, %v676
    %v678 = vpop.f32.mrb[0].mxu0
    %679 = vmatprep.mubr.bf16.mxu0 0
    %680 = vmatmul.mubr.bf16.gmra.mrb[0].mxu0 %v370
    %v681 = vpop.f32.mrb[0].mxu0
    %v682 = vadd.f32 0.0, %v681
    %v683 = vpop.f32.mrb[0].mxu0
    %v684 = vpop.f32.mrb[0].mxu0
    %v685 = vadd.f32 0.0, %v684
    %v686 = vpop.f32.mrb[0].mxu0
    %687 = vmatprep.mubr.bf16.mxu0 0
    %688 = vmatmul.mubr.bf16.gmra.mrb[0].mxu0 %v371
    %v689 = vpop.f32.mrb[0].mxu0
    %v690 = vadd.f32 0.0, %v689
    %v691 = vpop.f32.mrb[0].mxu0
    %v692 = vpop.f32.mrb[0].mxu0
    %v693 = vadd.f32 0.0, %v692
    %v694 = vpop.f32.mrb[0].mxu0
    %695 = vmatprep.mubr.bf16.mxu0 0
    %696 = vmatmul.mubr.bf16.gmra.mrb[0].mxu0 %v372
    %v697 = vpop.f32.mrb[0].mxu0
    %v698 = vadd.f32 0.0, %v697
    %v699 = vpop.f32.mrb[0].mxu0
    %v700 = vpop.f32.mrb[0].mxu0
    %v701 = vadd.f32 0.0, %v700
    %v702 = vpop.f32.mrb[0].mxu0
    %703 = vmatprep.mubr.bf16.mxu0 0
    %704 = vmatmul.mubr.bf16.gmra.mrb[0].mxu0 %v373
    %v705 = vpop.f32.mrb[0].mxu0
    %v706 = vadd.f32 0.0, %v705
    %v707 = vpop.f32.mrb[0].mxu0
    %v708 = vpop.f32.mrb[0].mxu0
    %v709 = vadd.f32 0.0, %v708
    %v710 = vpop.f32.mrb[0].mxu0
    %711 = vmatprep.mubr.bf16.mxu0 0
    %712 = vmatmul.mubr.bf16.gmra.mrb[0].mxu0 %v374
    %v713 = vpop.f32.mrb[0].mxu0
    %v714 = vadd.f32 0.0, %v713
    %v715 = vpop.f32.mrb[0].mxu0
    %v716 = vpop.f32.mrb[0].mxu0
    %v717 = vadd.f32 0.0, %v716
    %v718 = vpop.f32.mrb[0].mxu0
    %719 = vmatprep.mubr.bf16.mxu0 0
    %720 = vmatmul.mubr.bf16.gmra.mrb[0].mxu0 %v375
    %v721 = vpop.f32.mrb[0].mxu0
    %v722 = vadd.f32 0.0, %v721
    %v723 = vpop.f32.mrb[0].mxu0
    %v724 = vpop.f32.mrb[0].mxu0
    %v725 = vadd.f32 0.0, %v724
    %v726 = vpop.f32.mrb[0].mxu0
    %727 = vmatprep.mubr.bf16.mxu0 0
    %728 = vmatmul.mubr.bf16.gmra.mrb[0].mxu0 %v376
    %v729 = vpop.f32.mrb[0].mxu0
    %v730 = vadd.f32 0.0, %v729
    %v731 = vpop.f32.mrb[0].mxu0
    %v732 = vpop.f32.mrb[0].mxu0
    %v733 = vadd.f32 0.0, %v732
    %v734 = vpop.f32.mrb[0].mxu0
    %735 = vmatprep.mubr.bf16.mxu0 0
    %736 = vmatmul.mubr.bf16.gmra.mrb[0].mxu0 %v377
    %v737 = vpop.f32.mrb[0].mxu0
    %v738 = vadd.f32 0.0, %v737
    %v739 = vpop.f32.mrb[0].mxu0
    %v740 = vpop.f32.mrb[0].mxu0
    %v741 = vadd.f32 0.0, %v740
    %v742 = vpop.f32.mrb[0].mxu0
    %743 = vmatprep.mubr.bf16.mxu0 0
    %744 = vmatmul.mubr.bf16.gmra.mrb[0].mxu0 %v378
    %v745 = vpop.f32.mrb[0].mxu0
    %v746 = vadd.f32 0.0, %v745
    %v747 = vpop.f32.mrb[0].mxu0
    %v748 = vpop.f32.mrb[0].mxu0
    %v749 = vadd.f32 0.0, %v748
    %v750 = vpop.f32.mrb[0].mxu0
    %751 = vmatprep.mubr.bf16.mxu0 0
    %752 = vmatmul.mubr.bf16.gmra.mrb[0].mxu0 %v379
    %v753 = vpop.f32.mrb[0].mxu0
    %v754 = vadd.f32 0.0, %v753
    %v755 = vpop.f32.mrb[0].mxu0
    %v756 = vpop.f32.mrb[0].mxu0
    %v757 = vadd.f32 0.0, %v756
    %v758 = vpop.f32.mrb[0].mxu0
    %759 = vmatprep.mubr.bf16.mxu0 0
    %760 = vmatmul.mubr.bf16.gmra.mrb[0].mxu0 %v380
    %v761 = vpop.f32.mrb[0].mxu0
    %v762 = vadd.f32 0.0, %v761
    %v763 = vpop.f32.mrb[0].mxu0
    %v764 = vpop.f32.mrb[0].mxu0
    %v765 = vadd.f32 0.0, %v764
    %v766 = vpop.f32.mrb[0].mxu0
    %767 = vmatprep.mubr.bf16.mxu0 0
    %768 = vmatmul.mubr.bf16.gmra.mrb[0].mxu0 %v381
    %v769 = vpop.f32.mrb[0].mxu0
    %v770 = vadd.f32 0.0, %v769
    %v771 = vpop.f32.mrb[0].mxu0
    %v772 = vpop.f32.mrb[0].mxu0
    %v773 = vadd.f32 0.0, %v772
    %v774 = vpop.f32.mrb[0].mxu0
    %775 = vmatprep.mubr.bf16.mxu0 0
    %776 = vmatmul.mubr.bf16.gmra.mrb[0].mxu0 %v382
    %v777 = vpop.f32.mrb[0].mxu0
    %v778 = vadd.f32 0.0, %v777
    %v779 = vpop.f32.mrb[0].mxu0
    %v780 = vpop.f32.mrb[0].mxu0
    %v781 = vadd.f32 0.0, %v780
    %v782 = vpop.f32.mrb[0].mxu0
    %783 = vmatprep.mubr.bf16.mxu0 0
    %784 = vmatmul.mubr.bf16.gmra.mrb[0].mxu0 %v383
    %v785 = vpop.f32.mrb[0].mxu0
    %v786 = vadd.f32 0.0, %v785
    %v787 = vpop.f32.mrb[0].mxu0
    %v788 = vpop.f32.mrb[0].mxu0
    %v789 = vadd.f32 0.0, %v788
    %v790 = vpop.f32.mrb[0].mxu0
    %791 = vmatprep.mubr.bf16.mxu0 0
    %792 = vmatmul.mubr.bf16.gmra.mrb[0].mxu0 %v384
    %v793 = vpop.f32.mrb[0].mxu0
    %v794 = vadd.f32 0.0, %v793
    %v795 = vpop.f32.mrb[0].mxu0
    %v796 = vpop.f32.mrb[0].mxu0
    %v797 = vadd.f32 0.0, %v796
    %v798 = vpop.f32.mrb[0].mxu0
    %799 = vmatprep.mubr.bf16.mxu0 0
    %800 = vmatmul.mubr.bf16.gmra.mrb[0].mxu0 %v385
    %v801 = vpop.f32.mrb[0].mxu0
    %v802 = vadd.f32 0.0, %v801
    %v803 = vpop.f32.mrb[0].mxu0
    %v804 = vpop.f32.mrb[0].mxu0
    %v805 = vadd.f32 0.0, %v804
    %v806 = vpop.f32.mrb[0].mxu0
    %807 = vmatprep.mubr.bf16.mxu0 0
    %808 = vmatmul.mubr.bf16.gmra.mrb[0].mxu0 %v386
    %v809 = vpop.f32.mrb[0].mxu0
    %v810 = vadd.f32 0.0, %v809
    %v811 = vpop.f32.mrb[0].mxu0
    %v812 = vpop.f32.mrb[0].mxu0
    %v813 = vadd.f32 0.0, %v812
    %v814 = vpop.f32.mrb[0].mxu0
    %815 = vmatprep.mubr.bf16.mxu0 0
    %816 = vmatmul.mubr.bf16.gmra.mrb[0].mxu0 %v387
    %v817 = vpop.f32.mrb[0].mxu0
    %v818 = vadd.f32 0.0, %v817
    %v819 = vpop.f32.mrb[0].mxu0
    %v820 = vpop.f32.mrb[0].mxu0
    %v821 = vadd.f32 0.0, %v820
    %v822 = vpop.f32.mrb[0].mxu0
    %823 = vmatprep.mubr.bf16.mxu0 0
    %824 = vmatmul.mubr.bf16.gmra.mrb[0].mxu0 %v388
    %v825 = vpop.f32.mrb[0].mxu0
    %v826 = vadd.f32 0.0, %v825
    %v827 = vpop.f32.mrb[0].mxu0
    %v828 = vpop.f32.mrb[0].mxu0
    %v829 = vadd.f32 0.0, %v828
    %v830 = vpop.f32.mrb[0].mxu0
    %831 = vmatprep.mubr.bf16.mxu0 0
    %832 = vmatmul.mubr.bf16.gmra.mrb[0].mxu0 %v389
    %v833 = vpop.f32.mrb[0].mxu0
    %v834 = vadd.f32 0.0, %v833
    %v835 = vpop.f32.mrb[0].mxu0
    %v836 = vpop.f32.mrb[0].mxu0
    %v837 = vadd.f32 0.0, %v836
    %v838 = vpop.f32.mrb[0].mxu0
    %839 = vmatprep.mubr.bf16.mxu0 0
    %840 = vmatmul.mubr.bf16.gmra.mrb[0].mxu0 %v390
    %v841 = vpop.f32.mrb[0].mxu0
    %v842 = vadd.f32 0.0, %v841
    %v843 = vpop.f32.mrb[0].mxu0
    %v844 = vpop.f32.mrb[0].mxu0
    %v845 = vadd.f32 0.0, %v844
    %v846 = vpop.f32.mrb[0].mxu0
    %847 = vmatprep.mubr.bf16.mxu0 0
    %848 = vmatmul.mubr.bf16.gmra.mrb[0].mxu0 %v391
    %v849 = vpop.f32.mrb[0].mxu0
    %v850 = vadd.f32 0.0, %v849
    %v851 = vpop.f32.mrb[0].mxu0
    %v852 = vpop.f32.mrb[0].mxu0
    %v853 = vadd.f32 0.0, %v852
    %v854 = vpop.f32.mrb[0].mxu0
    %855 = vmatprep.mubr.bf16.mxu0 0
    %856 = vmatmul.mubr.bf16.gmra.mrb[0].mxu0 %v392
    %v857 = vpop.f32.mrb[0].mxu0
    %v858 = vadd.f32 0.0, %v857
    %v859 = vpop.f32.mrb[0].mxu0
    %v860 = vpop.f32.mrb[0].mxu0
    %v861 = vadd.f32 0.0, %v860
    %v862 = vpop.f32.mrb[0].mxu0
    %863 = vmatprep.mubr.bf16.mxu0 0
    %864 = vmatmul.mubr.bf16.gmra.mrb[0].mxu0 %v393
    %v865 = vpop.f32.mrb[0].mxu0
    %v866 = vadd.f32 0.0, %v865
    %v867 = vpop.f32.mrb[0].mxu0
    %v868 = vpop.f32.mrb[0].mxu0
    %v869 = vadd.f32 0.0, %v868
    %v870 = vpop.f32.mrb[0].mxu0
    %871 = vmatprep.mubr.bf16.mxu0 0
    %872 = vmatmul.mubr.bf16.gmra.mrb[0].mxu0 %v394
    %v873 = vpop.f32.mrb[0].mxu0
    %v874 = vadd.f32 0.0, %v873
    %v875 = vpop.f32.mrb[0].mxu0
    %v876 = vpop.f32.mrb[0].mxu0
    %v877 = vadd.f32 0.0, %v876
    %v878 = vpop.f32.mrb[0].mxu0
    %879 = vmatprep.mubr.bf16.mxu0 0
    %880 = vmatmul.mubr.bf16.gmra.mrb[0].mxu0 %v395
    %v881 = vpop.f32.mrb[0].mxu0
    %v882 = vadd.f32 0.0, %v881
    %v883 = vpop.f32.mrb[0].mxu0
    %v884 = vpop.f32.mrb[0].mxu0
    %v885 = vadd.f32 0.0, %v884
    %v886 = vpop.f32.mrb[0].mxu0
    %887 = vmatprep.mubr.bf16.mxu0 0
    %888 = vmatmul.mubr.bf16.gmra.mrb[0].mxu0 %v396
    %v889 = vpop.f32.mrb[0].mxu0
    %v890 = vadd.f32 0.0, %v889
    %v891 = vpop.f32.mrb[0].mxu0
    %v892 = vpop.f32.mrb[0].mxu0
    %v893 = vadd.f32 0.0, %v892
    %v894 = vpop.f32.mrb[0].mxu0
    %895 = vmatprep.mubr.bf16.mxu0 0
    %896 = vmatmul.mubr.bf16.gmra.mrb[0].mxu0 %v397
    %v897 = vpop.f32.mrb[0].mxu0
    %v898 = vadd.f32 0.0, %v897
    %v899 = vpop.f32.mrb[0].mxu0
    %v900 = vpop.f32.mrb[0].mxu0
    %v901 = vadd.f32 0.0, %v900
    %v902 = vpop.f32.mrb[0].mxu0
    %903 = vmatprep.mubr.bf16.mxu0 0
    %904 = vmatmul.mubr.bf16.gmra.mrb[0].mxu0 %v398
    %v905 = vpop.f32.mrb[0].mxu0
    %v906 = vadd.f32 0.0, %v905
    %v907 = vpop.f32.mrb[0].mxu0
    %v908 = vpop.f32.mrb[0].mxu0
    %v909 = vadd.f32 0.0, %v908
    %v910 = vpop.f32.mrb[0].mxu0
    %911 = vdwg.mxu0
    %v912 = vld [vmem:[%s2] sm:$0xff]
    %v913 = vld [vmem:[%s2 + $0x8] sm:$0xff]
    %v914 = vld [vmem:[%s2 + $0x10] sm:$0xff]
    %v915 = vld [vmem:[%s2 + $0x18] sm:$0xff]
    %v916 = vld [vmem:[%s2 + $0x20] sm:$0xff]
    %v917 = vld [vmem:[%s2 + $0x28] sm:$0xff]
    %v918 = vld [vmem:[%s2 + $0x30] sm:$0xff]
    %v919 = vld [vmem:[%s2 + $0x38] sm:$0xff]
    %v920 = vld [vmem:[%s2 + $0x40] sm:$0xff]
    %v921 = vld [vmem:[%s2 + $0x48] sm:$0xff]
    %v922 = vld [vmem:[%s2 + $0x50] sm:$0xff]
    %v923 = vld [vmem:[%s2 + $0x58] sm:$0xff]
    %925 = vset.pattern.permute.xlu0 0
    %926 = vperm.xlu0 %925, %v912
    %v927 = vpop.permute.xlu0 %926
    %930 = vset.pattern.permute.xlu0 0
    %931 = vperm.xlu0 %930, %v913
    %v932 = vpop.permute.xlu0 %931
    %935 = vset.pattern.permute.xlu0 0
    %936 = vperm.xlu0 %935, %v914
    %v937 = vpop.permute.xlu0 %936
    %940 = vset.pattern.permute.xlu0 0
    %941 = vperm.xlu0 %940, %v915
    %v942 = vpop.permute.xlu0 %941
    %945 = vset.pattern.permute.xlu0 0
    %946 = vperm.xlu0 %945, %v916
    %v947 = vpop.permute.xlu0 %946
    %950 = vset.pattern.permute.xlu0 0
    %951 = vperm.xlu0 %950, %v917
    %v952 = vpop.permute.xlu0 %951
    %955 = vset.pattern.permute.xlu0 0
    %956 = vperm.xlu0 %955, %v918
    %v957 = vpop.permute.xlu0 %956
    %960 = vset.pattern.permute.xlu0 0
    %961 = vperm.xlu0 %960, %v919
    %v962 = vpop.permute.xlu0 %961
    %965 = vset.pattern.permute.xlu0 0
    %966 = vperm.xlu0 %965, %v920
    %v967 = vpop.permute.xlu0 %966
    %970 = vset.pattern.permute.xlu0 0
    %971 = vperm.xlu0 %970, %v921
    %v972 = vpop.permute.xlu0 %971
    %975 = vset.pattern.permute.xlu0 0
    %976 = vperm.xlu0 %975, %v922
    %v977 = vpop.permute.xlu0 %976
    %980 = vset.pattern.permute.xlu0 0
    %981 = vperm.xlu0 %980, %v923
    %v982 = vpop.permute.xlu0 %981
    %v984 = vadd.f32 %v530, %v927
    %v985 = vadd.f32 %v533, %v932
    %v986 = vadd.f32 %v538, %v937
    %v987 = vadd.f32 %v541, %v942
    %v988 = vadd.f32 %v546, %v947
    %v989 = vadd.f32 %v549, %v952
    %v990 = vadd.f32 %v554, %v957
    %v991 = vadd.f32 %v557, %v962
    %v992 = vadd.f32 %v562, %v967
    %v993 = vadd.f32 %v565, %v972
    %v994 = vadd.f32 %v570, %v977
    %v995 = vadd.f32 %v573, %v982
    %v996 = vadd.f32 %v578, %v927
    %v997 = vadd.f32 %v581, %v932
    %v998 = vadd.f32 %v586, %v937
    %v999 = vadd.f32 %v589, %v942
    %v1000 = vadd.f32 %v594, %v947
    %v1001 = vadd.f32 %v597, %v952
    %v1002 = vadd.f32 %v602, %v957
    %v1003 = vadd.f32 %v605, %v962
    %v1004 = vadd.f32 %v610, %v967
    %v1005 = vadd.f32 %v613, %v972
    %v1006 = vadd.f32 %v618, %v977
    %v1007 = vadd.f32 %v621, %v982
    %v1008 = vadd.f32 %v626, %v927
    %v1009 = vadd.f32 %v629, %v932
    %v1010 = vadd.f32 %v634, %v937
    %v1011 = vadd.f32 %v637, %v942
    %v1012 = vadd.f32 %v642, %v947
    %v1013 = vadd.f32 %v645, %v952
    %v1014 = vadd.f32 %v650, %v957
    %v1015 = vadd.f32 %v653, %v962
    %v1016 = vadd.f32 %v658, %v967
    %v1017 = vadd.f32 %v661, %v972
    %v1018 = vadd.f32 %v666, %v977
    %v1019 = vadd.f32 %v669, %v982
    %v1020 = vadd.f32 %v674, %v927
    %v1021 = vadd.f32 %v677, %v932
    %v1022 = vadd.f32 %v682, %v937
    %v1023 = vadd.f32 %v685, %v942
    %v1024 = vadd.f32 %v690, %v947
    %v1025 = vadd.f32 %v693, %v952
    %v1026 = vadd.f32 %v698, %v957
    %v1027 = vadd.f32 %v701, %v962
    %v1028 = vadd.f32 %v706, %v967
    %v1029 = vadd.f32 %v709, %v972
    %v1030 = vadd.f32 %v714, %v977
    %v1031 = vadd.f32 %v717, %v982
    %v1032 = vadd.f32 %v722, %v927
    %v1033 = vadd.f32 %v725, %v932
    %v1034 = vadd.f32 %v730, %v937
    %v1035 = vadd.f32 %v733, %v942
    %v1036 = vadd.f32 %v738, %v947
    %v1037 = vadd.f32 %v741, %v952
    %v1038 = vadd.f32 %v746, %v957
    %v1039 = vadd.f32 %v749, %v962
    %v1040 = vadd.f32 %v754, %v967
    %v1041 = vadd.f32 %v757, %v972
    %v1042 = vadd.f32 %v762, %v977
    %v1043 = vadd.f32 %v765, %v982
    %v1044 = vadd.f32 %v770, %v927
    %v1045 = vadd.f32 %v773, %v932
    %v1046 = vadd.f32 %v778, %v937
    %v1047 = vadd.f32 %v781, %v942
    %v1048 = vadd.f32 %v786, %v947
    %v1049 = vadd.f32 %v789, %v952
    %v1050 = vadd.f32 %v794, %v957
    %v1051 = vadd.f32 %v797, %v962
    %v1052 = vadd.f32 %v802, %v967
    %v1053 = vadd.f32 %v805, %v972
    %v1054 = vadd.f32 %v810, %v977
    %v1055 = vadd.f32 %v813, %v982
    %v1056 = vadd.f32 %v818, %v927
    %v1057 = vadd.f32 %v821, %v932
    %v1058 = vadd.f32 %v826, %v937
    %v1059 = vadd.f32 %v829, %v942
    %v1060 = vadd.f32 %v834, %v947
    %v1061 = vadd.f32 %v837, %v952
    %v1062 = vadd.f32 %v842, %v957
    %v1063 = vadd.f32 %v845, %v962
    %v1064 = vadd.f32 %v850, %v967
    %v1065 = vadd.f32 %v853, %v972
    %v1066 = vadd.f32 %v858, %v977
    %v1067 = vadd.f32 %v861, %v982
    %v1068 = vadd.f32 %v866, %v927
    %v1069 = vadd.f32 %v869, %v932
    %v1070 = vadd.f32 %v874, %v937
    %v1071 = vadd.f32 %v877, %v942
    %v1072 = vadd.f32 %v882, %v947
    %v1073 = vadd.f32 %v885, %v952
    %v1074 = vadd.f32 %v890, %v957
    %v1075 = vadd.f32 %v893, %v962
    %v1076 = vadd.f32 %v898, %v967
    %v1077 = vadd.f32 %v901, %v972
    %v1078 = vadd.f32 %v906, %v977
    %v1079 = vadd.f32 %v909, %v982
    %v1080 = vmul.f32 %v984, %v988
    %v1081 = vmul.f32 %v985, %v989
    %v1082 = vmul.f32 %v986, %v990
    %v1083 = vmul.f32 %v987, %v991
    %v1084 = vmul.f32 %v984, %v1000
    %v1085 = vmul.f32 %v985, %v1001
    %v1086 = vmul.f32 %v986, %v1002
    %v1087 = vmul.f32 %v987, %v1003
    %v1088 = vmul.f32 %v984, %v1012
    %v1089 = vmul.f32 %v985, %v1013
    %v1090 = vmul.f32 %v986, %v1014
    %v1091 = vmul.f32 %v987, %v1015
    %v1092 = vmul.f32 %v984, %v1024
    %v1093 = vmul.f32 %v985, %v1025
    %v1094 = vmul.f32 %v986, %v1026
    %v1095 = vmul.f32 %v987, %v1027
    %v1096 = vmul.f32 %v984, %v1036
    %v1097 = vmul.f32 %v985, %v1037
    %v1098 = vmul.f32 %v986, %v1038
    %v1099 = vmul.f32 %v987, %v1039
    %v1100 = vmul.f32 %v984, %v1048
    %v1101 = vmul.f32 %v985, %v1049
    %v1102 = vmul.f32 %v986, %v1050
    %v1103 = vmul.f32 %v987, %v1051
    %v1104 = vmul.f32 %v984, %v1060
    %v1105 = vmul.f32 %v985, %v1061
    %v1106 = vmul.f32 %v986, %v1062
    %v1107 = vmul.f32 %v987, %v1063
    %v1108 = vmul.f32 %v984, %v1072
    %v1109 = vmul.f32 %v985, %v1073
    %v1110 = vmul.f32 %v986, %v1074
    %v1111 = vmul.f32 %v987, %v1075
    %v1112 = vadd.f32 %v1080, %v1081
    %v1113 = vadd.f32 %v1112, %v1082
    %v1114 = vadd.f32 %v1113, %v1083
    %v1115 = vrot.slane %v1114, 4
    %v1116 = vadd.f32 %v1114, %v1115
    %v1117 = vrot.slane %v1116, 2
    %v1118 = vadd.f32 %v1116, %v1117
    %v1119 = vrot.slane %v1118, 1
    %v1120 = vadd.f32 %v1118, %v1119
    %v1121 = vadd.f32 %v1084, %v1085
    %v1122 = vadd.f32 %v1121, %v1086
    %v1123 = vadd.f32 %v1122, %v1087
    %v1124 = vrot.slane %v1123, 4
    %v1125 = vadd.f32 %v1123, %v1124
    %v1126 = vrot.slane %v1125, 2
    %v1127 = vadd.f32 %v1125, %v1126
    %v1128 = vrot.slane %v1127, 1
    %v1129 = vadd.f32 %v1127, %v1128
    %v1130 = vadd.f32 %v1088, %v1089
    %v1131 = vadd.f32 %v1130, %v1090
    %v1132 = vadd.f32 %v1131, %v1091
    %v1133 = vrot.slane %v1132, 4
    %v1134 = vadd.f32 %v1132, %v1133
    %v1135 = vrot.slane %v1134, 2
    %v1136 = vadd.f32 %v1134, %v1135
    %v1137 = vrot.slane %v1136, 1
    %v1138 = vadd.f32 %v1136, %v1137
    %v1139 = vadd.f32 %v1092, %v1093
    %v1140 = vadd.f32 %v1139, %v1094
    %v1141 = vadd.f32 %v1140, %v1095
    %v1142 = vrot.slane %v1141, 4
    %v1143 = vadd.f32 %v1141, %v1142
    %v1144 = vrot.slane %v1143, 2
    %v1145 = vadd.f32 %v1143, %v1144
    %v1146 = vrot.slane %v1145, 1
    %v1147 = vadd.f32 %v1145, %v1146
    %v1148 = vadd.f32 %v1096, %v1097
    %v1149 = vadd.f32 %v1148, %v1098
    %v1150 = vadd.f32 %v1149, %v1099
    %v1151 = vrot.slane %v1150, 4
    %v1152 = vadd.f32 %v1150, %v1151
    %v1153 = vrot.slane %v1152, 2
    %v1154 = vadd.f32 %v1152, %v1153
    %v1155 = vrot.slane %v1154, 1
    %v1156 = vadd.f32 %v1154, %v1155
    %v1157 = vadd.f32 %v1100, %v1101
    %v1158 = vadd.f32 %v1157, %v1102
    %v1159 = vadd.f32 %v1158, %v1103
    %v1160 = vrot.slane %v1159, 4
    %v1161 = vadd.f32 %v1159, %v1160
    %v1162 = vrot.slane %v1161, 2
    %v1163 = vadd.f32 %v1161, %v1162
    %v1164 = vrot.slane %v1163, 1
    %v1165 = vadd.f32 %v1163, %v1164
    %v1166 = vadd.f32 %v1104, %v1105
    %v1167 = vadd.f32 %v1166, %v1106
    %v1168 = vadd.f32 %v1167, %v1107
    %v1169 = vrot.slane %v1168, 4
    %v1170 = vadd.f32 %v1168, %v1169
    %v1171 = vrot.slane %v1170, 2
    %v1172 = vadd.f32 %v1170, %v1171
    %v1173 = vrot.slane %v1172, 1
    %v1174 = vadd.f32 %v1172, %v1173
    %v1175 = vadd.f32 %v1108, %v1109
    %v1176 = vadd.f32 %v1175, %v1110
    %v1177 = vadd.f32 %v1176, %v1111
    %v1178 = vrot.slane %v1177, 4
    %v1179 = vadd.f32 %v1177, %v1178
    %v1180 = vrot.slane %v1179, 2
    %v1181 = vadd.f32 %v1179, %v1180
    %v1182 = vrot.slane %v1181, 1
    %v1183 = vadd.f32 %v1181, %v1182
    %v1184 = vmax.f32 %v1120, %v1156
    %v1185 = vmax.f32 %v1129, %v1165
    %v1186 = vmax.f32 %v1138, %v1174
    %v1187 = vmax.f32 %v1147, %v1183
    %v1188 = vmax.f32 %v1184, %v1185
    %v1189 = vmax.f32 %v1186, %v1187
    %v1190 = vmax.f32 %v1188, %v1189
    %v1191 = vsub.f32 %v1120, %v1190
    %v1192 = vsub.f32 %v1129, %v1190
    %v1193 = vsub.f32 %v1138, %v1190
    %v1194 = vsub.f32 %v1147, %v1190
    %v1195 = vsub.f32 %v1156, %v1190
    %v1196 = vsub.f32 %v1165, %v1190
    %v1197 = vsub.f32 %v1174, %v1190
    %v1198 = vsub.f32 %v1183, %v1190
    %v1199 = vmul.f32 %v1191, 1.442695
    %v1200 = vpow.pop %v1199
    %v1201 = vmul.f32 %v1192, 1.442695
    %v1202 = vpow.pop %v1201
    %v1203 = vmul.f32 %v1193, 1.442695
    %v1204 = vpow.pop %v1203
    %v1205 = vmul.f32 %v1194, 1.442695
    %v1206 = vpow.pop %v1205
    %v1207 = vmul.f32 %v1195, 1.442695
    %v1208 = vpow.pop %v1207
    %v1209 = vmul.f32 %v1196, 1.442695
    %v1210 = vpow.pop %v1209
    %v1211 = vmul.f32 %v1197, 1.442695
    %v1212 = vpow.pop %v1211
    %v1213 = vmul.f32 %v1198, 1.442695
    %v1214 = vpow.pop %v1213
    %v1223 = vrot.slane %v1202, 7
    %vm1224 = vcmask 1041409
    %v1225 = vsel %vm1224, %v1223, %v1200
    %v1226 = vrot.slane %v1204, 6
    %vm1227 = vcmask 1042434
    %v1228 = vsel %vm1227, %v1226, %v1225
    %v1229 = vrot.slane %v1206, 5
    %vm1230 = vcmask 1043459
    %v1231 = vsel %vm1230, %v1229, %v1228
    %v1232 = vrot.slane %v1208, 4
    %vm1233 = vcmask 1044484
    %v1234 = vsel %vm1233, %v1232, %v1231
    %v1235 = vrot.slane %v1210, 3
    %vm1236 = vcmask 1045509
    %v1237 = vsel %vm1236, %v1235, %v1234
    %v1238 = vrot.slane %v1212, 2
    %vm1239 = vcmask 1046534
    %v1240 = vsel %vm1239, %v1238, %v1237
    %v1241 = vrot.slane %v1214, 1
    %vm1242 = vcmask 1047559
    %v1243 = vsel %vm1242, %v1241, %v1240
    %v1245 = vrot.slane %v1243, 4
    %v1246 = vadd.f32 %v1243, %v1245
    %v1247 = vrot.slane %v1246, 2
    %v1248 = vadd.f32 %v1246, %v1247
    %v1249 = vrot.slane %v1248, 1
    %v1250 = vadd.f32 %v1248, %v1249
    %v1251 = vrcp.pop %v1250
    %v1252 = vlaneseq
    %v1253 = vshrl.u32 %v1252, 7
    %v1254 = vsub.s32 0, %v1253
    %v1255 = vrot.slane %v1251, %v1254
    %v1256 = vmul.f32 %v1200, %v1255
    %v1257 = vmul.f32 %v1202, %v1255
    %v1258 = vmul.f32 %v1204, %v1255
    %v1259 = vmul.f32 %v1206, %v1255
    %v1260 = vmul.f32 %v1208, %v1255
    %v1261 = vmul.f32 %v1210, %v1255
    %v1262 = vmul.f32 %v1212, %v1255
    %v1263 = vmul.f32 %v1214, %v1255
    %v1264 = vlaneseq
    %v1265 = vshrl.u32 %v1264, 7
    %v1266 = vsub.s32 0, %v1265
    %v1267 = vrot.slane %v1256, %v1266
    %v1268 = vlaneseq
    %v1269 = vshrl.u32 %v1268, 7
    %v1270 = vsub.s32 0, %v1269
    %v1271 = vrot.slane %v1257, %v1270
    %v1272 = vlaneseq
    %v1273 = vshrl.u32 %v1272, 7
    %v1274 = vsub.s32 0, %v1273
    %v1275 = vrot.slane %v1258, %v1274
    %v1276 = vlaneseq
    %v1277 = vshrl.u32 %v1276, 7
    %v1278 = vsub.s32 0, %v1277
    %v1279 = vrot.slane %v1259, %v1278
    %v1280 = vlaneseq
    %v1281 = vshrl.u32 %v1280, 7
    %v1282 = vsub.s32 0, %v1281
    %v1283 = vrot.slane %v1260, %v1282
    %v1284 = vlaneseq
    %v1285 = vshrl.u32 %v1284, 7
    %v1286 = vsub.s32 0, %v1285
    %v1287 = vrot.slane %v1261, %v1286
    %v1288 = vlaneseq
    %v1289 = vshrl.u32 %v1288, 7
    %v1290 = vsub.s32 0, %v1289
    %v1291 = vrot.slane %v1262, %v1290
    %v1292 = vlaneseq
    %v1293 = vshrl.u32 %v1292, 7
    %v1294 = vsub.s32 0, %v1293
    %v1295 = vrot.slane %v1263, %v1294
    %v1296 = vmul.f32 %v1267, %v992
    %v1297 = vmul.f32 %v1267, %v993
    %v1298 = vmul.f32 %v1267, %v994
    %v1299 = vmul.f32 %v1267, %v995
    %v1300 = vmul.f32 %v1271, %v1004
    %v1301 = vmul.f32 %v1271, %v1005
    %v1302 = vmul.f32 %v1271, %v1006
    %v1303 = vmul.f32 %v1271, %v1007
    %v1304 = vmul.f32 %v1275, %v1016
    %v1305 = vmul.f32 %v1275, %v1017
    %v1306 = vmul.f32 %v1275, %v1018
    %v1307 = vmul.f32 %v1275, %v1019
    %v1308 = vmul.f32 %v1279, %v1028
    %v1309 = vmul.f32 %v1279, %v1029
    %v1310 = vmul.f32 %v1279, %v1030
    %v1311 = vmul.f32 %v1279, %v1031
    %v1312 = vmul.f32 %v1283, %v1040
    %v1313 = vmul.f32 %v1283, %v1041
    %v1314 = vmul.f32 %v1283, %v1042
    %v1315 = vmul.f32 %v1283, %v1043
    %v1316 = vmul.f32 %v1287, %v1052
    %v1317 = vmul.f32 %v1287, %v1053
    %v1318 = vmul.f32 %v1287, %v1054
    %v1319 = vmul.f32 %v1287, %v1055
    %v1320 = vmul.f32 %v1291, %v1064
    %v1321 = vmul.f32 %v1291, %v1065
    %v1322 = vmul.f32 %v1291, %v1066
    %v1323 = vmul.f32 %v1291, %v1067
    %v1324 = vmul.f32 %v1295, %v1076
    %v1325 = vmul.f32 %v1295, %v1077
    %v1326 = vmul.f32 %v1295, %v1078
    %v1327 = vmul.f32 %v1295, %v1079
    %v1328 = vadd.f32 %v1296, %v1300
    %v1329 = vadd.f32 %v1328, %v1304
    %v1330 = vadd.f32 %v1329, %v1308
    %v1331 = vadd.f32 %v1330, %v1312
    %v1332 = vadd.f32 %v1331, %v1316
    %v1333 = vadd.f32 %v1332, %v1320
    %v1334 = vadd.f32 %v1333, %v1324
    %v1335 = vadd.f32 %v1297, %v1301
    %v1336 = vadd.f32 %v1335, %v1305
    %v1337 = vadd.f32 %v1336, %v1309
    %v1338 = vadd.f32 %v1337, %v1313
    %v1339 = vadd.f32 %v1338, %v1317
    %v1340 = vadd.f32 %v1339, %v1321
    %v1341 = vadd.f32 %v1340, %v1325
    %v1342 = vadd.f32 %v1298, %v1302
    %v1343 = vadd.f32 %v1342, %v1306
    %v1344 = vadd.f32 %v1343, %v1310
    %v1345 = vadd.f32 %v1344, %v1314
    %v1346 = vadd.f32 %v1345, %v1318
    %v1347 = vadd.f32 %v1346, %v1322
    %v1348 = vadd.f32 %v1347, %v1326
    %v1349 = vadd.f32 %v1299, %v1303
    %v1350 = vadd.f32 %v1349, %v1307
    %v1351 = vadd.f32 %v1350, %v1311
    %v1352 = vadd.f32 %v1351, %v1315
    %v1353 = vadd.f32 %v1352, %v1319
    %v1354 = vadd.f32 %v1353, %v1323
    %v1355 = vadd.f32 %v1354, %v1327
    %v1356 = vmul.f32 %v996, %v988
    %v1357 = vmul.f32 %v997, %v989
    %v1358 = vmul.f32 %v998, %v990
    %v1359 = vmul.f32 %v999, %v991
    %v1360 = vmul.f32 %v996, %v1000
    %v1361 = vmul.f32 %v997, %v1001
    %v1362 = vmul.f32 %v998, %v1002
    %v1363 = vmul.f32 %v999, %v1003
    %v1364 = vmul.f32 %v996, %v1012
    %v1365 = vmul.f32 %v997, %v1013
    %v1366 = vmul.f32 %v998, %v1014
    %v1367 = vmul.f32 %v999, %v1015
    %v1368 = vmul.f32 %v996, %v1024
    %v1369 = vmul.f32 %v997, %v1025
    %v1370 = vmul.f32 %v998, %v1026
    %v1371 = vmul.f32 %v999, %v1027
    %v1372 = vmul.f32 %v996, %v1036
    %v1373 = vmul.f32 %v997, %v1037
    %v1374 = vmul.f32 %v998, %v1038
    %v1375 = vmul.f32 %v999, %v1039
    %v1376 = vmul.f32 %v996, %v1048
    %v1377 = vmul.f32 %v997, %v1049
    %v1378 = vmul.f32 %v998, %v1050
    %v1379 = vmul.f32 %v999, %v1051
    %v1380 = vmul.f32 %v996, %v1060
    %v1381 = vmul.f32 %v997, %v1061
    %v1382 = vmul.f32 %v998, %v1062
    %v1383 = vmul.f32 %v999, %v1063
    %v1384 = vmul.f32 %v996, %v1072
    %v1385 = vmul.f32 %v997, %v1073
    %v1386 = vmul.f32 %v998, %v1074
    %v1387 = vmul.f32 %v999, %v1075
    %v1388 = vadd.f32 %v1356, %v1357
    %v1389 = vadd.f32 %v1388, %v1358
    %v1390 = vadd.f32 %v1389, %v1359
    %v1391 = vrot.slane %v1390, 4
    %v1392 = vadd.f32 %v1390, %v1391
    %v1393 = vrot.slane %v1392, 2
    %v1394 = vadd.f32 %v1392, %v1393
    %v1395 = vrot.slane %v1394, 1
    %v1396 = vadd.f32 %v1394, %v1395
    %v1397 = vadd.f32 %v1360, %v1361
    %v1398 = vadd.f32 %v1397, %v1362
    %v1399 = vadd.f32 %v1398, %v1363
    %v1400 = vrot.slane %v1399, 4
    %v1401 = vadd.f32 %v1399, %v1400
    %v1402 = vrot.slane %v1401, 2
    %v1403 = vadd.f32 %v1401, %v1402
    %v1404 = vrot.slane %v1403, 1
    %v1405 = vadd.f32 %v1403, %v1404
    %v1406 = vadd.f32 %v1364, %v1365
    %v1407 = vadd.f32 %v1406, %v1366
    %v1408 = vadd.f32 %v1407, %v1367
    %v1409 = vrot.slane %v1408, 4
    %v1410 = vadd.f32 %v1408, %v1409
    %v1411 = vrot.slane %v1410, 2
    %v1412 = vadd.f32 %v1410, %v1411
    %v1413 = vrot.slane %v1412, 1
    %v1414 = vadd.f32 %v1412, %v1413
    %v1415 = vadd.f32 %v1368, %v1369
    %v1416 = vadd.f32 %v1415, %v1370
    %v1417 = vadd.f32 %v1416, %v1371
    %v1418 = vrot.slane %v1417, 4
    %v1419 = vadd.f32 %v1417, %v1418
    %v1420 = vrot.slane %v1419, 2
    %v1421 = vadd.f32 %v1419, %v1420
    %v1422 = vrot.slane %v1421, 1
    %v1423 = vadd.f32 %v1421, %v1422
    %v1424 = vadd.f32 %v1372, %v1373
    %v1425 = vadd.f32 %v1424, %v1374
    %v1426 = vadd.f32 %v1425, %v1375
    %v1427 = vrot.slane %v1426, 4
    %v1428 = vadd.f32 %v1426, %v1427
    %v1429 = vrot.slane %v1428, 2
    %v1430 = vadd.f32 %v1428, %v1429
    %v1431 = vrot.slane %v1430, 1
    %v1432 = vadd.f32 %v1430, %v1431
    %v1433 = vadd.f32 %v1376, %v1377
    %v1434 = vadd.f32 %v1433, %v1378
    %v1435 = vadd.f32 %v1434, %v1379
    %v1436 = vrot.slane %v1435, 4
    %v1437 = vadd.f32 %v1435, %v1436
    %v1438 = vrot.slane %v1437, 2
    %v1439 = vadd.f32 %v1437, %v1438
    %v1440 = vrot.slane %v1439, 1
    %v1441 = vadd.f32 %v1439, %v1440
    %v1442 = vadd.f32 %v1380, %v1381
    %v1443 = vadd.f32 %v1442, %v1382
    %v1444 = vadd.f32 %v1443, %v1383
    %v1445 = vrot.slane %v1444, 4
    %v1446 = vadd.f32 %v1444, %v1445
    %v1447 = vrot.slane %v1446, 2
    %v1448 = vadd.f32 %v1446, %v1447
    %v1449 = vrot.slane %v1448, 1
    %v1450 = vadd.f32 %v1448, %v1449
    %v1451 = vadd.f32 %v1384, %v1385
    %v1452 = vadd.f32 %v1451, %v1386
    %v1453 = vadd.f32 %v1452, %v1387
    %v1454 = vrot.slane %v1453, 4
    %v1455 = vadd.f32 %v1453, %v1454
    %v1456 = vrot.slane %v1455, 2
    %v1457 = vadd.f32 %v1455, %v1456
    %v1458 = vrot.slane %v1457, 1
    %v1459 = vadd.f32 %v1457, %v1458
    %v1460 = vmax.f32 %v1396, %v1432
    %v1461 = vmax.f32 %v1405, %v1441
    %v1462 = vmax.f32 %v1414, %v1450
    %v1463 = vmax.f32 %v1423, %v1459
    %v1464 = vmax.f32 %v1460, %v1461
    %v1465 = vmax.f32 %v1462, %v1463
    %v1466 = vmax.f32 %v1464, %v1465
    %v1467 = vsub.f32 %v1396, %v1466
    %v1468 = vsub.f32 %v1405, %v1466
    %v1469 = vsub.f32 %v1414, %v1466
    %v1470 = vsub.f32 %v1423, %v1466
    %v1471 = vsub.f32 %v1432, %v1466
    %v1472 = vsub.f32 %v1441, %v1466
    %v1473 = vsub.f32 %v1450, %v1466
    %v1474 = vsub.f32 %v1459, %v1466
    %v1475 = vmul.f32 %v1467, 1.442695
    %v1476 = vpow.pop %v1475
    %v1477 = vmul.f32 %v1468, 1.442695
    %v1478 = vpow.pop %v1477
    %v1479 = vmul.f32 %v1469, 1.442695
    %v1480 = vpow.pop %v1479
    %v1481 = vmul.f32 %v1470, 1.442695
    %v1482 = vpow.pop %v1481
    %v1483 = vmul.f32 %v1471, 1.442695
    %v1484 = vpow.pop %v1483
    %v1485 = vmul.f32 %v1472, 1.442695
    %v1486 = vpow.pop %v1485
    %v1487 = vmul.f32 %v1473, 1.442695
    %v1488 = vpow.pop %v1487
    %v1489 = vmul.f32 %v1474, 1.442695
    %v1490 = vpow.pop %v1489
    %v1499 = vrot.slane %v1478, 7
    %v1500 = vsel %vm1224, %v1499, %v1476
    %v1501 = vrot.slane %v1480, 6
    %v1502 = vsel %vm1227, %v1501, %v1500
    %v1503 = vrot.slane %v1482, 5
    %v1504 = vsel %vm1230, %v1503, %v1502
    %v1505 = vrot.slane %v1484, 4
    %v1506 = vsel %vm1233, %v1505, %v1504
    %v1507 = vrot.slane %v1486, 3
    %v1508 = vsel %vm1236, %v1507, %v1506
    %v1509 = vrot.slane %v1488, 2
    %v1510 = vsel %vm1239, %v1509, %v1508
    %v1511 = vrot.slane %v1490, 1
    %v1512 = vsel %vm1242, %v1511, %v1510
    %v1514 = vrot.slane %v1512, 4
    %v1515 = vadd.f32 %v1512, %v1514
    %v1516 = vrot.slane %v1515, 2
    %v1517 = vadd.f32 %v1515, %v1516
    %v1518 = vrot.slane %v1517, 1
    %v1519 = vadd.f32 %v1517, %v1518
    %v1520 = vrcp.pop %v1519
    %v1521 = vlaneseq
    %v1522 = vshrl.u32 %v1521, 7
    %v1523 = vsub.s32 0, %v1522
    %v1524 = vrot.slane %v1520, %v1523
    %v1525 = vmul.f32 %v1476, %v1524
    %v1526 = vmul.f32 %v1478, %v1524
    %v1527 = vmul.f32 %v1480, %v1524
    %v1528 = vmul.f32 %v1482, %v1524
    %v1529 = vmul.f32 %v1484, %v1524
    %v1530 = vmul.f32 %v1486, %v1524
    %v1531 = vmul.f32 %v1488, %v1524
    %v1532 = vmul.f32 %v1490, %v1524
    %v1533 = vlaneseq
    %v1534 = vshrl.u32 %v1533, 7
    %v1535 = vsub.s32 0, %v1534
    %v1536 = vrot.slane %v1525, %v1535
    %v1537 = vlaneseq
    %v1538 = vshrl.u32 %v1537, 7
    %v1539 = vsub.s32 0, %v1538
    %v1540 = vrot.slane %v1526, %v1539
    %v1541 = vlaneseq
    %v1542 = vshrl.u32 %v1541, 7
    %v1543 = vsub.s32 0, %v1542
    %v1544 = vrot.slane %v1527, %v1543
    %v1545 = vlaneseq
    %v1546 = vshrl.u32 %v1545, 7
    %v1547 = vsub.s32 0, %v1546
    %v1548 = vrot.slane %v1528, %v1547
    %v1549 = vlaneseq
    %v1550 = vshrl.u32 %v1549, 7
    %v1551 = vsub.s32 0, %v1550
    %v1552 = vrot.slane %v1529, %v1551
    %v1553 = vlaneseq
    %v1554 = vshrl.u32 %v1553, 7
    %v1555 = vsub.s32 0, %v1554
    %v1556 = vrot.slane %v1530, %v1555
    %v1557 = vlaneseq
    %v1558 = vshrl.u32 %v1557, 7
    %v1559 = vsub.s32 0, %v1558
    %v1560 = vrot.slane %v1531, %v1559
    %v1561 = vlaneseq
    %v1562 = vshrl.u32 %v1561, 7
    %v1563 = vsub.s32 0, %v1562
    %v1564 = vrot.slane %v1532, %v1563
    %v1565 = vmul.f32 %v1536, %v992
    %v1566 = vmul.f32 %v1536, %v993
    %v1567 = vmul.f32 %v1536, %v994
    %v1568 = vmul.f32 %v1536, %v995
    %v1569 = vmul.f32 %v1540, %v1004
    %v1570 = vmul.f32 %v1540, %v1005
    %v1571 = vmul.f32 %v1540, %v1006
    %v1572 = vmul.f32 %v1540, %v1007
    %v1573 = vmul.f32 %v1544, %v1016
    %v1574 = vmul.f32 %v1544, %v1017
    %v1575 = vmul.f32 %v1544, %v1018
    %v1576 = vmul.f32 %v1544, %v1019
    %v1577 = vmul.f32 %v1548, %v1028
    %v1578 = vmul.f32 %v1548, %v1029
    %v1579 = vmul.f32 %v1548, %v1030
    %v1580 = vmul.f32 %v1548, %v1031
    %v1581 = vmul.f32 %v1552, %v1040
    %v1582 = vmul.f32 %v1552, %v1041
    %v1583 = vmul.f32 %v1552, %v1042
    %v1584 = vmul.f32 %v1552, %v1043
    %v1585 = vmul.f32 %v1556, %v1052
    %v1586 = vmul.f32 %v1556, %v1053
    %v1587 = vmul.f32 %v1556, %v1054
    %v1588 = vmul.f32 %v1556, %v1055
    %v1589 = vmul.f32 %v1560, %v1064
    %v1590 = vmul.f32 %v1560, %v1065
    %v1591 = vmul.f32 %v1560, %v1066
    %v1592 = vmul.f32 %v1560, %v1067
    %v1593 = vmul.f32 %v1564, %v1076
    %v1594 = vmul.f32 %v1564, %v1077
    %v1595 = vmul.f32 %v1564, %v1078
    %v1596 = vmul.f32 %v1564, %v1079
    %v1597 = vadd.f32 %v1565, %v1569
    %v1598 = vadd.f32 %v1597, %v1573
    %v1599 = vadd.f32 %v1598, %v1577
    %v1600 = vadd.f32 %v1599, %v1581
    %v1601 = vadd.f32 %v1600, %v1585
    %v1602 = vadd.f32 %v1601, %v1589
    %v1603 = vadd.f32 %v1602, %v1593
    %v1604 = vadd.f32 %v1566, %v1570
    %v1605 = vadd.f32 %v1604, %v1574
    %v1606 = vadd.f32 %v1605, %v1578
    %v1607 = vadd.f32 %v1606, %v1582
    %v1608 = vadd.f32 %v1607, %v1586
    %v1609 = vadd.f32 %v1608, %v1590
    %v1610 = vadd.f32 %v1609, %v1594
    %v1611 = vadd.f32 %v1567, %v1571
    %v1612 = vadd.f32 %v1611, %v1575
    %v1613 = vadd.f32 %v1612, %v1579
    %v1614 = vadd.f32 %v1613, %v1583
    %v1615 = vadd.f32 %v1614, %v1587
    %v1616 = vadd.f32 %v1615, %v1591
    %v1617 = vadd.f32 %v1616, %v1595
    %v1618 = vadd.f32 %v1568, %v1572
    %v1619 = vadd.f32 %v1618, %v1576
    %v1620 = vadd.f32 %v1619, %v1580
    %v1621 = vadd.f32 %v1620, %v1584
    %v1622 = vadd.f32 %v1621, %v1588
    %v1623 = vadd.f32 %v1622, %v1592
    %v1624 = vadd.f32 %v1623, %v1596
    %v1625 = vmul.f32 %v1008, %v988
    %v1626 = vmul.f32 %v1009, %v989
    %v1627 = vmul.f32 %v1010, %v990
    %v1628 = vmul.f32 %v1011, %v991
    %v1629 = vmul.f32 %v1008, %v1000
    %v1630 = vmul.f32 %v1009, %v1001
    %v1631 = vmul.f32 %v1010, %v1002
    %v1632 = vmul.f32 %v1011, %v1003
    %v1633 = vmul.f32 %v1008, %v1012
    %v1634 = vmul.f32 %v1009, %v1013
    %v1635 = vmul.f32 %v1010, %v1014
    %v1636 = vmul.f32 %v1011, %v1015
    %v1637 = vmul.f32 %v1008, %v1024
    %v1638 = vmul.f32 %v1009, %v1025
    %v1639 = vmul.f32 %v1010, %v1026
    %v1640 = vmul.f32 %v1011, %v1027
    %v1641 = vmul.f32 %v1008, %v1036
    %v1642 = vmul.f32 %v1009, %v1037
    %v1643 = vmul.f32 %v1010, %v1038
    %v1644 = vmul.f32 %v1011, %v1039
    %v1645 = vmul.f32 %v1008, %v1048
    %v1646 = vmul.f32 %v1009, %v1049
    %v1647 = vmul.f32 %v1010, %v1050
    %v1648 = vmul.f32 %v1011, %v1051
    %v1649 = vmul.f32 %v1008, %v1060
    %v1650 = vmul.f32 %v1009, %v1061
    %v1651 = vmul.f32 %v1010, %v1062
    %v1652 = vmul.f32 %v1011, %v1063
    %v1653 = vmul.f32 %v1008, %v1072
    %v1654 = vmul.f32 %v1009, %v1073
    %v1655 = vmul.f32 %v1010, %v1074
    %v1656 = vmul.f32 %v1011, %v1075
    %v1657 = vadd.f32 %v1625, %v1626
    %v1658 = vadd.f32 %v1657, %v1627
    %v1659 = vadd.f32 %v1658, %v1628
    %v1660 = vrot.slane %v1659, 4
    %v1661 = vadd.f32 %v1659, %v1660
    %v1662 = vrot.slane %v1661, 2
    %v1663 = vadd.f32 %v1661, %v1662
    %v1664 = vrot.slane %v1663, 1
    %v1665 = vadd.f32 %v1663, %v1664
    %v1666 = vadd.f32 %v1629, %v1630
    %v1667 = vadd.f32 %v1666, %v1631
    %v1668 = vadd.f32 %v1667, %v1632
    %v1669 = vrot.slane %v1668, 4
    %v1670 = vadd.f32 %v1668, %v1669
    %v1671 = vrot.slane %v1670, 2
    %v1672 = vadd.f32 %v1670, %v1671
    %v1673 = vrot.slane %v1672, 1
    %v1674 = vadd.f32 %v1672, %v1673
    %v1675 = vadd.f32 %v1633, %v1634
    %v1676 = vadd.f32 %v1675, %v1635
    %v1677 = vadd.f32 %v1676, %v1636
    %v1678 = vrot.slane %v1677, 4
    %v1679 = vadd.f32 %v1677, %v1678
    %v1680 = vrot.slane %v1679, 2
    %v1681 = vadd.f32 %v1679, %v1680
    %v1682 = vrot.slane %v1681, 1
    %v1683 = vadd.f32 %v1681, %v1682
    %v1684 = vadd.f32 %v1637, %v1638
    %v1685 = vadd.f32 %v1684, %v1639
    %v1686 = vadd.f32 %v1685, %v1640
    %v1687 = vrot.slane %v1686, 4
    %v1688 = vadd.f32 %v1686, %v1687
    %v1689 = vrot.slane %v1688, 2
    %v1690 = vadd.f32 %v1688, %v1689
    %v1691 = vrot.slane %v1690, 1
    %v1692 = vadd.f32 %v1690, %v1691
    %v1693 = vadd.f32 %v1641, %v1642
    %v1694 = vadd.f32 %v1693, %v1643
    %v1695 = vadd.f32 %v1694, %v1644
    %v1696 = vrot.slane %v1695, 4
    %v1697 = vadd.f32 %v1695, %v1696
    %v1698 = vrot.slane %v1697, 2
    %v1699 = vadd.f32 %v1697, %v1698
    %v1700 = vrot.slane %v1699, 1
    %v1701 = vadd.f32 %v1699, %v1700
    %v1702 = vadd.f32 %v1645, %v1646
    %v1703 = vadd.f32 %v1702, %v1647
    %v1704 = vadd.f32 %v1703, %v1648
    %v1705 = vrot.slane %v1704, 4
    %v1706 = vadd.f32 %v1704, %v1705
    %v1707 = vrot.slane %v1706, 2
    %v1708 = vadd.f32 %v1706, %v1707
    %v1709 = vrot.slane %v1708, 1
    %v1710 = vadd.f32 %v1708, %v1709
    %v1711 = vadd.f32 %v1649, %v1650
    %v1712 = vadd.f32 %v1711, %v1651
    %v1713 = vadd.f32 %v1712, %v1652
    %v1714 = vrot.slane %v1713, 4
    %v1715 = vadd.f32 %v1713, %v1714
    %v1716 = vrot.slane %v1715, 2
    %v1717 = vadd.f32 %v1715, %v1716
    %v1718 = vrot.slane %v1717, 1
    %v1719 = vadd.f32 %v1717, %v1718
    %v1720 = vadd.f32 %v1653, %v1654
    %v1721 = vadd.f32 %v1720, %v1655
    %v1722 = vadd.f32 %v1721, %v1656
    %v1723 = vrot.slane %v1722, 4
    %v1724 = vadd.f32 %v1722, %v1723
    %v1725 = vrot.slane %v1724, 2
    %v1726 = vadd.f32 %v1724, %v1725
    %v1727 = vrot.slane %v1726, 1
    %v1728 = vadd.f32 %v1726, %v1727
    %v1729 = vmax.f32 %v1665, %v1701
    %v1730 = vmax.f32 %v1674, %v1710
    %v1731 = vmax.f32 %v1683, %v1719
    %v1732 = vmax.f32 %v1692, %v1728
    %v1733 = vmax.f32 %v1729, %v1730
    %v1734 = vmax.f32 %v1731, %v1732
    %v1735 = vmax.f32 %v1733, %v1734
    %v1736 = vsub.f32 %v1665, %v1735
    %v1737 = vsub.f32 %v1674, %v1735
    %v1738 = vsub.f32 %v1683, %v1735
    %v1739 = vsub.f32 %v1692, %v1735
    %v1740 = vsub.f32 %v1701, %v1735
    %v1741 = vsub.f32 %v1710, %v1735
    %v1742 = vsub.f32 %v1719, %v1735
    %v1743 = vsub.f32 %v1728, %v1735
    %v1744 = vmul.f32 %v1736, 1.442695
    %v1745 = vpow.pop %v1744
    %v1746 = vmul.f32 %v1737, 1.442695
    %v1747 = vpow.pop %v1746
    %v1748 = vmul.f32 %v1738, 1.442695
    %v1749 = vpow.pop %v1748
    %v1750 = vmul.f32 %v1739, 1.442695
    %v1751 = vpow.pop %v1750
    %v1752 = vmul.f32 %v1740, 1.442695
    %v1753 = vpow.pop %v1752
    %v1754 = vmul.f32 %v1741, 1.442695
    %v1755 = vpow.pop %v1754
    %v1756 = vmul.f32 %v1742, 1.442695
    %v1757 = vpow.pop %v1756
    %v1758 = vmul.f32 %v1743, 1.442695
    %v1759 = vpow.pop %v1758
    %v1768 = vrot.slane %v1747, 7
    %v1769 = vsel %vm1224, %v1768, %v1745
    %v1770 = vrot.slane %v1749, 6
    %v1771 = vsel %vm1227, %v1770, %v1769
    %v1772 = vrot.slane %v1751, 5
    %v1773 = vsel %vm1230, %v1772, %v1771
    %v1774 = vrot.slane %v1753, 4
    %v1775 = vsel %vm1233, %v1774, %v1773
    %v1776 = vrot.slane %v1755, 3
    %v1777 = vsel %vm1236, %v1776, %v1775
    %v1778 = vrot.slane %v1757, 2
    %v1779 = vsel %vm1239, %v1778, %v1777
    %v1780 = vrot.slane %v1759, 1
    %v1781 = vsel %vm1242, %v1780, %v1779
    %v1783 = vrot.slane %v1781, 4
    %v1784 = vadd.f32 %v1781, %v1783
    %v1785 = vrot.slane %v1784, 2
    %v1786 = vadd.f32 %v1784, %v1785
    %v1787 = vrot.slane %v1786, 1
    %v1788 = vadd.f32 %v1786, %v1787
    %v1789 = vrcp.pop %v1788
    %v1790 = vlaneseq
    %v1791 = vshrl.u32 %v1790, 7
    %v1792 = vsub.s32 0, %v1791
    %v1793 = vrot.slane %v1789, %v1792
    %v1794 = vmul.f32 %v1745, %v1793
    %v1795 = vmul.f32 %v1747, %v1793
    %v1796 = vmul.f32 %v1749, %v1793
    %v1797 = vmul.f32 %v1751, %v1793
    %v1798 = vmul.f32 %v1753, %v1793
    %v1799 = vmul.f32 %v1755, %v1793
    %v1800 = vmul.f32 %v1757, %v1793
    %v1801 = vmul.f32 %v1759, %v1793
    %v1802 = vlaneseq
    %v1803 = vshrl.u32 %v1802, 7
    %v1804 = vsub.s32 0, %v1803
    %v1805 = vrot.slane %v1794, %v1804
    %v1806 = vlaneseq
    %v1807 = vshrl.u32 %v1806, 7
    %v1808 = vsub.s32 0, %v1807
    %v1809 = vrot.slane %v1795, %v1808
    %v1810 = vlaneseq
    %v1811 = vshrl.u32 %v1810, 7
    %v1812 = vsub.s32 0, %v1811
    %v1813 = vrot.slane %v1796, %v1812
    %v1814 = vlaneseq
    %v1815 = vshrl.u32 %v1814, 7
    %v1816 = vsub.s32 0, %v1815
    %v1817 = vrot.slane %v1797, %v1816
    %v1818 = vlaneseq
    %v1819 = vshrl.u32 %v1818, 7
    %v1820 = vsub.s32 0, %v1819
    %v1821 = vrot.slane %v1798, %v1820
    %v1822 = vlaneseq
    %v1823 = vshrl.u32 %v1822, 7
    %v1824 = vsub.s32 0, %v1823
    %v1825 = vrot.slane %v1799, %v1824
    %v1826 = vlaneseq
    %v1827 = vshrl.u32 %v1826, 7
    %v1828 = vsub.s32 0, %v1827
    %v1829 = vrot.slane %v1800, %v1828
    %v1830 = vlaneseq
    %v1831 = vshrl.u32 %v1830, 7
    %v1832 = vsub.s32 0, %v1831
    %v1833 = vrot.slane %v1801, %v1832
    %v1834 = vmul.f32 %v1805, %v992
    %v1835 = vmul.f32 %v1805, %v993
    %v1836 = vmul.f32 %v1805, %v994
    %v1837 = vmul.f32 %v1805, %v995
    %v1838 = vmul.f32 %v1809, %v1004
    %v1839 = vmul.f32 %v1809, %v1005
    %v1840 = vmul.f32 %v1809, %v1006
    %v1841 = vmul.f32 %v1809, %v1007
    %v1842 = vmul.f32 %v1813, %v1016
    %v1843 = vmul.f32 %v1813, %v1017
    %v1844 = vmul.f32 %v1813, %v1018
    %v1845 = vmul.f32 %v1813, %v1019
    %v1846 = vmul.f32 %v1817, %v1028
    %v1847 = vmul.f32 %v1817, %v1029
    %v1848 = vmul.f32 %v1817, %v1030
    %v1849 = vmul.f32 %v1817, %v1031
    %v1850 = vmul.f32 %v1821, %v1040
    %v1851 = vmul.f32 %v1821, %v1041
    %v1852 = vmul.f32 %v1821, %v1042
    %v1853 = vmul.f32 %v1821, %v1043
    %v1854 = vmul.f32 %v1825, %v1052
    %v1855 = vmul.f32 %v1825, %v1053
    %v1856 = vmul.f32 %v1825, %v1054
    %v1857 = vmul.f32 %v1825, %v1055
    %v1858 = vmul.f32 %v1829, %v1064
    %v1859 = vmul.f32 %v1829, %v1065
    %v1860 = vmul.f32 %v1829, %v1066
    %v1861 = vmul.f32 %v1829, %v1067
    %v1862 = vmul.f32 %v1833, %v1076
    %v1863 = vmul.f32 %v1833, %v1077
    %v1864 = vmul.f32 %v1833, %v1078
    %v1865 = vmul.f32 %v1833, %v1079
    %v1866 = vadd.f32 %v1834, %v1838
    %v1867 = vadd.f32 %v1866, %v1842
    %v1868 = vadd.f32 %v1867, %v1846
    %v1869 = vadd.f32 %v1868, %v1850
    %v1870 = vadd.f32 %v1869, %v1854
    %v1871 = vadd.f32 %v1870, %v1858
    %v1872 = vadd.f32 %v1871, %v1862
    %v1873 = vadd.f32 %v1835, %v1839
    %v1874 = vadd.f32 %v1873, %v1843
    %v1875 = vadd.f32 %v1874, %v1847
    %v1876 = vadd.f32 %v1875, %v1851
    %v1877 = vadd.f32 %v1876, %v1855
    %v1878 = vadd.f32 %v1877, %v1859
    %v1879 = vadd.f32 %v1878, %v1863
    %v1880 = vadd.f32 %v1836, %v1840
    %v1881 = vadd.f32 %v1880, %v1844
    %v1882 = vadd.f32 %v1881, %v1848
    %v1883 = vadd.f32 %v1882, %v1852
    %v1884 = vadd.f32 %v1883, %v1856
    %v1885 = vadd.f32 %v1884, %v1860
    %v1886 = vadd.f32 %v1885, %v1864
    %v1887 = vadd.f32 %v1837, %v1841
    %v1888 = vadd.f32 %v1887, %v1845
    %v1889 = vadd.f32 %v1888, %v1849
    %v1890 = vadd.f32 %v1889, %v1853
    %v1891 = vadd.f32 %v1890, %v1857
    %v1892 = vadd.f32 %v1891, %v1861
    %v1893 = vadd.f32 %v1892, %v1865
    %v1894 = vmul.f32 %v1020, %v988
    %v1895 = vmul.f32 %v1021, %v989
    %v1896 = vmul.f32 %v1022, %v990
    %v1897 = vmul.f32 %v1023, %v991
    %v1898 = vmul.f32 %v1020, %v1000
    %v1899 = vmul.f32 %v1021, %v1001
    %v1900 = vmul.f32 %v1022, %v1002
    %v1901 = vmul.f32 %v1023, %v1003
    %v1902 = vmul.f32 %v1020, %v1012
    %v1903 = vmul.f32 %v1021, %v1013
    %v1904 = vmul.f32 %v1022, %v1014
    %v1905 = vmul.f32 %v1023, %v1015
    %v1906 = vmul.f32 %v1020, %v1024
    %v1907 = vmul.f32 %v1021, %v1025
    %v1908 = vmul.f32 %v1022, %v1026
    %v1909 = vmul.f32 %v1023, %v1027
    %v1910 = vmul.f32 %v1020, %v1036
    %v1911 = vmul.f32 %v1021, %v1037
    %v1912 = vmul.f32 %v1022, %v1038
    %v1913 = vmul.f32 %v1023, %v1039
    %v1914 = vmul.f32 %v1020, %v1048
    %v1915 = vmul.f32 %v1021, %v1049
    %v1916 = vmul.f32 %v1022, %v1050
    %v1917 = vmul.f32 %v1023, %v1051
    %v1918 = vmul.f32 %v1020, %v1060
    %v1919 = vmul.f32 %v1021, %v1061
    %v1920 = vmul.f32 %v1022, %v1062
    %v1921 = vmul.f32 %v1023, %v1063
    %v1922 = vmul.f32 %v1020, %v1072
    %v1923 = vmul.f32 %v1021, %v1073
    %v1924 = vmul.f32 %v1022, %v1074
    %v1925 = vmul.f32 %v1023, %v1075
    %v1926 = vadd.f32 %v1894, %v1895
    %v1927 = vadd.f32 %v1926, %v1896
    %v1928 = vadd.f32 %v1927, %v1897
    %v1929 = vrot.slane %v1928, 4
    %v1930 = vadd.f32 %v1928, %v1929
    %v1931 = vrot.slane %v1930, 2
    %v1932 = vadd.f32 %v1930, %v1931
    %v1933 = vrot.slane %v1932, 1
    %v1934 = vadd.f32 %v1932, %v1933
    %v1935 = vadd.f32 %v1898, %v1899
    %v1936 = vadd.f32 %v1935, %v1900
    %v1937 = vadd.f32 %v1936, %v1901
    %v1938 = vrot.slane %v1937, 4
    %v1939 = vadd.f32 %v1937, %v1938
    %v1940 = vrot.slane %v1939, 2
    %v1941 = vadd.f32 %v1939, %v1940
    %v1942 = vrot.slane %v1941, 1
    %v1943 = vadd.f32 %v1941, %v1942
    %v1944 = vadd.f32 %v1902, %v1903
    %v1945 = vadd.f32 %v1944, %v1904
    %v1946 = vadd.f32 %v1945, %v1905
    %v1947 = vrot.slane %v1946, 4
    %v1948 = vadd.f32 %v1946, %v1947
    %v1949 = vrot.slane %v1948, 2
    %v1950 = vadd.f32 %v1948, %v1949
    %v1951 = vrot.slane %v1950, 1
    %v1952 = vadd.f32 %v1950, %v1951
    %v1953 = vadd.f32 %v1906, %v1907
    %v1954 = vadd.f32 %v1953, %v1908
    %v1955 = vadd.f32 %v1954, %v1909
    %v1956 = vrot.slane %v1955, 4
    %v1957 = vadd.f32 %v1955, %v1956
    %v1958 = vrot.slane %v1957, 2
    %v1959 = vadd.f32 %v1957, %v1958
    %v1960 = vrot.slane %v1959, 1
    %v1961 = vadd.f32 %v1959, %v1960
    %v1962 = vadd.f32 %v1910, %v1911
    %v1963 = vadd.f32 %v1962, %v1912
    %v1964 = vadd.f32 %v1963, %v1913
    %v1965 = vrot.slane %v1964, 4
    %v1966 = vadd.f32 %v1964, %v1965
    %v1967 = vrot.slane %v1966, 2
    %v1968 = vadd.f32 %v1966, %v1967
    %v1969 = vrot.slane %v1968, 1
    %v1970 = vadd.f32 %v1968, %v1969
    %v1971 = vadd.f32 %v1914, %v1915
    %v1972 = vadd.f32 %v1971, %v1916
    %v1973 = vadd.f32 %v1972, %v1917
    %v1974 = vrot.slane %v1973, 4
    %v1975 = vadd.f32 %v1973, %v1974
    %v1976 = vrot.slane %v1975, 2
    %v1977 = vadd.f32 %v1975, %v1976
    %v1978 = vrot.slane %v1977, 1
    %v1979 = vadd.f32 %v1977, %v1978
    %v1980 = vadd.f32 %v1918, %v1919
    %v1981 = vadd.f32 %v1980, %v1920
    %v1982 = vadd.f32 %v1981, %v1921
    %v1983 = vrot.slane %v1982, 4
    %v1984 = vadd.f32 %v1982, %v1983
    %v1985 = vrot.slane %v1984, 2
    %v1986 = vadd.f32 %v1984, %v1985
    %v1987 = vrot.slane %v1986, 1
    %v1988 = vadd.f32 %v1986, %v1987
    %v1989 = vadd.f32 %v1922, %v1923
    %v1990 = vadd.f32 %v1989, %v1924
    %v1991 = vadd.f32 %v1990, %v1925
    %v1992 = vrot.slane %v1991, 4
    %v1993 = vadd.f32 %v1991, %v1992
    %v1994 = vrot.slane %v1993, 2
    %v1995 = vadd.f32 %v1993, %v1994
    %v1996 = vrot.slane %v1995, 1
    %v1997 = vadd.f32 %v1995, %v1996
    %v1998 = vmax.f32 %v1934, %v1970
    %v1999 = vmax.f32 %v1943, %v1979
    %v2000 = vmax.f32 %v1952, %v1988
    %v2001 = vmax.f32 %v1961, %v1997
    %v2002 = vmax.f32 %v1998, %v1999
    %v2003 = vmax.f32 %v2000, %v2001
    %v2004 = vmax.f32 %v2002, %v2003
    %v2005 = vsub.f32 %v1934, %v2004
    %v2006 = vsub.f32 %v1943, %v2004
    %v2007 = vsub.f32 %v1952, %v2004
    %v2008 = vsub.f32 %v1961, %v2004
    %v2009 = vsub.f32 %v1970, %v2004
    %v2010 = vsub.f32 %v1979, %v2004
    %v2011 = vsub.f32 %v1988, %v2004
    %v2012 = vsub.f32 %v1997, %v2004
    %v2013 = vmul.f32 %v2005, 1.442695
    %v2014 = vpow.pop %v2013
    %v2015 = vmul.f32 %v2006, 1.442695
    %v2016 = vpow.pop %v2015
    %v2017 = vmul.f32 %v2007, 1.442695
    %v2018 = vpow.pop %v2017
    %v2019 = vmul.f32 %v2008, 1.442695
    %v2020 = vpow.pop %v2019
    %v2021 = vmul.f32 %v2009, 1.442695
    %v2022 = vpow.pop %v2021
    %v2023 = vmul.f32 %v2010, 1.442695
    %v2024 = vpow.pop %v2023
    %v2025 = vmul.f32 %v2011, 1.442695
    %v2026 = vpow.pop %v2025
    %v2027 = vmul.f32 %v2012, 1.442695
    %v2028 = vpow.pop %v2027
    %v2037 = vrot.slane %v2016, 7
    %v2038 = vsel %vm1224, %v2037, %v2014
    %v2039 = vrot.slane %v2018, 6
    %v2040 = vsel %vm1227, %v2039, %v2038
    %v2041 = vrot.slane %v2020, 5
    %v2042 = vsel %vm1230, %v2041, %v2040
    %v2043 = vrot.slane %v2022, 4
    %v2044 = vsel %vm1233, %v2043, %v2042
    %v2045 = vrot.slane %v2024, 3
    %v2046 = vsel %vm1236, %v2045, %v2044
    %v2047 = vrot.slane %v2026, 2
    %v2048 = vsel %vm1239, %v2047, %v2046
    %v2049 = vrot.slane %v2028, 1
    %v2050 = vsel %vm1242, %v2049, %v2048
    %v2052 = vrot.slane %v2050, 4
    %v2053 = vadd.f32 %v2050, %v2052
    %v2054 = vrot.slane %v2053, 2
    %v2055 = vadd.f32 %v2053, %v2054
    %v2056 = vrot.slane %v2055, 1
    %v2057 = vadd.f32 %v2055, %v2056
    %v2058 = vrcp.pop %v2057
    %v2059 = vlaneseq
    %v2060 = vshrl.u32 %v2059, 7
    %v2061 = vsub.s32 0, %v2060
    %v2062 = vrot.slane %v2058, %v2061
    %v2063 = vmul.f32 %v2014, %v2062
    %v2064 = vmul.f32 %v2016, %v2062
    %v2065 = vmul.f32 %v2018, %v2062
    %v2066 = vmul.f32 %v2020, %v2062
    %v2067 = vmul.f32 %v2022, %v2062
    %v2068 = vmul.f32 %v2024, %v2062
    %v2069 = vmul.f32 %v2026, %v2062
    %v2070 = vmul.f32 %v2028, %v2062
    %v2071 = vlaneseq
    %v2072 = vshrl.u32 %v2071, 7
    %v2073 = vsub.s32 0, %v2072
    %v2074 = vrot.slane %v2063, %v2073
    %v2075 = vlaneseq
    %v2076 = vshrl.u32 %v2075, 7
    %v2077 = vsub.s32 0, %v2076
    %v2078 = vrot.slane %v2064, %v2077
    %v2079 = vlaneseq
    %v2080 = vshrl.u32 %v2079, 7
    %v2081 = vsub.s32 0, %v2080
    %v2082 = vrot.slane %v2065, %v2081
    %v2083 = vlaneseq
    %v2084 = vshrl.u32 %v2083, 7
    %v2085 = vsub.s32 0, %v2084
    %v2086 = vrot.slane %v2066, %v2085
    %v2087 = vlaneseq
    %v2088 = vshrl.u32 %v2087, 7
    %v2089 = vsub.s32 0, %v2088
    %v2090 = vrot.slane %v2067, %v2089
    %v2091 = vlaneseq
    %v2092 = vshrl.u32 %v2091, 7
    %v2093 = vsub.s32 0, %v2092
    %v2094 = vrot.slane %v2068, %v2093
    %v2095 = vlaneseq
    %v2096 = vshrl.u32 %v2095, 7
    %v2097 = vsub.s32 0, %v2096
    %v2098 = vrot.slane %v2069, %v2097
    %v2099 = vlaneseq
    %v2100 = vshrl.u32 %v2099, 7
    %v2101 = vsub.s32 0, %v2100
    %v2102 = vrot.slane %v2070, %v2101
    %v2103 = vmul.f32 %v2074, %v992
    %v2104 = vmul.f32 %v2074, %v993
    %v2105 = vmul.f32 %v2074, %v994
    %v2106 = vmul.f32 %v2074, %v995
    %v2107 = vmul.f32 %v2078, %v1004
    %v2108 = vmul.f32 %v2078, %v1005
    %v2109 = vmul.f32 %v2078, %v1006
    %v2110 = vmul.f32 %v2078, %v1007
    %v2111 = vmul.f32 %v2082, %v1016
    %v2112 = vmul.f32 %v2082, %v1017
    %v2113 = vmul.f32 %v2082, %v1018
    %v2114 = vmul.f32 %v2082, %v1019
    %v2115 = vmul.f32 %v2086, %v1028
    %v2116 = vmul.f32 %v2086, %v1029
    %v2117 = vmul.f32 %v2086, %v1030
    %v2118 = vmul.f32 %v2086, %v1031
    %v2119 = vmul.f32 %v2090, %v1040
    %v2120 = vmul.f32 %v2090, %v1041
    %v2121 = vmul.f32 %v2090, %v1042
    %v2122 = vmul.f32 %v2090, %v1043
    %v2123 = vmul.f32 %v2094, %v1052
    %v2124 = vmul.f32 %v2094, %v1053
    %v2125 = vmul.f32 %v2094, %v1054
    %v2126 = vmul.f32 %v2094, %v1055
    %v2127 = vmul.f32 %v2098, %v1064
    %v2128 = vmul.f32 %v2098, %v1065
    %v2129 = vmul.f32 %v2098, %v1066
    %v2130 = vmul.f32 %v2098, %v1067
    %v2131 = vmul.f32 %v2102, %v1076
    %v2132 = vmul.f32 %v2102, %v1077
    %v2133 = vmul.f32 %v2102, %v1078
    %v2134 = vmul.f32 %v2102, %v1079
    %v2135 = vadd.f32 %v2103, %v2107
    %v2136 = vadd.f32 %v2135, %v2111
    %v2137 = vadd.f32 %v2136, %v2115
    %v2138 = vadd.f32 %v2137, %v2119
    %v2139 = vadd.f32 %v2138, %v2123
    %v2140 = vadd.f32 %v2139, %v2127
    %v2141 = vadd.f32 %v2140, %v2131
    %v2142 = vadd.f32 %v2104, %v2108
    %v2143 = vadd.f32 %v2142, %v2112
    %v2144 = vadd.f32 %v2143, %v2116
    %v2145 = vadd.f32 %v2144, %v2120
    %v2146 = vadd.f32 %v2145, %v2124
    %v2147 = vadd.f32 %v2146, %v2128
    %v2148 = vadd.f32 %v2147, %v2132
    %v2149 = vadd.f32 %v2105, %v2109
    %v2150 = vadd.f32 %v2149, %v2113
    %v2151 = vadd.f32 %v2150, %v2117
    %v2152 = vadd.f32 %v2151, %v2121
    %v2153 = vadd.f32 %v2152, %v2125
    %v2154 = vadd.f32 %v2153, %v2129
    %v2155 = vadd.f32 %v2154, %v2133
    %v2156 = vadd.f32 %v2106, %v2110
    %v2157 = vadd.f32 %v2156, %v2114
    %v2158 = vadd.f32 %v2157, %v2118
    %v2159 = vadd.f32 %v2158, %v2122
    %v2160 = vadd.f32 %v2159, %v2126
    %v2161 = vadd.f32 %v2160, %v2130
    %v2162 = vadd.f32 %v2161, %v2134
    %v2163 = vmul.f32 %v1032, %v988
    %v2164 = vmul.f32 %v1033, %v989
    %v2165 = vmul.f32 %v1034, %v990
    %v2166 = vmul.f32 %v1035, %v991
    %v2167 = vmul.f32 %v1032, %v1000
    %v2168 = vmul.f32 %v1033, %v1001
    %v2169 = vmul.f32 %v1034, %v1002
    %v2170 = vmul.f32 %v1035, %v1003
    %v2171 = vmul.f32 %v1032, %v1012
    %v2172 = vmul.f32 %v1033, %v1013
    %v2173 = vmul.f32 %v1034, %v1014
    %v2174 = vmul.f32 %v1035, %v1015
    %v2175 = vmul.f32 %v1032, %v1024
    %v2176 = vmul.f32 %v1033, %v1025
    %v2177 = vmul.f32 %v1034, %v1026
    %v2178 = vmul.f32 %v1035, %v1027
    %v2179 = vmul.f32 %v1032, %v1036
    %v2180 = vmul.f32 %v1033, %v1037
    %v2181 = vmul.f32 %v1034, %v1038
    %v2182 = vmul.f32 %v1035, %v1039
    %v2183 = vmul.f32 %v1032, %v1048
    %v2184 = vmul.f32 %v1033, %v1049
    %v2185 = vmul.f32 %v1034, %v1050
    %v2186 = vmul.f32 %v1035, %v1051
    %v2187 = vmul.f32 %v1032, %v1060
    %v2188 = vmul.f32 %v1033, %v1061
    %v2189 = vmul.f32 %v1034, %v1062
    %v2190 = vmul.f32 %v1035, %v1063
    %v2191 = vmul.f32 %v1032, %v1072
    %v2192 = vmul.f32 %v1033, %v1073
    %v2193 = vmul.f32 %v1034, %v1074
    %v2194 = vmul.f32 %v1035, %v1075
    %v2195 = vadd.f32 %v2163, %v2164
    %v2196 = vadd.f32 %v2195, %v2165
    %v2197 = vadd.f32 %v2196, %v2166
    %v2198 = vrot.slane %v2197, 4
    %v2199 = vadd.f32 %v2197, %v2198
    %v2200 = vrot.slane %v2199, 2
    %v2201 = vadd.f32 %v2199, %v2200
    %v2202 = vrot.slane %v2201, 1
    %v2203 = vadd.f32 %v2201, %v2202
    %v2204 = vadd.f32 %v2167, %v2168
    %v2205 = vadd.f32 %v2204, %v2169
    %v2206 = vadd.f32 %v2205, %v2170
    %v2207 = vrot.slane %v2206, 4
    %v2208 = vadd.f32 %v2206, %v2207
    %v2209 = vrot.slane %v2208, 2
    %v2210 = vadd.f32 %v2208, %v2209
    %v2211 = vrot.slane %v2210, 1
    %v2212 = vadd.f32 %v2210, %v2211
    %v2213 = vadd.f32 %v2171, %v2172
    %v2214 = vadd.f32 %v2213, %v2173
    %v2215 = vadd.f32 %v2214, %v2174
    %v2216 = vrot.slane %v2215, 4
    %v2217 = vadd.f32 %v2215, %v2216
    %v2218 = vrot.slane %v2217, 2
    %v2219 = vadd.f32 %v2217, %v2218
    %v2220 = vrot.slane %v2219, 1
    %v2221 = vadd.f32 %v2219, %v2220
    %v2222 = vadd.f32 %v2175, %v2176
    %v2223 = vadd.f32 %v2222, %v2177
    %v2224 = vadd.f32 %v2223, %v2178
    %v2225 = vrot.slane %v2224, 4
    %v2226 = vadd.f32 %v2224, %v2225
    %v2227 = vrot.slane %v2226, 2
    %v2228 = vadd.f32 %v2226, %v2227
    %v2229 = vrot.slane %v2228, 1
    %v2230 = vadd.f32 %v2228, %v2229
    %v2231 = vadd.f32 %v2179, %v2180
    %v2232 = vadd.f32 %v2231, %v2181
    %v2233 = vadd.f32 %v2232, %v2182
    %v2234 = vrot.slane %v2233, 4
    %v2235 = vadd.f32 %v2233, %v2234
    %v2236 = vrot.slane %v2235, 2
    %v2237 = vadd.f32 %v2235, %v2236
    %v2238 = vrot.slane %v2237, 1
    %v2239 = vadd.f32 %v2237, %v2238
    %v2240 = vadd.f32 %v2183, %v2184
    %v2241 = vadd.f32 %v2240, %v2185
    %v2242 = vadd.f32 %v2241, %v2186
    %v2243 = vrot.slane %v2242, 4
    %v2244 = vadd.f32 %v2242, %v2243
    %v2245 = vrot.slane %v2244, 2
    %v2246 = vadd.f32 %v2244, %v2245
    %v2247 = vrot.slane %v2246, 1
    %v2248 = vadd.f32 %v2246, %v2247
    %v2249 = vadd.f32 %v2187, %v2188
    %v2250 = vadd.f32 %v2249, %v2189
    %v2251 = vadd.f32 %v2250, %v2190
    %v2252 = vrot.slane %v2251, 4
    %v2253 = vadd.f32 %v2251, %v2252
    %v2254 = vrot.slane %v2253, 2
    %v2255 = vadd.f32 %v2253, %v2254
    %v2256 = vrot.slane %v2255, 1
    %v2257 = vadd.f32 %v2255, %v2256
    %v2258 = vadd.f32 %v2191, %v2192
    %v2259 = vadd.f32 %v2258, %v2193
    %v2260 = vadd.f32 %v2259, %v2194
    %v2261 = vrot.slane %v2260, 4
    %v2262 = vadd.f32 %v2260, %v2261
    %v2263 = vrot.slane %v2262, 2
    %v2264 = vadd.f32 %v2262, %v2263
    %v2265 = vrot.slane %v2264, 1
    %v2266 = vadd.f32 %v2264, %v2265
    %v2267 = vmax.f32 %v2203, %v2239
    %v2268 = vmax.f32 %v2212, %v2248
    %v2269 = vmax.f32 %v2221, %v2257
    %v2270 = vmax.f32 %v2230, %v2266
    %v2271 = vmax.f32 %v2267, %v2268
    %v2272 = vmax.f32 %v2269, %v2270
    %v2273 = vmax.f32 %v2271, %v2272
    %v2274 = vsub.f32 %v2203, %v2273
    %v2275 = vsub.f32 %v2212, %v2273
    %v2276 = vsub.f32 %v2221, %v2273
    %v2277 = vsub.f32 %v2230, %v2273
    %v2278 = vsub.f32 %v2239, %v2273
    %v2279 = vsub.f32 %v2248, %v2273
    %v2280 = vsub.f32 %v2257, %v2273
    %v2281 = vsub.f32 %v2266, %v2273
    %v2282 = vmul.f32 %v2274, 1.442695
    %v2283 = vpow.pop %v2282
    %v2284 = vmul.f32 %v2275, 1.442695
    %v2285 = vpow.pop %v2284
    %v2286 = vmul.f32 %v2276, 1.442695
    %v2287 = vpow.pop %v2286
    %v2288 = vmul.f32 %v2277, 1.442695
    %v2289 = vpow.pop %v2288
    %v2290 = vmul.f32 %v2278, 1.442695
    %v2291 = vpow.pop %v2290
    %v2292 = vmul.f32 %v2279, 1.442695
    %v2293 = vpow.pop %v2292
    %v2294 = vmul.f32 %v2280, 1.442695
    %v2295 = vpow.pop %v2294
    %v2296 = vmul.f32 %v2281, 1.442695
    %v2297 = vpow.pop %v2296
    %v2306 = vrot.slane %v2285, 7
    %v2307 = vsel %vm1224, %v2306, %v2283
    %v2308 = vrot.slane %v2287, 6
    %v2309 = vsel %vm1227, %v2308, %v2307
    %v2310 = vrot.slane %v2289, 5
    %v2311 = vsel %vm1230, %v2310, %v2309
    %v2312 = vrot.slane %v2291, 4
    %v2313 = vsel %vm1233, %v2312, %v2311
    %v2314 = vrot.slane %v2293, 3
    %v2315 = vsel %vm1236, %v2314, %v2313
    %v2316 = vrot.slane %v2295, 2
    %v2317 = vsel %vm1239, %v2316, %v2315
    %v2318 = vrot.slane %v2297, 1
    %v2319 = vsel %vm1242, %v2318, %v2317
    %v2321 = vrot.slane %v2319, 4
    %v2322 = vadd.f32 %v2319, %v2321
    %v2323 = vrot.slane %v2322, 2
    %v2324 = vadd.f32 %v2322, %v2323
    %v2325 = vrot.slane %v2324, 1
    %v2326 = vadd.f32 %v2324, %v2325
    %v2327 = vrcp.pop %v2326
    %v2328 = vlaneseq
    %v2329 = vshrl.u32 %v2328, 7
    %v2330 = vsub.s32 0, %v2329
    %v2331 = vrot.slane %v2327, %v2330
    %v2332 = vmul.f32 %v2283, %v2331
    %v2333 = vmul.f32 %v2285, %v2331
    %v2334 = vmul.f32 %v2287, %v2331
    %v2335 = vmul.f32 %v2289, %v2331
    %v2336 = vmul.f32 %v2291, %v2331
    %v2337 = vmul.f32 %v2293, %v2331
    %v2338 = vmul.f32 %v2295, %v2331
    %v2339 = vmul.f32 %v2297, %v2331
    %v2340 = vlaneseq
    %v2341 = vshrl.u32 %v2340, 7
    %v2342 = vsub.s32 0, %v2341
    %v2343 = vrot.slane %v2332, %v2342
    %v2344 = vlaneseq
    %v2345 = vshrl.u32 %v2344, 7
    %v2346 = vsub.s32 0, %v2345
    %v2347 = vrot.slane %v2333, %v2346
    %v2348 = vlaneseq
    %v2349 = vshrl.u32 %v2348, 7
    %v2350 = vsub.s32 0, %v2349
    %v2351 = vrot.slane %v2334, %v2350
    %v2352 = vlaneseq
    %v2353 = vshrl.u32 %v2352, 7
    %v2354 = vsub.s32 0, %v2353
    %v2355 = vrot.slane %v2335, %v2354
    %v2356 = vlaneseq
    %v2357 = vshrl.u32 %v2356, 7
    %v2358 = vsub.s32 0, %v2357
    %v2359 = vrot.slane %v2336, %v2358
    %v2360 = vlaneseq
    %v2361 = vshrl.u32 %v2360, 7
    %v2362 = vsub.s32 0, %v2361
    %v2363 = vrot.slane %v2337, %v2362
    %v2364 = vlaneseq
    %v2365 = vshrl.u32 %v2364, 7
    %v2366 = vsub.s32 0, %v2365
    %v2367 = vrot.slane %v2338, %v2366
    %v2368 = vlaneseq
    %v2369 = vshrl.u32 %v2368, 7
    %v2370 = vsub.s32 0, %v2369
    %v2371 = vrot.slane %v2339, %v2370
    %v2372 = vmul.f32 %v2343, %v992
    %v2373 = vmul.f32 %v2343, %v993
    %v2374 = vmul.f32 %v2343, %v994
    %v2375 = vmul.f32 %v2343, %v995
    %v2376 = vmul.f32 %v2347, %v1004
    %v2377 = vmul.f32 %v2347, %v1005
    %v2378 = vmul.f32 %v2347, %v1006
    %v2379 = vmul.f32 %v2347, %v1007
    %v2380 = vmul.f32 %v2351, %v1016
    %v2381 = vmul.f32 %v2351, %v1017
    %v2382 = vmul.f32 %v2351, %v1018
    %v2383 = vmul.f32 %v2351, %v1019
    %v2384 = vmul.f32 %v2355, %v1028
    %v2385 = vmul.f32 %v2355, %v1029
    %v2386 = vmul.f32 %v2355, %v1030
    %v2387 = vmul.f32 %v2355, %v1031
    %v2388 = vmul.f32 %v2359, %v1040
    %v2389 = vmul.f32 %v2359, %v1041
    %v2390 = vmul.f32 %v2359, %v1042
    %v2391 = vmul.f32 %v2359, %v1043
    %v2392 = vmul.f32 %v2363, %v1052
    %v2393 = vmul.f32 %v2363, %v1053
    %v2394 = vmul.f32 %v2363, %v1054
    %v2395 = vmul.f32 %v2363, %v1055
    %v2396 = vmul.f32 %v2367, %v1064
    %v2397 = vmul.f32 %v2367, %v1065
    %v2398 = vmul.f32 %v2367, %v1066
    %v2399 = vmul.f32 %v2367, %v1067
    %v2400 = vmul.f32 %v2371, %v1076
    %v2401 = vmul.f32 %v2371, %v1077
    %v2402 = vmul.f32 %v2371, %v1078
    %v2403 = vmul.f32 %v2371, %v1079
    %v2404 = vadd.f32 %v2372, %v2376
    %v2405 = vadd.f32 %v2404, %v2380
    %v2406 = vadd.f32 %v2405, %v2384
    %v2407 = vadd.f32 %v2406, %v2388
    %v2408 = vadd.f32 %v2407, %v2392
    %v2409 = vadd.f32 %v2408, %v2396
    %v2410 = vadd.f32 %v2409, %v2400
    %v2411 = vadd.f32 %v2373, %v2377
    %v2412 = vadd.f32 %v2411, %v2381
    %v2413 = vadd.f32 %v2412, %v2385
    %v2414 = vadd.f32 %v2413, %v2389
    %v2415 = vadd.f32 %v2414, %v2393
    %v2416 = vadd.f32 %v2415, %v2397
    %v2417 = vadd.f32 %v2416, %v2401
    %v2418 = vadd.f32 %v2374, %v2378
    %v2419 = vadd.f32 %v2418, %v2382
    %v2420 = vadd.f32 %v2419, %v2386
    %v2421 = vadd.f32 %v2420, %v2390
    %v2422 = vadd.f32 %v2421, %v2394
    %v2423 = vadd.f32 %v2422, %v2398
    %v2424 = vadd.f32 %v2423, %v2402
    %v2425 = vadd.f32 %v2375, %v2379
    %v2426 = vadd.f32 %v2425, %v2383
    %v2427 = vadd.f32 %v2426, %v2387
    %v2428 = vadd.f32 %v2427, %v2391
    %v2429 = vadd.f32 %v2428, %v2395
    %v2430 = vadd.f32 %v2429, %v2399
    %v2431 = vadd.f32 %v2430, %v2403
    %v2432 = vmul.f32 %v1044, %v988
    %v2433 = vmul.f32 %v1045, %v989
    %v2434 = vmul.f32 %v1046, %v990
    %v2435 = vmul.f32 %v1047, %v991
    %v2436 = vmul.f32 %v1044, %v1000
    %v2437 = vmul.f32 %v1045, %v1001
    %v2438 = vmul.f32 %v1046, %v1002
    %v2439 = vmul.f32 %v1047, %v1003
    %v2440 = vmul.f32 %v1044, %v1012
    %v2441 = vmul.f32 %v1045, %v1013
    %v2442 = vmul.f32 %v1046, %v1014
    %v2443 = vmul.f32 %v1047, %v1015
    %v2444 = vmul.f32 %v1044, %v1024
    %v2445 = vmul.f32 %v1045, %v1025
    %v2446 = vmul.f32 %v1046, %v1026
    %v2447 = vmul.f32 %v1047, %v1027
    %v2448 = vmul.f32 %v1044, %v1036
    %v2449 = vmul.f32 %v1045, %v1037
    %v2450 = vmul.f32 %v1046, %v1038
    %v2451 = vmul.f32 %v1047, %v1039
    %v2452 = vmul.f32 %v1044, %v1048
    %v2453 = vmul.f32 %v1045, %v1049
    %v2454 = vmul.f32 %v1046, %v1050
    %v2455 = vmul.f32 %v1047, %v1051
    %v2456 = vmul.f32 %v1044, %v1060
    %v2457 = vmul.f32 %v1045, %v1061
    %v2458 = vmul.f32 %v1046, %v1062
    %v2459 = vmul.f32 %v1047, %v1063
    %v2460 = vmul.f32 %v1044, %v1072
    %v2461 = vmul.f32 %v1045, %v1073
    %v2462 = vmul.f32 %v1046, %v1074
    %v2463 = vmul.f32 %v1047, %v1075
    %v2464 = vadd.f32 %v2432, %v2433
    %v2465 = vadd.f32 %v2464, %v2434
    %v2466 = vadd.f32 %v2465, %v2435
    %v2467 = vrot.slane %v2466, 4
    %v2468 = vadd.f32 %v2466, %v2467
    %v2469 = vrot.slane %v2468, 2
    %v2470 = vadd.f32 %v2468, %v2469
    %v2471 = vrot.slane %v2470, 1
    %v2472 = vadd.f32 %v2470, %v2471
    %v2473 = vadd.f32 %v2436, %v2437
    %v2474 = vadd.f32 %v2473, %v2438
    %v2475 = vadd.f32 %v2474, %v2439
    %v2476 = vrot.slane %v2475, 4
    %v2477 = vadd.f32 %v2475, %v2476
    %v2478 = vrot.slane %v2477, 2
    %v2479 = vadd.f32 %v2477, %v2478
    %v2480 = vrot.slane %v2479, 1
    %v2481 = vadd.f32 %v2479, %v2480
    %v2482 = vadd.f32 %v2440, %v2441
    %v2483 = vadd.f32 %v2482, %v2442
    %v2484 = vadd.f32 %v2483, %v2443
    %v2485 = vrot.slane %v2484, 4
    %v2486 = vadd.f32 %v2484, %v2485
    %v2487 = vrot.slane %v2486, 2
    %v2488 = vadd.f32 %v2486, %v2487
    %v2489 = vrot.slane %v2488, 1
    %v2490 = vadd.f32 %v2488, %v2489
    %v2491 = vadd.f32 %v2444, %v2445
    %v2492 = vadd.f32 %v2491, %v2446
    %v2493 = vadd.f32 %v2492, %v2447
    %v2494 = vrot.slane %v2493, 4
    %v2495 = vadd.f32 %v2493, %v2494
    %v2496 = vrot.slane %v2495, 2
    %v2497 = vadd.f32 %v2495, %v2496
    %v2498 = vrot.slane %v2497, 1
    %v2499 = vadd.f32 %v2497, %v2498
    %v2500 = vadd.f32 %v2448, %v2449
    %v2501 = vadd.f32 %v2500, %v2450
    %v2502 = vadd.f32 %v2501, %v2451
    %v2503 = vrot.slane %v2502, 4
    %v2504 = vadd.f32 %v2502, %v2503
    %v2505 = vrot.slane %v2504, 2
    %v2506 = vadd.f32 %v2504, %v2505
    %v2507 = vrot.slane %v2506, 1
    %v2508 = vadd.f32 %v2506, %v2507
    %v2509 = vadd.f32 %v2452, %v2453
    %v2510 = vadd.f32 %v2509, %v2454
    %v2511 = vadd.f32 %v2510, %v2455
    %v2512 = vrot.slane %v2511, 4
    %v2513 = vadd.f32 %v2511, %v2512
    %v2514 = vrot.slane %v2513, 2
    %v2515 = vadd.f32 %v2513, %v2514
    %v2516 = vrot.slane %v2515, 1
    %v2517 = vadd.f32 %v2515, %v2516
    %v2518 = vadd.f32 %v2456, %v2457
    %v2519 = vadd.f32 %v2518, %v2458
    %v2520 = vadd.f32 %v2519, %v2459
    %v2521 = vrot.slane %v2520, 4
    %v2522 = vadd.f32 %v2520, %v2521
    %v2523 = vrot.slane %v2522, 2
    %v2524 = vadd.f32 %v2522, %v2523
    %v2525 = vrot.slane %v2524, 1
    %v2526 = vadd.f32 %v2524, %v2525
    %v2527 = vadd.f32 %v2460, %v2461
    %v2528 = vadd.f32 %v2527, %v2462
    %v2529 = vadd.f32 %v2528, %v2463
    %v2530 = vrot.slane %v2529, 4
    %v2531 = vadd.f32 %v2529, %v2530
    %v2532 = vrot.slane %v2531, 2
    %v2533 = vadd.f32 %v2531, %v2532
    %v2534 = vrot.slane %v2533, 1
    %v2535 = vadd.f32 %v2533, %v2534
    %v2536 = vmax.f32 %v2472, %v2508
    %v2537 = vmax.f32 %v2481, %v2517
    %v2538 = vmax.f32 %v2490, %v2526
    %v2539 = vmax.f32 %v2499, %v2535
    %v2540 = vmax.f32 %v2536, %v2537
    %v2541 = vmax.f32 %v2538, %v2539
    %v2542 = vmax.f32 %v2540, %v2541
    %v2543 = vsub.f32 %v2472, %v2542
    %v2544 = vsub.f32 %v2481, %v2542
    %v2545 = vsub.f32 %v2490, %v2542
    %v2546 = vsub.f32 %v2499, %v2542
    %v2547 = vsub.f32 %v2508, %v2542
    %v2548 = vsub.f32 %v2517, %v2542
    %v2549 = vsub.f32 %v2526, %v2542
    %v2550 = vsub.f32 %v2535, %v2542
    %v2551 = vmul.f32 %v2543, 1.442695
    %v2552 = vpow.pop %v2551
    %v2553 = vmul.f32 %v2544, 1.442695
    %v2554 = vpow.pop %v2553
    %v2555 = vmul.f32 %v2545, 1.442695
    %v2556 = vpow.pop %v2555
    %v2557 = vmul.f32 %v2546, 1.442695
    %v2558 = vpow.pop %v2557
    %v2559 = vmul.f32 %v2547, 1.442695
    %v2560 = vpow.pop %v2559
    %v2561 = vmul.f32 %v2548, 1.442695
    %v2562 = vpow.pop %v2561
    %v2563 = vmul.f32 %v2549, 1.442695
    %v2564 = vpow.pop %v2563
    %v2565 = vmul.f32 %v2550, 1.442695
    %v2566 = vpow.pop %v2565
    %v2575 = vrot.slane %v2554, 7
    %v2576 = vsel %vm1224, %v2575, %v2552
    %v2577 = vrot.slane %v2556, 6
    %v2578 = vsel %vm1227, %v2577, %v2576
    %v2579 = vrot.slane %v2558, 5
    %v2580 = vsel %vm1230, %v2579, %v2578
    %v2581 = vrot.slane %v2560, 4
    %v2582 = vsel %vm1233, %v2581, %v2580
    %v2583 = vrot.slane %v2562, 3
    %v2584 = vsel %vm1236, %v2583, %v2582
    %v2585 = vrot.slane %v2564, 2
    %v2586 = vsel %vm1239, %v2585, %v2584
    %v2587 = vrot.slane %v2566, 1
    %v2588 = vsel %vm1242, %v2587, %v2586
    %v2590 = vrot.slane %v2588, 4
    %v2591 = vadd.f32 %v2588, %v2590
    %v2592 = vrot.slane %v2591, 2
    %v2593 = vadd.f32 %v2591, %v2592
    %v2594 = vrot.slane %v2593, 1
    %v2595 = vadd.f32 %v2593, %v2594
    %v2596 = vrcp.pop %v2595
    %v2597 = vlaneseq
    %v2598 = vshrl.u32 %v2597, 7
    %v2599 = vsub.s32 0, %v2598
    %v2600 = vrot.slane %v2596, %v2599
    %v2601 = vmul.f32 %v2552, %v2600
    %v2602 = vmul.f32 %v2554, %v2600
    %v2603 = vmul.f32 %v2556, %v2600
    %v2604 = vmul.f32 %v2558, %v2600
    %v2605 = vmul.f32 %v2560, %v2600
    %v2606 = vmul.f32 %v2562, %v2600
    %v2607 = vmul.f32 %v2564, %v2600
    %v2608 = vmul.f32 %v2566, %v2600
    %v2609 = vlaneseq
    %v2610 = vshrl.u32 %v2609, 7
    %v2611 = vsub.s32 0, %v2610
    %v2612 = vrot.slane %v2601, %v2611
    %v2613 = vlaneseq
    %v2614 = vshrl.u32 %v2613, 7
    %v2615 = vsub.s32 0, %v2614
    %v2616 = vrot.slane %v2602, %v2615
    %v2617 = vlaneseq
    %v2618 = vshrl.u32 %v2617, 7
    %v2619 = vsub.s32 0, %v2618
    %v2620 = vrot.slane %v2603, %v2619
    %v2621 = vlaneseq
    %v2622 = vshrl.u32 %v2621, 7
    %v2623 = vsub.s32 0, %v2622
    %v2624 = vrot.slane %v2604, %v2623
    %v2625 = vlaneseq
    %v2626 = vshrl.u32 %v2625, 7
    %v2627 = vsub.s32 0, %v2626
    %v2628 = vrot.slane %v2605, %v2627
    %v2629 = vlaneseq
    %v2630 = vshrl.u32 %v2629, 7
    %v2631 = vsub.s32 0, %v2630
    %v2632 = vrot.slane %v2606, %v2631
    %v2633 = vlaneseq
    %v2634 = vshrl.u32 %v2633, 7
    %v2635 = vsub.s32 0, %v2634
    %v2636 = vrot.slane %v2607, %v2635
    %v2637 = vlaneseq
    %v2638 = vshrl.u32 %v2637, 7
    %v2639 = vsub.s32 0, %v2638
    %v2640 = vrot.slane %v2608, %v2639
    %v2641 = vmul.f32 %v2612, %v992
    %v2642 = vmul.f32 %v2612, %v993
    %v2643 = vmul.f32 %v2612, %v994
    %v2644 = vmul.f32 %v2612, %v995
    %v2645 = vmul.f32 %v2616, %v1004
    %v2646 = vmul.f32 %v2616, %v1005
    %v2647 = vmul.f32 %v2616, %v1006
    %v2648 = vmul.f32 %v2616, %v1007
    %v2649 = vmul.f32 %v2620, %v1016
    %v2650 = vmul.f32 %v2620, %v1017
    %v2651 = vmul.f32 %v2620, %v1018
    %v2652 = vmul.f32 %v2620, %v1019
    %v2653 = vmul.f32 %v2624, %v1028
    %v2654 = vmul.f32 %v2624, %v1029
    %v2655 = vmul.f32 %v2624, %v1030
    %v2656 = vmul.f32 %v2624, %v1031
    %v2657 = vmul.f32 %v2628, %v1040
    %v2658 = vmul.f32 %v2628, %v1041
    %v2659 = vmul.f32 %v2628, %v1042
    %v2660 = vmul.f32 %v2628, %v1043
    %v2661 = vmul.f32 %v2632, %v1052
    %v2662 = vmul.f32 %v2632, %v1053
    %v2663 = vmul.f32 %v2632, %v1054
    %v2664 = vmul.f32 %v2632, %v1055
    %v2665 = vmul.f32 %v2636, %v1064
    %v2666 = vmul.f32 %v2636, %v1065
    %v2667 = vmul.f32 %v2636, %v1066
    %v2668 = vmul.f32 %v2636, %v1067
    %v2669 = vmul.f32 %v2640, %v1076
    %v2670 = vmul.f32 %v2640, %v1077
    %v2671 = vmul.f32 %v2640, %v1078
    %v2672 = vmul.f32 %v2640, %v1079
    %v2673 = vadd.f32 %v2641, %v2645
    %v2674 = vadd.f32 %v2673, %v2649
    %v2675 = vadd.f32 %v2674, %v2653
    %v2676 = vadd.f32 %v2675, %v2657
    %v2677 = vadd.f32 %v2676, %v2661
    %v2678 = vadd.f32 %v2677, %v2665
    %v2679 = vadd.f32 %v2678, %v2669
    %v2680 = vadd.f32 %v2642, %v2646
    %v2681 = vadd.f32 %v2680, %v2650
    %v2682 = vadd.f32 %v2681, %v2654
    %v2683 = vadd.f32 %v2682, %v2658
    %v2684 = vadd.f32 %v2683, %v2662
    %v2685 = vadd.f32 %v2684, %v2666
    %v2686 = vadd.f32 %v2685, %v2670
    %v2687 = vadd.f32 %v2643, %v2647
    %v2688 = vadd.f32 %v2687, %v2651
    %v2689 = vadd.f32 %v2688, %v2655
    %v2690 = vadd.f32 %v2689, %v2659
    %v2691 = vadd.f32 %v2690, %v2663
    %v2692 = vadd.f32 %v2691, %v2667
    %v2693 = vadd.f32 %v2692, %v2671
    %v2694 = vadd.f32 %v2644, %v2648
    %v2695 = vadd.f32 %v2694, %v2652
    %v2696 = vadd.f32 %v2695, %v2656
    %v2697 = vadd.f32 %v2696, %v2660
    %v2698 = vadd.f32 %v2697, %v2664
    %v2699 = vadd.f32 %v2698, %v2668
    %v2700 = vadd.f32 %v2699, %v2672
    %v2701 = vmul.f32 %v1056, %v988
    %v2702 = vmul.f32 %v1057, %v989
    %v2703 = vmul.f32 %v1058, %v990
    %v2704 = vmul.f32 %v1059, %v991
    %v2705 = vmul.f32 %v1056, %v1000
    %v2706 = vmul.f32 %v1057, %v1001
    %v2707 = vmul.f32 %v1058, %v1002
    %v2708 = vmul.f32 %v1059, %v1003
    %v2709 = vmul.f32 %v1056, %v1012
    %v2710 = vmul.f32 %v1057, %v1013
    %v2711 = vmul.f32 %v1058, %v1014
    %v2712 = vmul.f32 %v1059, %v1015
    %v2713 = vmul.f32 %v1056, %v1024
    %v2714 = vmul.f32 %v1057, %v1025
    %v2715 = vmul.f32 %v1058, %v1026
    %v2716 = vmul.f32 %v1059, %v1027
    %v2717 = vmul.f32 %v1056, %v1036
    %v2718 = vmul.f32 %v1057, %v1037
    %v2719 = vmul.f32 %v1058, %v1038
    %v2720 = vmul.f32 %v1059, %v1039
    %v2721 = vmul.f32 %v1056, %v1048
    %v2722 = vmul.f32 %v1057, %v1049
    %v2723 = vmul.f32 %v1058, %v1050
    %v2724 = vmul.f32 %v1059, %v1051
    %v2725 = vmul.f32 %v1056, %v1060
    %v2726 = vmul.f32 %v1057, %v1061
    %v2727 = vmul.f32 %v1058, %v1062
    %v2728 = vmul.f32 %v1059, %v1063
    %v2729 = vmul.f32 %v1056, %v1072
    %v2730 = vmul.f32 %v1057, %v1073
    %v2731 = vmul.f32 %v1058, %v1074
    %v2732 = vmul.f32 %v1059, %v1075
    %v2733 = vadd.f32 %v2701, %v2702
    %v2734 = vadd.f32 %v2733, %v2703
    %v2735 = vadd.f32 %v2734, %v2704
    %v2736 = vrot.slane %v2735, 4
    %v2737 = vadd.f32 %v2735, %v2736
    %v2738 = vrot.slane %v2737, 2
    %v2739 = vadd.f32 %v2737, %v2738
    %v2740 = vrot.slane %v2739, 1
    %v2741 = vadd.f32 %v2739, %v2740
    %v2742 = vadd.f32 %v2705, %v2706
    %v2743 = vadd.f32 %v2742, %v2707
    %v2744 = vadd.f32 %v2743, %v2708
    %v2745 = vrot.slane %v2744, 4
    %v2746 = vadd.f32 %v2744, %v2745
    %v2747 = vrot.slane %v2746, 2
    %v2748 = vadd.f32 %v2746, %v2747
    %v2749 = vrot.slane %v2748, 1
    %v2750 = vadd.f32 %v2748, %v2749
    %v2751 = vadd.f32 %v2709, %v2710
    %v2752 = vadd.f32 %v2751, %v2711
    %v2753 = vadd.f32 %v2752, %v2712
    %v2754 = vrot.slane %v2753, 4
    %v2755 = vadd.f32 %v2753, %v2754
    %v2756 = vrot.slane %v2755, 2
    %v2757 = vadd.f32 %v2755, %v2756
    %v2758 = vrot.slane %v2757, 1
    %v2759 = vadd.f32 %v2757, %v2758
    %v2760 = vadd.f32 %v2713, %v2714
    %v2761 = vadd.f32 %v2760, %v2715
    %v2762 = vadd.f32 %v2761, %v2716
    %v2763 = vrot.slane %v2762, 4
    %v2764 = vadd.f32 %v2762, %v2763
    %v2765 = vrot.slane %v2764, 2
    %v2766 = vadd.f32 %v2764, %v2765
    %v2767 = vrot.slane %v2766, 1
    %v2768 = vadd.f32 %v2766, %v2767
    %v2769 = vadd.f32 %v2717, %v2718
    %v2770 = vadd.f32 %v2769, %v2719
    %v2771 = vadd.f32 %v2770, %v2720
    %v2772 = vrot.slane %v2771, 4
    %v2773 = vadd.f32 %v2771, %v2772
    %v2774 = vrot.slane %v2773, 2
    %v2775 = vadd.f32 %v2773, %v2774
    %v2776 = vrot.slane %v2775, 1
    %v2777 = vadd.f32 %v2775, %v2776
    %v2778 = vadd.f32 %v2721, %v2722
    %v2779 = vadd.f32 %v2778, %v2723
    %v2780 = vadd.f32 %v2779, %v2724
    %v2781 = vrot.slane %v2780, 4
    %v2782 = vadd.f32 %v2780, %v2781
    %v2783 = vrot.slane %v2782, 2
    %v2784 = vadd.f32 %v2782, %v2783
    %v2785 = vrot.slane %v2784, 1
    %v2786 = vadd.f32 %v2784, %v2785
    %v2787 = vadd.f32 %v2725, %v2726
    %v2788 = vadd.f32 %v2787, %v2727
    %v2789 = vadd.f32 %v2788, %v2728
    %v2790 = vrot.slane %v2789, 4
    %v2791 = vadd.f32 %v2789, %v2790
    %v2792 = vrot.slane %v2791, 2
    %v2793 = vadd.f32 %v2791, %v2792
    %v2794 = vrot.slane %v2793, 1
    %v2795 = vadd.f32 %v2793, %v2794
    %v2796 = vadd.f32 %v2729, %v2730
    %v2797 = vadd.f32 %v2796, %v2731
    %v2798 = vadd.f32 %v2797, %v2732
    %v2799 = vrot.slane %v2798, 4
    %v2800 = vadd.f32 %v2798, %v2799
    %v2801 = vrot.slane %v2800, 2
    %v2802 = vadd.f32 %v2800, %v2801
    %v2803 = vrot.slane %v2802, 1
    %v2804 = vadd.f32 %v2802, %v2803
    %v2805 = vmax.f32 %v2741, %v2777
    %v2806 = vmax.f32 %v2750, %v2786
    %v2807 = vmax.f32 %v2759, %v2795
    %v2808 = vmax.f32 %v2768, %v2804
    %v2809 = vmax.f32 %v2805, %v2806
    %v2810 = vmax.f32 %v2807, %v2808
    %v2811 = vmax.f32 %v2809, %v2810
    %v2812 = vsub.f32 %v2741, %v2811
    %v2813 = vsub.f32 %v2750, %v2811
    %v2814 = vsub.f32 %v2759, %v2811
    %v2815 = vsub.f32 %v2768, %v2811
    %v2816 = vsub.f32 %v2777, %v2811
    %v2817 = vsub.f32 %v2786, %v2811
    %v2818 = vsub.f32 %v2795, %v2811
    %v2819 = vsub.f32 %v2804, %v2811
    %v2820 = vmul.f32 %v2812, 1.442695
    %v2821 = vpow.pop %v2820
    %v2822 = vmul.f32 %v2813, 1.442695
    %v2823 = vpow.pop %v2822
    %v2824 = vmul.f32 %v2814, 1.442695
    %v2825 = vpow.pop %v2824
    %v2826 = vmul.f32 %v2815, 1.442695
    %v2827 = vpow.pop %v2826
    %v2828 = vmul.f32 %v2816, 1.442695
    %v2829 = vpow.pop %v2828
    %v2830 = vmul.f32 %v2817, 1.442695
    %v2831 = vpow.pop %v2830
    %v2832 = vmul.f32 %v2818, 1.442695
    %v2833 = vpow.pop %v2832
    %v2834 = vmul.f32 %v2819, 1.442695
    %v2835 = vpow.pop %v2834
    %v2844 = vrot.slane %v2823, 7
    %v2845 = vsel %vm1224, %v2844, %v2821
    %v2846 = vrot.slane %v2825, 6
    %v2847 = vsel %vm1227, %v2846, %v2845
    %v2848 = vrot.slane %v2827, 5
    %v2849 = vsel %vm1230, %v2848, %v2847
    %v2850 = vrot.slane %v2829, 4
    %v2851 = vsel %vm1233, %v2850, %v2849
    %v2852 = vrot.slane %v2831, 3
    %v2853 = vsel %vm1236, %v2852, %v2851
    %v2854 = vrot.slane %v2833, 2
    %v2855 = vsel %vm1239, %v2854, %v2853
    %v2856 = vrot.slane %v2835, 1
    %v2857 = vsel %vm1242, %v2856, %v2855
    %v2859 = vrot.slane %v2857, 4
    %v2860 = vadd.f32 %v2857, %v2859
    %v2861 = vrot.slane %v2860, 2
    %v2862 = vadd.f32 %v2860, %v2861
    %v2863 = vrot.slane %v2862, 1
    %v2864 = vadd.f32 %v2862, %v2863
    %v2865 = vrcp.pop %v2864
    %v2866 = vlaneseq
    %v2867 = vshrl.u32 %v2866, 7
    %v2868 = vsub.s32 0, %v2867
    %v2869 = vrot.slane %v2865, %v2868
    %v2870 = vmul.f32 %v2821, %v2869
    %v2871 = vmul.f32 %v2823, %v2869
    %v2872 = vmul.f32 %v2825, %v2869
    %v2873 = vmul.f32 %v2827, %v2869
    %v2874 = vmul.f32 %v2829, %v2869
    %v2875 = vmul.f32 %v2831, %v2869
    %v2876 = vmul.f32 %v2833, %v2869
    %v2877 = vmul.f32 %v2835, %v2869
    %v2878 = vlaneseq
    %v2879 = vshrl.u32 %v2878, 7
    %v2880 = vsub.s32 0, %v2879
    %v2881 = vrot.slane %v2870, %v2880
    %v2882 = vlaneseq
    %v2883 = vshrl.u32 %v2882, 7
    %v2884 = vsub.s32 0, %v2883
    %v2885 = vrot.slane %v2871, %v2884
    %v2886 = vlaneseq
    %v2887 = vshrl.u32 %v2886, 7
    %v2888 = vsub.s32 0, %v2887
    %v2889 = vrot.slane %v2872, %v2888
    %v2890 = vlaneseq
    %v2891 = vshrl.u32 %v2890, 7
    %v2892 = vsub.s32 0, %v2891
    %v2893 = vrot.slane %v2873, %v2892
    %v2894 = vlaneseq
    %v2895 = vshrl.u32 %v2894, 7
    %v2896 = vsub.s32 0, %v2895
    %v2897 = vrot.slane %v2874, %v2896
    %v2898 = vlaneseq
    %v2899 = vshrl.u32 %v2898, 7
    %v2900 = vsub.s32 0, %v2899
    %v2901 = vrot.slane %v2875, %v2900
    %v2902 = vlaneseq
    %v2903 = vshrl.u32 %v2902, 7
    %v2904 = vsub.s32 0, %v2903
    %v2905 = vrot.slane %v2876, %v2904
    %v2906 = vlaneseq
    %v2907 = vshrl.u32 %v2906, 7
    %v2908 = vsub.s32 0, %v2907
    %v2909 = vrot.slane %v2877, %v2908
    %v2910 = vmul.f32 %v2881, %v992
    %v2911 = vmul.f32 %v2881, %v993
    %v2912 = vmul.f32 %v2881, %v994
    %v2913 = vmul.f32 %v2881, %v995
    %v2914 = vmul.f32 %v2885, %v1004
    %v2915 = vmul.f32 %v2885, %v1005
    %v2916 = vmul.f32 %v2885, %v1006
    %v2917 = vmul.f32 %v2885, %v1007
    %v2918 = vmul.f32 %v2889, %v1016
    %v2919 = vmul.f32 %v2889, %v1017
    %v2920 = vmul.f32 %v2889, %v1018
    %v2921 = vmul.f32 %v2889, %v1019
    %v2922 = vmul.f32 %v2893, %v1028
    %v2923 = vmul.f32 %v2893, %v1029
    %v2924 = vmul.f32 %v2893, %v1030
    %v2925 = vmul.f32 %v2893, %v1031
    %v2926 = vmul.f32 %v2897, %v1040
    %v2927 = vmul.f32 %v2897, %v1041
    %v2928 = vmul.f32 %v2897, %v1042
    %v2929 = vmul.f32 %v2897, %v1043
    %v2930 = vmul.f32 %v2901, %v1052
    %v2931 = vmul.f32 %v2901, %v1053
    %v2932 = vmul.f32 %v2901, %v1054
    %v2933 = vmul.f32 %v2901, %v1055
    %v2934 = vmul.f32 %v2905, %v1064
    %v2935 = vmul.f32 %v2905, %v1065
    %v2936 = vmul.f32 %v2905, %v1066
    %v2937 = vmul.f32 %v2905, %v1067
    %v2938 = vmul.f32 %v2909, %v1076
    %v2939 = vmul.f32 %v2909, %v1077
    %v2940 = vmul.f32 %v2909, %v1078
    %v2941 = vmul.f32 %v2909, %v1079
    %v2942 = vadd.f32 %v2910, %v2914
    %v2943 = vadd.f32 %v2942, %v2918
    %v2944 = vadd.f32 %v2943, %v2922
    %v2945 = vadd.f32 %v2944, %v2926
    %v2946 = vadd.f32 %v2945, %v2930
    %v2947 = vadd.f32 %v2946, %v2934
    %v2948 = vadd.f32 %v2947, %v2938
    %v2949 = vadd.f32 %v2911, %v2915
    %v2950 = vadd.f32 %v2949, %v2919
    %v2951 = vadd.f32 %v2950, %v2923
    %v2952 = vadd.f32 %v2951, %v2927
    %v2953 = vadd.f32 %v2952, %v2931
    %v2954 = vadd.f32 %v2953, %v2935
    %v2955 = vadd.f32 %v2954, %v2939
    %v2956 = vadd.f32 %v2912, %v2916
    %v2957 = vadd.f32 %v2956, %v2920
    %v2958 = vadd.f32 %v2957, %v2924
    %v2959 = vadd.f32 %v2958, %v2928
    %v2960 = vadd.f32 %v2959, %v2932
    %v2961 = vadd.f32 %v2960, %v2936
    %v2962 = vadd.f32 %v2961, %v2940
    %v2963 = vadd.f32 %v2913, %v2917
    %v2964 = vadd.f32 %v2963, %v2921
    %v2965 = vadd.f32 %v2964, %v2925
    %v2966 = vadd.f32 %v2965, %v2929
    %v2967 = vadd.f32 %v2966, %v2933
    %v2968 = vadd.f32 %v2967, %v2937
    %v2969 = vadd.f32 %v2968, %v2941
    %v2970 = vmul.f32 %v1068, %v988
    %v2971 = vmul.f32 %v1069, %v989
    %v2972 = vmul.f32 %v1070, %v990
    %v2973 = vmul.f32 %v1071, %v991
    %v2974 = vmul.f32 %v1068, %v1000
    %v2975 = vmul.f32 %v1069, %v1001
    %v2976 = vmul.f32 %v1070, %v1002
    %v2977 = vmul.f32 %v1071, %v1003
    %v2978 = vmul.f32 %v1068, %v1012
    %v2979 = vmul.f32 %v1069, %v1013
    %v2980 = vmul.f32 %v1070, %v1014
    %v2981 = vmul.f32 %v1071, %v1015
    %v2982 = vmul.f32 %v1068, %v1024
    %v2983 = vmul.f32 %v1069, %v1025
    %v2984 = vmul.f32 %v1070, %v1026
    %v2985 = vmul.f32 %v1071, %v1027
    %v2986 = vmul.f32 %v1068, %v1036
    %v2987 = vmul.f32 %v1069, %v1037
    %v2988 = vmul.f32 %v1070, %v1038
    %v2989 = vmul.f32 %v1071, %v1039
    %v2990 = vmul.f32 %v1068, %v1048
    %v2991 = vmul.f32 %v1069, %v1049
    %v2992 = vmul.f32 %v1070, %v1050
    %v2993 = vmul.f32 %v1071, %v1051
    %v2994 = vmul.f32 %v1068, %v1060
    %v2995 = vmul.f32 %v1069, %v1061
    %v2996 = vmul.f32 %v1070, %v1062
    %v2997 = vmul.f32 %v1071, %v1063
    %v2998 = vmul.f32 %v1068, %v1072
    %v2999 = vmul.f32 %v1069, %v1073
    %v3000 = vmul.f32 %v1070, %v1074
    %v3001 = vmul.f32 %v1071, %v1075
    %v3002 = vadd.f32 %v2970, %v2971
    %v3003 = vadd.f32 %v3002, %v2972
    %v3004 = vadd.f32 %v3003, %v2973
    %v3005 = vrot.slane %v3004, 4
    %v3006 = vadd.f32 %v3004, %v3005
    %v3007 = vrot.slane %v3006, 2
    %v3008 = vadd.f32 %v3006, %v3007
    %v3009 = vrot.slane %v3008, 1
    %v3010 = vadd.f32 %v3008, %v3009
    %v3011 = vadd.f32 %v2974, %v2975
    %v3012 = vadd.f32 %v3011, %v2976
    %v3013 = vadd.f32 %v3012, %v2977
    %v3014 = vrot.slane %v3013, 4
    %v3015 = vadd.f32 %v3013, %v3014
    %v3016 = vrot.slane %v3015, 2
    %v3017 = vadd.f32 %v3015, %v3016
    %v3018 = vrot.slane %v3017, 1
    %v3019 = vadd.f32 %v3017, %v3018
    %v3020 = vadd.f32 %v2978, %v2979
    %v3021 = vadd.f32 %v3020, %v2980
    %v3022 = vadd.f32 %v3021, %v2981
    %v3023 = vrot.slane %v3022, 4
    %v3024 = vadd.f32 %v3022, %v3023
    %v3025 = vrot.slane %v3024, 2
    %v3026 = vadd.f32 %v3024, %v3025
    %v3027 = vrot.slane %v3026, 1
    %v3028 = vadd.f32 %v3026, %v3027
    %v3029 = vadd.f32 %v2982, %v2983
    %v3030 = vadd.f32 %v3029, %v2984
    %v3031 = vadd.f32 %v3030, %v2985
    %v3032 = vrot.slane %v3031, 4
    %v3033 = vadd.f32 %v3031, %v3032
    %v3034 = vrot.slane %v3033, 2
    %v3035 = vadd.f32 %v3033, %v3034
    %v3036 = vrot.slane %v3035, 1
    %v3037 = vadd.f32 %v3035, %v3036
    %v3038 = vadd.f32 %v2986, %v2987
    %v3039 = vadd.f32 %v3038, %v2988
    %v3040 = vadd.f32 %v3039, %v2989
    %v3041 = vrot.slane %v3040, 4
    %v3042 = vadd.f32 %v3040, %v3041
    %v3043 = vrot.slane %v3042, 2
    %v3044 = vadd.f32 %v3042, %v3043
    %v3045 = vrot.slane %v3044, 1
    %v3046 = vadd.f32 %v3044, %v3045
    %v3047 = vadd.f32 %v2990, %v2991
    %v3048 = vadd.f32 %v3047, %v2992
    %v3049 = vadd.f32 %v3048, %v2993
    %v3050 = vrot.slane %v3049, 4
    %v3051 = vadd.f32 %v3049, %v3050
    %v3052 = vrot.slane %v3051, 2
    %v3053 = vadd.f32 %v3051, %v3052
    %v3054 = vrot.slane %v3053, 1
    %v3055 = vadd.f32 %v3053, %v3054
    %v3056 = vadd.f32 %v2994, %v2995
    %v3057 = vadd.f32 %v3056, %v2996
    %v3058 = vadd.f32 %v3057, %v2997
    %v3059 = vrot.slane %v3058, 4
    %v3060 = vadd.f32 %v3058, %v3059
    %v3061 = vrot.slane %v3060, 2
    %v3062 = vadd.f32 %v3060, %v3061
    %v3063 = vrot.slane %v3062, 1
    %v3064 = vadd.f32 %v3062, %v3063
    %v3065 = vadd.f32 %v2998, %v2999
    %v3066 = vadd.f32 %v3065, %v3000
    %v3067 = vadd.f32 %v3066, %v3001
    %v3068 = vrot.slane %v3067, 4
    %v3069 = vadd.f32 %v3067, %v3068
    %v3070 = vrot.slane %v3069, 2
    %v3071 = vadd.f32 %v3069, %v3070
    %v3072 = vrot.slane %v3071, 1
    %v3073 = vadd.f32 %v3071, %v3072
    %v3074 = vmax.f32 %v3010, %v3046
    %v3075 = vmax.f32 %v3019, %v3055
    %v3076 = vmax.f32 %v3028, %v3064
    %v3077 = vmax.f32 %v3037, %v3073
    %v3078 = vmax.f32 %v3074, %v3075
    %v3079 = vmax.f32 %v3076, %v3077
    %v3080 = vmax.f32 %v3078, %v3079
    %v3081 = vsub.f32 %v3010, %v3080
    %v3082 = vsub.f32 %v3019, %v3080
    %v3083 = vsub.f32 %v3028, %v3080
    %v3084 = vsub.f32 %v3037, %v3080
    %v3085 = vsub.f32 %v3046, %v3080
    %v3086 = vsub.f32 %v3055, %v3080
    %v3087 = vsub.f32 %v3064, %v3080
    %v3088 = vsub.f32 %v3073, %v3080
    %v3089 = vmul.f32 %v3081, 1.442695
    %v3090 = vpow.pop %v3089
    %v3091 = vmul.f32 %v3082, 1.442695
    %v3092 = vpow.pop %v3091
    %v3093 = vmul.f32 %v3083, 1.442695
    %v3094 = vpow.pop %v3093
    %v3095 = vmul.f32 %v3084, 1.442695
    %v3096 = vpow.pop %v3095
    %v3097 = vmul.f32 %v3085, 1.442695
    %v3098 = vpow.pop %v3097
    %v3099 = vmul.f32 %v3086, 1.442695
    %v3100 = vpow.pop %v3099
    %v3101 = vmul.f32 %v3087, 1.442695
    %v3102 = vpow.pop %v3101
    %v3103 = vmul.f32 %v3088, 1.442695
    %v3104 = vpow.pop %v3103
    %v3113 = vrot.slane %v3092, 7
    %v3114 = vsel %vm1224, %v3113, %v3090
    %v3115 = vrot.slane %v3094, 6
    %v3116 = vsel %vm1227, %v3115, %v3114
    %v3117 = vrot.slane %v3096, 5
    %v3118 = vsel %vm1230, %v3117, %v3116
    %v3119 = vrot.slane %v3098, 4
    %v3120 = vsel %vm1233, %v3119, %v3118
    %v3121 = vrot.slane %v3100, 3
    %v3122 = vsel %vm1236, %v3121, %v3120
    %v3123 = vrot.slane %v3102, 2
    %v3124 = vsel %vm1239, %v3123, %v3122
    %v3125 = vrot.slane %v3104, 1
    %v3126 = vsel %vm1242, %v3125, %v3124
    %v3128 = vrot.slane %v3126, 4
    %v3129 = vadd.f32 %v3126, %v3128
    %v3130 = vrot.slane %v3129, 2
    %v3131 = vadd.f32 %v3129, %v3130
    %v3132 = vrot.slane %v3131, 1
    %v3133 = vadd.f32 %v3131, %v3132
    %v3134 = vrcp.pop %v3133
    %v3135 = vlaneseq
    %v3136 = vshrl.u32 %v3135, 7
    %v3137 = vsub.s32 0, %v3136
    %v3138 = vrot.slane %v3134, %v3137
    %v3139 = vmul.f32 %v3090, %v3138
    %v3140 = vmul.f32 %v3092, %v3138
    %v3141 = vmul.f32 %v3094, %v3138
    %v3142 = vmul.f32 %v3096, %v3138
    %v3143 = vmul.f32 %v3098, %v3138
    %v3144 = vmul.f32 %v3100, %v3138
    %v3145 = vmul.f32 %v3102, %v3138
    %v3146 = vmul.f32 %v3104, %v3138
    %v3147 = vlaneseq
    %v3148 = vshrl.u32 %v3147, 7
    %v3149 = vsub.s32 0, %v3148
    %v3150 = vrot.slane %v3139, %v3149
    %v3151 = vlaneseq
    %v3152 = vshrl.u32 %v3151, 7
    %v3153 = vsub.s32 0, %v3152
    %v3154 = vrot.slane %v3140, %v3153
    %v3155 = vlaneseq
    %v3156 = vshrl.u32 %v3155, 7
    %v3157 = vsub.s32 0, %v3156
    %v3158 = vrot.slane %v3141, %v3157
    %v3159 = vlaneseq
    %v3160 = vshrl.u32 %v3159, 7
    %v3161 = vsub.s32 0, %v3160
    %v3162 = vrot.slane %v3142, %v3161
    %v3163 = vlaneseq
    %v3164 = vshrl.u32 %v3163, 7
    %v3165 = vsub.s32 0, %v3164
    %v3166 = vrot.slane %v3143, %v3165
    %v3167 = vlaneseq
    %v3168 = vshrl.u32 %v3167, 7
    %v3169 = vsub.s32 0, %v3168
    %v3170 = vrot.slane %v3144, %v3169
    %v3171 = vlaneseq
    %v3172 = vshrl.u32 %v3171, 7
    %v3173 = vsub.s32 0, %v3172
    %v3174 = vrot.slane %v3145, %v3173
    %v3175 = vlaneseq
    %v3176 = vshrl.u32 %v3175, 7
    %v3177 = vsub.s32 0, %v3176
    %v3178 = vrot.slane %v3146, %v3177
    %v3179 = vmul.f32 %v3150, %v992
    %v3180 = vmul.f32 %v3150, %v993
    %v3181 = vmul.f32 %v3150, %v994
    %v3182 = vmul.f32 %v3150, %v995
    %v3183 = vmul.f32 %v3154, %v1004
    %v3184 = vmul.f32 %v3154, %v1005
    %v3185 = vmul.f32 %v3154, %v1006
    %v3186 = vmul.f32 %v3154, %v1007
    %v3187 = vmul.f32 %v3158, %v1016
    %v3188 = vmul.f32 %v3158, %v1017
    %v3189 = vmul.f32 %v3158, %v1018
    %v3190 = vmul.f32 %v3158, %v1019
    %v3191 = vmul.f32 %v3162, %v1028
    %v3192 = vmul.f32 %v3162, %v1029
    %v3193 = vmul.f32 %v3162, %v1030
    %v3194 = vmul.f32 %v3162, %v1031
    %v3195 = vmul.f32 %v3166, %v1040
    %v3196 = vmul.f32 %v3166, %v1041
    %v3197 = vmul.f32 %v3166, %v1042
    %v3198 = vmul.f32 %v3166, %v1043
    %v3199 = vmul.f32 %v3170, %v1052
    %v3200 = vmul.f32 %v3170, %v1053
    %v3201 = vmul.f32 %v3170, %v1054
    %v3202 = vmul.f32 %v3170, %v1055
    %v3203 = vmul.f32 %v3174, %v1064
    %v3204 = vmul.f32 %v3174, %v1065
    %v3205 = vmul.f32 %v3174, %v1066
    %v3206 = vmul.f32 %v3174, %v1067
    %v3207 = vmul.f32 %v3178, %v1076
    %v3208 = vmul.f32 %v3178, %v1077
    %v3209 = vmul.f32 %v3178, %v1078
    %v3210 = vmul.f32 %v3178, %v1079
    %v3211 = vadd.f32 %v3179, %v3183
    %v3212 = vadd.f32 %v3211, %v3187
    %v3213 = vadd.f32 %v3212, %v3191
    %v3214 = vadd.f32 %v3213, %v3195
    %v3215 = vadd.f32 %v3214, %v3199
    %v3216 = vadd.f32 %v3215, %v3203
    %v3217 = vadd.f32 %v3216, %v3207
    %v3218 = vadd.f32 %v3180, %v3184
    %v3219 = vadd.f32 %v3218, %v3188
    %v3220 = vadd.f32 %v3219, %v3192
    %v3221 = vadd.f32 %v3220, %v3196
    %v3222 = vadd.f32 %v3221, %v3200
    %v3223 = vadd.f32 %v3222, %v3204
    %v3224 = vadd.f32 %v3223, %v3208
    %v3225 = vadd.f32 %v3181, %v3185
    %v3226 = vadd.f32 %v3225, %v3189
    %v3227 = vadd.f32 %v3226, %v3193
    %v3228 = vadd.f32 %v3227, %v3197
    %v3229 = vadd.f32 %v3228, %v3201
    %v3230 = vadd.f32 %v3229, %v3205
    %v3231 = vadd.f32 %v3230, %v3209
    %v3232 = vadd.f32 %v3182, %v3186
    %v3233 = vadd.f32 %v3232, %v3190
    %v3234 = vadd.f32 %v3233, %v3194
    %v3235 = vadd.f32 %v3234, %v3198
    %v3236 = vadd.f32 %v3235, %v3202
    %v3237 = vadd.f32 %v3236, %v3206
    %v3238 = vadd.f32 %v3237, %v3210
    %v3239 = vld [vmem:[#allocation5] sm:$0xff]
    %v3240 = vld [vmem:[#allocation5 + $0x8] sm:$0xff]
    %v3241 = vld [vmem:[#allocation5 + $0x10] sm:$0xff]
    %v3242 = vld [vmem:[#allocation5 + $0x18] sm:$0xff]
    %v3243 = vld [vmem:[#allocation5 + $0x20] sm:$0xff]
    %v3244 = vld [vmem:[#allocation5 + $0x28] sm:$0xff]
    %v3245 = vld [vmem:[#allocation5 + $0x30] sm:$0xff]
    %v3246 = vld [vmem:[#allocation5 + $0x38] sm:$0xff]
    %v3247 = vld [vmem:[#allocation5 + $0x40] sm:$0xff]
    %v3248 = vld [vmem:[#allocation5 + $0x48] sm:$0xff]
    %v3249 = vld [vmem:[#allocation5 + $0x50] sm:$0xff]
    %v3250 = vld [vmem:[#allocation5 + $0x58] sm:$0xff]
    %v3251 = vld [vmem:[#allocation5 + $0x60] sm:$0xff]
    %v3252 = vld [vmem:[#allocation5 + $0x68] sm:$0xff]
    %v3253 = vld [vmem:[#allocation5 + $0x70] sm:$0xff]
    %v3254 = vld [vmem:[#allocation5 + $0x78] sm:$0xff]
    %v3255 = vld [vmem:[#allocation5 + $0x80] sm:$0xff]
    %v3256 = vld [vmem:[#allocation5 + $0x88] sm:$0xff]
    %v3257 = vld [vmem:[#allocation5 + $0x90] sm:$0xff]
    %v3258 = vld [vmem:[#allocation5 + $0x98] sm:$0xff]
    %v3259 = vld [vmem:[#allocation5 + $0xa0] sm:$0xff]
    %v3260 = vld [vmem:[#allocation5 + $0xa8] sm:$0xff]
    %v3261 = vld [vmem:[#allocation5 + $0xb0] sm:$0xff]
    %v3262 = vld [vmem:[#allocation5 + $0xb8] sm:$0xff]
    %v3263 = vld [vmem:[#allocation5 + $0xc0] sm:$0xff]
    %v3264 = vld [vmem:[#allocation5 + $0xc8] sm:$0xff]
    %v3265 = vld [vmem:[#allocation5 + $0xd0] sm:$0xff]
    %v3266 = vld [vmem:[#allocation5 + $0xd8] sm:$0xff]
    %v3267 = vld [vmem:[#allocation5 + $0xe0] sm:$0xff]
    %v3268 = vld [vmem:[#allocation5 + $0xe8] sm:$0xff]
    %v3269 = vld [vmem:[#allocation5 + $0xf0] sm:$0xff]
    %v3270 = vld [vmem:[#allocation5 + $0xf8] sm:$0xff]
    %v3271 = vld [vmem:[#allocation5 + $0x100] sm:$0xff]
    %v3272 = vld [vmem:[#allocation5 + $0x108] sm:$0xff]
    %v3273 = vld [vmem:[#allocation5 + $0x110] sm:$0xff]
    %v3274 = vld [vmem:[#allocation5 + $0x118] sm:$0xff]
    %v3275 = vld [vmem:[#allocation5 + $0x120] sm:$0xff]
    %v3276 = vld [vmem:[#allocation5 + $0x128] sm:$0xff]
    %v3277 = vld [vmem:[#allocation5 + $0x130] sm:$0xff]
    %v3278 = vld [vmem:[#allocation5 + $0x138] sm:$0xff]
    %v3279 = vld [vmem:[#allocation5 + $0x140] sm:$0xff]
    %v3280 = vld [vmem:[#allocation5 + $0x148] sm:$0xff]
    %v3281 = vld [vmem:[#allocation5 + $0x150] sm:$0xff]
    %v3282 = vld [vmem:[#allocation5 + $0x158] sm:$0xff]
    %v3283 = vld [vmem:[#allocation5 + $0x160] sm:$0xff]
    %v3284 = vld [vmem:[#allocation5 + $0x168] sm:$0xff]
    %v3285 = vld [vmem:[#allocation5 + $0x170] sm:$0xff]
    %v3286 = vld [vmem:[#allocation5 + $0x178] sm:$0xff]
    %v3287 = vld [vmem:[#allocation5 + $0x180] sm:$0xff]
    %v3288 = vld [vmem:[#allocation5 + $0x188] sm:$0xff]
    %v3289 = vld [vmem:[#allocation5 + $0x190] sm:$0xff]
    %v3290 = vld [vmem:[#allocation5 + $0x198] sm:$0xff]
    %v3291 = vld [vmem:[#allocation5 + $0x1a0] sm:$0xff]
    %v3292 = vld [vmem:[#allocation5 + $0x1a8] sm:$0xff]
    %v3293 = vld [vmem:[#allocation5 + $0x1b0] sm:$0xff]
    %v3294 = vld [vmem:[#allocation5 + $0x1b8] sm:$0xff]
    %v3295 = vld [vmem:[#allocation5 + $0x1c0] sm:$0xff]
    %v3296 = vld [vmem:[#allocation5 + $0x1c8] sm:$0xff]
    %v3297 = vld [vmem:[#allocation5 + $0x1d0] sm:$0xff]
    %v3298 = vld [vmem:[#allocation5 + $0x1d8] sm:$0xff]
    %v3299 = vld [vmem:[#allocation5 + $0x1e0] sm:$0xff]
    %v3300 = vld [vmem:[#allocation5 + $0x1e8] sm:$0xff]
    %v3301 = vld [vmem:[#allocation5 + $0x1f0] sm:$0xff]
    %v3302 = vld [vmem:[#allocation5 + $0x1f8] sm:$0xff]
    %v3303 = vpack.c.bf16 %v1341, %v1334
    %v3304 = vpack.c.bf16 %v1355, %v1348
    %v3305 = vpack.c.bf16 %v1610, %v1603
    %v3306 = vpack.c.bf16 %v1624, %v1617
    %v3307 = vpack.c.bf16 %v1879, %v1872
    %v3308 = vpack.c.bf16 %v1893, %v1886
    %v3309 = vpack.c.bf16 %v2148, %v2141
    %v3310 = vpack.c.bf16 %v2162, %v2155
    %v3311 = vpack.c.bf16 %v2417, %v2410
    %v3312 = vpack.c.bf16 %v2431, %v2424
    %v3313 = vpack.c.bf16 %v2686, %v2679
    %v3314 = vpack.c.bf16 %v2700, %v2693
    %v3315 = vpack.c.bf16 %v2955, %v2948
    %v3316 = vpack.c.bf16 %v2969, %v2962
    %v3317 = vpack.c.bf16 %v3224, %v3217
    %v3318 = vpack.c.bf16 %v3238, %v3231
    %v3383 = vunpack.c.l.b16 %v3239
    %v3384 = vunpack.c.h.b16 %v3239
    %v3385 = vunpack.c.l.b16 %v3240
    %v3386 = vunpack.c.h.b16 %v3240
    %v3387 = vunpack.c.l.b16 %v3241
    %v3388 = vunpack.c.h.b16 %v3241
    %v3389 = vunpack.c.l.b16 %v3242
    %v3390 = vunpack.c.h.b16 %v3242
    %v3391 = vunpack.c.l.b16 %v3243
    %v3392 = vunpack.c.h.b16 %v3243
    %v3393 = vunpack.c.l.b16 %v3244
    %v3394 = vunpack.c.h.b16 %v3244
    %v3395 = vunpack.c.l.b16 %v3245
    %v3396 = vunpack.c.h.b16 %v3245
    %v3397 = vunpack.c.l.b16 %v3246
    %v3398 = vunpack.c.h.b16 %v3246
    %v3399 = vunpack.c.l.b16 %v3247
    %v3400 = vunpack.c.h.b16 %v3247
    %v3401 = vunpack.c.l.b16 %v3248
    %v3402 = vunpack.c.h.b16 %v3248
    %v3403 = vunpack.c.l.b16 %v3249
    %v3404 = vunpack.c.h.b16 %v3249
    %v3405 = vunpack.c.l.b16 %v3250
    %v3406 = vunpack.c.h.b16 %v3250
    %v3407 = vunpack.c.l.b16 %v3251
    %v3408 = vunpack.c.h.b16 %v3251
    %v3409 = vunpack.c.l.b16 %v3252
    %v3410 = vunpack.c.h.b16 %v3252
    %v3411 = vunpack.c.l.b16 %v3253
    %v3412 = vunpack.c.h.b16 %v3253
    %v3413 = vunpack.c.l.b16 %v3254
    %v3414 = vunpack.c.h.b16 %v3254
    %v3415 = vunpack.c.l.b16 %v3255
    %v3416 = vunpack.c.h.b16 %v3255
    %v3417 = vunpack.c.l.b16 %v3256
    %v3418 = vunpack.c.h.b16 %v3256
    %v3419 = vunpack.c.l.b16 %v3257
    %v3420 = vunpack.c.h.b16 %v3257
    %v3421 = vunpack.c.l.b16 %v3258
    %v3422 = vunpack.c.h.b16 %v3258
    %v3423 = vunpack.c.l.b16 %v3259
    %v3424 = vunpack.c.h.b16 %v3259
    %v3425 = vunpack.c.l.b16 %v3260
    %v3426 = vunpack.c.h.b16 %v3260
    %v3427 = vunpack.c.l.b16 %v3261
    %v3428 = vunpack.c.h.b16 %v3261
    %v3429 = vunpack.c.l.b16 %v3262
    %v3430 = vunpack.c.h.b16 %v3262
    %v3431 = vunpack.c.l.b16 %v3263
    %v3432 = vunpack.c.h.b16 %v3263
    %v3433 = vunpack.c.l.b16 %v3264
    %v3434 = vunpack.c.h.b16 %v3264
    %v3435 = vunpack.c.l.b16 %v3265
    %v3436 = vunpack.c.h.b16 %v3265
    %v3437 = vunpack.c.l.b16 %v3266
    %v3438 = vunpack.c.h.b16 %v3266
    %v3439 = vunpack.c.l.b16 %v3267
    %v3440 = vunpack.c.h.b16 %v3267
    %v3441 = vunpack.c.l.b16 %v3268
    %v3442 = vunpack.c.h.b16 %v3268
    %v3443 = vunpack.c.l.b16 %v3269
    %v3444 = vunpack.c.h.b16 %v3269
    %v3445 = vunpack.c.l.b16 %v3270
    %v3446 = vunpack.c.h.b16 %v3270
    %v3447 = vunpack.c.l.b16 %v3271
    %v3448 = vunpack.c.h.b16 %v3271
    %v3449 = vunpack.c.l.b16 %v3272
    %v3450 = vunpack.c.h.b16 %v3272
    %v3451 = vunpack.c.l.b16 %v3273
    %v3452 = vunpack.c.h.b16 %v3273
    %v3453 = vunpack.c.l.b16 %v3274
    %v3454 = vunpack.c.h.b16 %v3274
    %v3455 = vunpack.c.l.b16 %v3275
    %v3456 = vunpack.c.h.b16 %v3275
    %v3457 = vunpack.c.l.b16 %v3276
    %v3458 = vunpack.c.h.b16 %v3276
    %v3459 = vunpack.c.l.b16 %v3277
    %v3460 = vunpack.c.h.b16 %v3277
    %v3461 = vunpack.c.l.b16 %v3278
    %v3462 = vunpack.c.h.b16 %v3278
    %v3463 = vunpack.c.l.b16 %v3279
    %v3464 = vunpack.c.h.b16 %v3279
    %v3465 = vunpack.c.l.b16 %v3280
    %v3466 = vunpack.c.h.b16 %v3280
    %v3467 = vunpack.c.l.b16 %v3281
    %v3468 = vunpack.c.h.b16 %v3281
    %v3469 = vunpack.c.l.b16 %v3282
    %v3470 = vunpack.c.h.b16 %v3282
    %v3471 = vunpack.c.l.b16 %v3283
    %v3472 = vunpack.c.h.b16 %v3283
    %v3473 = vunpack.c.l.b16 %v3284
    %v3474 = vunpack.c.h.b16 %v3284
    %v3475 = vunpack.c.l.b16 %v3285
    %v3476 = vunpack.c.h.b16 %v3285
    %v3477 = vunpack.c.l.b16 %v3286
    %v3478 = vunpack.c.h.b16 %v3286
    %v3479 = vunpack.c.l.b16 %v3287
    %v3480 = vunpack.c.h.b16 %v3287
    %v3481 = vunpack.c.l.b16 %v3288
    %v3482 = vunpack.c.h.b16 %v3288
    %v3483 = vunpack.c.l.b16 %v3289
    %v3484 = vunpack.c.h.b16 %v3289
    %v3485 = vunpack.c.l.b16 %v3290
    %v3486 = vunpack.c.h.b16 %v3290
    %v3487 = vunpack.c.l.b16 %v3291
    %v3488 = vunpack.c.h.b16 %v3291
    %v3489 = vunpack.c.l.b16 %v3292
    %v3490 = vunpack.c.h.b16 %v3292
    %v3491 = vunpack.c.l.b16 %v3293
    %v3492 = vunpack.c.h.b16 %v3293
    %v3493 = vunpack.c.l.b16 %v3294
    %v3494 = vunpack.c.h.b16 %v3294
    %v3495 = vunpack.c.l.b16 %v3295
    %v3496 = vunpack.c.h.b16 %v3295
    %v3497 = vunpack.c.l.b16 %v3296
    %v3498 = vunpack.c.h.b16 %v3296
    %v3499 = vunpack.c.l.b16 %v3297
    %v3500 = vunpack.c.h.b16 %v3297
    %v3501 = vunpack.c.l.b16 %v3298
    %v3502 = vunpack.c.h.b16 %v3298
    %v3503 = vunpack.c.l.b16 %v3299
    %v3504 = vunpack.c.h.b16 %v3299
    %v3505 = vunpack.c.l.b16 %v3300
    %v3506 = vunpack.c.h.b16 %v3300
    %v3507 = vunpack.c.l.b16 %v3301
    %v3508 = vunpack.c.h.b16 %v3301
    %v3509 = vunpack.c.l.b16 %v3302
    %v3510 = vunpack.c.h.b16 %v3302
    %v3511 = vpack.c.b16 %v3385, %v3383
    %v3512 = vpack.c.b16 %v3386, %v3384
    %v3513 = vpack.c.b16 %v3389, %v3387
    %v3514 = vpack.c.b16 %v3390, %v3388
    %v3515 = vpack.c.b16 %v3393, %v3391
    %v3516 = vpack.c.b16 %v3394, %v3392
    %v3517 = vpack.c.b16 %v3397, %v3395
    %v3518 = vpack.c.b16 %v3398, %v3396
    %v3519 = vpack.c.b16 %v3401, %v3399
    %v3520 = vpack.c.b16 %v3402, %v3400
    %v3521 = vpack.c.b16 %v3405, %v3403
    %v3522 = vpack.c.b16 %v3406, %v3404
    %v3523 = vpack.c.b16 %v3409, %v3407
    %v3524 = vpack.c.b16 %v3410, %v3408
    %v3525 = vpack.c.b16 %v3413, %v3411
    %v3526 = vpack.c.b16 %v3414, %v3412
    %v3527 = vpack.c.b16 %v3417, %v3415
    %v3528 = vpack.c.b16 %v3418, %v3416
    %v3529 = vpack.c.b16 %v3421, %v3419
    %v3530 = vpack.c.b16 %v3422, %v3420
    %v3531 = vpack.c.b16 %v3425, %v3423
    %v3532 = vpack.c.b16 %v3426, %v3424
    %v3533 = vpack.c.b16 %v3429, %v3427
    %v3534 = vpack.c.b16 %v3430, %v3428
    %v3535 = vpack.c.b16 %v3433, %v3431
    %v3536 = vpack.c.b16 %v3434, %v3432
    %v3537 = vpack.c.b16 %v3437, %v3435
    %v3538 = vpack.c.b16 %v3438, %v3436
    %v3539 = vpack.c.b16 %v3441, %v3439
    %v3540 = vpack.c.b16 %v3442, %v3440
    %v3541 = vpack.c.b16 %v3445, %v3443
    %v3542 = vpack.c.b16 %v3446, %v3444
    %v3543 = vpack.c.b16 %v3449, %v3447
    %v3544 = vpack.c.b16 %v3450, %v3448
    %v3545 = vpack.c.b16 %v3453, %v3451
    %v3546 = vpack.c.b16 %v3454, %v3452
    %v3547 = vpack.c.b16 %v3457, %v3455
    %v3548 = vpack.c.b16 %v3458, %v3456
    %v3549 = vpack.c.b16 %v3461, %v3459
    %v3550 = vpack.c.b16 %v3462, %v3460
    %v3551 = vpack.c.b16 %v3465, %v3463
    %v3552 = vpack.c.b16 %v3466, %v3464
    %v3553 = vpack.c.b16 %v3469, %v3467
    %v3554 = vpack.c.b16 %v3470, %v3468
    %v3555 = vpack.c.b16 %v3473, %v3471
    %v3556 = vpack.c.b16 %v3474, %v3472
    %v3557 = vpack.c.b16 %v3477, %v3475
    %v3558 = vpack.c.b16 %v3478, %v3476
    %v3559 = vpack.c.b16 %v3481, %v3479
    %v3560 = vpack.c.b16 %v3482, %v3480
    %v3561 = vpack.c.b16 %v3485, %v3483
    %v3562 = vpack.c.b16 %v3486, %v3484
    %v3563 = vpack.c.b16 %v3489, %v3487
    %v3564 = vpack.c.b16 %v3490, %v3488
    %v3565 = vpack.c.b16 %v3493, %v3491
    %v3566 = vpack.c.b16 %v3494, %v3492
    %v3567 = vpack.c.b16 %v3497, %v3495
    %v3568 = vpack.c.b16 %v3498, %v3496
    %v3569 = vpack.c.b16 %v3501, %v3499
    %v3570 = vpack.c.b16 %v3502, %v3500
    %v3571 = vpack.c.b16 %v3505, %v3503
    %v3572 = vpack.c.b16 %v3506, %v3504
    %v3573 = vpack.c.b16 %v3509, %v3507
    %v3574 = vpack.c.b16 %v3510, %v3508
    %3639 = vmatprep.subr.bf16.mxu0 0
    %3640 = vmatpush1.bf16.msra.mxu0 %v3303
    %3641 = vmatprep.subr.bf16.mxu0 0
    %3642 = vmatpush1.bf16.msra.mxu0 %v3304
    %3643 = vmatprep.subr.bf16.mxu0 0
    %3644 = vmatpush1.bf16.msra.mxu0 %v3305
    %3645 = vmatprep.subr.bf16.mxu0 0
    %3646 = vmatpush1.bf16.msra.mxu0 %v3306
    %3647 = vmatprep.subr.bf16.mxu0 0
    %3648 = vmatpush1.bf16.msra.mxu0 %v3307
    %3649 = vmatprep.subr.bf16.mxu0 0
    %3650 = vmatpush1.bf16.msra.mxu0 %v3308
    %3651 = vmatprep.subr.bf16.mxu0 0
    %3652 = vmatpush1.bf16.msra.mxu0 %v3309
    %3653 = vmatprep.subr.bf16.mxu0 0
    %3654 = vmatpush1.bf16.msra.mxu0 %v3310
    %3655 = vmatprep.subr.bf16.mxu0 0
    %3656 = vmatpush1.bf16.msra.mxu0 %v3311
    %3657 = vmatprep.subr.bf16.mxu0 0
    %3658 = vmatpush1.bf16.msra.mxu0 %v3312
    %3659 = vmatprep.subr.bf16.mxu0 0
    %3660 = vmatpush1.bf16.msra.mxu0 %v3313
    %3661 = vmatprep.subr.bf16.mxu0 0
    %3662 = vmatpush1.bf16.msra.mxu0 %v3314
    %3663 = vmatprep.subr.bf16.mxu0 0
    %3664 = vmatpush1.bf16.msra.mxu0 %v3315
    %3665 = vmatprep.subr.bf16.mxu0 0
    %3666 = vmatpush1.bf16.msra.mxu0 %v3316
    %3667 = vmatprep.subr.bf16.mxu0 0
    %3668 = vmatpush1.bf16.msra.mxu0 %v3317
    %3669 = vmatprep.subr.bf16.mxu0 0
    %3670 = vmatpush1.bf16.msra.mxu0 %v3318
    %3671 = vmatprep.mubr.bf16.mxu0 %v3512
    %3672 = vmatmul.mubr.bf16.gmra.mrb[0].mxu0 %v3511
    %v3673 = vpop.f32.mrb[0].mxu0
    %v3674 = vadd.f32 0.0, %v3673
    %v3675 = vpop.f32.mrb[0].mxu0
    %v3676 = vpop.f32.mrb[0].mxu0
    %v3677 = vadd.f32 0.0, %v3676
    %v3678 = vpop.f32.mrb[0].mxu0
    %3679 = vmatprep.mubr.bf16.mxu0 %v3514
    %3680 = vmatmul.mubr.bf16.gmra.mrb[0].mxu0 %v3513
    %v3681 = vpop.f32.mrb[0].mxu0
    %v3682 = vadd.f32 0.0, %v3681
    %v3683 = vpop.f32.mrb[0].mxu0
    %v3684 = vpop.f32.mrb[0].mxu0
    %v3685 = vadd.f32 0.0, %v3684
    %v3686 = vpop.f32.mrb[0].mxu0
    %3687 = vmatprep.mubr.bf16.mxu0 %v3516
    %3688 = vmatmul.mubr.bf16.gmra.mrb[0].mxu0 %v3515
    %v3689 = vpop.f32.mrb[0].mxu0
    %v3690 = vadd.f32 0.0, %v3689
    %v3691 = vpop.f32.mrb[0].mxu0
    %v3692 = vpop.f32.mrb[0].mxu0
    %v3693 = vadd.f32 0.0, %v3692
    %v3694 = vpop.f32.mrb[0].mxu0
    %3695 = vmatprep.mubr.bf16.mxu0 %v3518
    %3696 = vmatmul.mubr.bf16.gmra.mrb[0].mxu0 %v3517
    %v3697 = vpop.f32.mrb[0].mxu0
    %v3698 = vadd.f32 0.0, %v3697
    %v3699 = vpop.f32.mrb[0].mxu0
    %v3700 = vpop.f32.mrb[0].mxu0
    %v3701 = vadd.f32 0.0, %v3700
    %v3702 = vpop.f32.mrb[0].mxu0
    %3703 = vmatprep.mubr.bf16.mxu0 %v3520
    %3704 = vmatmul.mubr.bf16.gmra.mrb[0].mxu0 %v3519
    %v3705 = vpop.f32.mrb[0].mxu0
    %v3706 = vadd.f32 0.0, %v3705
    %v3707 = vpop.f32.mrb[0].mxu0
    %v3708 = vpop.f32.mrb[0].mxu0
    %v3709 = vadd.f32 0.0, %v3708
    %v3710 = vpop.f32.mrb[0].mxu0
    %3711 = vmatprep.mubr.bf16.mxu0 %v3522
    %3712 = vmatmul.mubr.bf16.gmra.mrb[0].mxu0 %v3521
    %v3713 = vpop.f32.mrb[0].mxu0
    %v3714 = vadd.f32 0.0, %v3713
    %v3715 = vpop.f32.mrb[0].mxu0
    %v3716 = vpop.f32.mrb[0].mxu0
    %v3717 = vadd.f32 0.0, %v3716
    %v3718 = vpop.f32.mrb[0].mxu0
    %3719 = vmatprep.mubr.bf16.mxu0 %v3524
    %3720 = vmatmul.mubr.bf16.gmra.mrb[0].mxu0 %v3523
    %v3721 = vpop.f32.mrb[0].mxu0
    %v3722 = vadd.f32 0.0, %v3721
    %v3723 = vpop.f32.mrb[0].mxu0
    %v3724 = vpop.f32.mrb[0].mxu0
    %v3725 = vadd.f32 0.0, %v3724
    %v3726 = vpop.f32.mrb[0].mxu0
    %3727 = vmatprep.mubr.bf16.mxu0 %v3526
    %3728 = vmatmul.mubr.bf16.gmra.mrb[0].mxu0 %v3525
    %v3729 = vpop.f32.mrb[0].mxu0
    %v3730 = vadd.f32 0.0, %v3729
    %v3731 = vpop.f32.mrb[0].mxu0
    %v3732 = vpop.f32.mrb[0].mxu0
    %v3733 = vadd.f32 0.0, %v3732
    %v3734 = vpop.f32.mrb[0].mxu0
    %3735 = vmatprep.mubr.bf16.mxu0 %v3528
    %3736 = vmatmul.mubr.bf16.gmra.mrb[0].mxu0 %v3527
    %v3737 = vpop.f32.mrb[0].mxu0
    %v3738 = vadd.f32 0.0, %v3737
    %v3739 = vpop.f32.mrb[0].mxu0
    %v3740 = vpop.f32.mrb[0].mxu0
    %v3741 = vadd.f32 0.0, %v3740
    %v3742 = vpop.f32.mrb[0].mxu0
    %3743 = vmatprep.mubr.bf16.mxu0 %v3530
    %3744 = vmatmul.mubr.bf16.gmra.mrb[0].mxu0 %v3529
    %v3745 = vpop.f32.mrb[0].mxu0
    %v3746 = vadd.f32 0.0, %v3745
    %v3747 = vpop.f32.mrb[0].mxu0
    %v3748 = vpop.f32.mrb[0].mxu0
    %v3749 = vadd.f32 0.0, %v3748
    %v3750 = vpop.f32.mrb[0].mxu0
    %3751 = vmatprep.mubr.bf16.mxu0 %v3532
    %3752 = vmatmul.mubr.bf16.gmra.mrb[0].mxu0 %v3531
    %v3753 = vpop.f32.mrb[0].mxu0
    %v3754 = vadd.f32 0.0, %v3753
    %v3755 = vpop.f32.mrb[0].mxu0
    %v3756 = vpop.f32.mrb[0].mxu0
    %v3757 = vadd.f32 0.0, %v3756
    %v3758 = vpop.f32.mrb[0].mxu0
    %3759 = vmatprep.mubr.bf16.mxu0 %v3534
    %3760 = vmatmul.mubr.bf16.gmra.mrb[0].mxu0 %v3533
    %v3761 = vpop.f32.mrb[0].mxu0
    %v3762 = vadd.f32 0.0, %v3761
    %v3763 = vpop.f32.mrb[0].mxu0
    %v3764 = vpop.f32.mrb[0].mxu0
    %v3765 = vadd.f32 0.0, %v3764
    %v3766 = vpop.f32.mrb[0].mxu0
    %3767 = vmatprep.mubr.bf16.mxu0 %v3536
    %3768 = vmatmul.mubr.bf16.gmra.mrb[0].mxu0 %v3535
    %v3769 = vpop.f32.mrb[0].mxu0
    %v3770 = vadd.f32 0.0, %v3769
    %v3771 = vpop.f32.mrb[0].mxu0
    %v3772 = vpop.f32.mrb[0].mxu0
    %v3773 = vadd.f32 0.0, %v3772
    %v3774 = vpop.f32.mrb[0].mxu0
    %3775 = vmatprep.mubr.bf16.mxu0 %v3538
    %3776 = vmatmul.mubr.bf16.gmra.mrb[0].mxu0 %v3537
    %v3777 = vpop.f32.mrb[0].mxu0
    %v3778 = vadd.f32 0.0, %v3777
    %v3779 = vpop.f32.mrb[0].mxu0
    %v3780 = vpop.f32.mrb[0].mxu0
    %v3781 = vadd.f32 0.0, %v3780
    %v3782 = vpop.f32.mrb[0].mxu0
    %3783 = vmatprep.mubr.bf16.mxu0 %v3540
    %3784 = vmatmul.mubr.bf16.gmra.mrb[0].mxu0 %v3539
    %v3785 = vpop.f32.mrb[0].mxu0
    %v3786 = vadd.f32 0.0, %v3785
    %v3787 = vpop.f32.mrb[0].mxu0
    %v3788 = vpop.f32.mrb[0].mxu0
    %v3789 = vadd.f32 0.0, %v3788
    %v3790 = vpop.f32.mrb[0].mxu0
    %3791 = vmatprep.mubr.bf16.mxu0 %v3542
    %3792 = vmatmul.mubr.bf16.gmra.mrb[0].mxu0 %v3541
    %v3793 = vpop.f32.mrb[0].mxu0
    %v3794 = vadd.f32 0.0, %v3793
    %v3795 = vpop.f32.mrb[0].mxu0
    %v3796 = vpop.f32.mrb[0].mxu0
    %v3797 = vadd.f32 0.0, %v3796
    %v3798 = vpop.f32.mrb[0].mxu0
    %3799 = vmatprep.mubr.bf16.mxu0 %v3544
    %3800 = vmatmul.mubr.bf16.gmra.mrb[0].mxu0 %v3543
    %v3801 = vpop.f32.mrb[0].mxu0
    %v3802 = vadd.f32 0.0, %v3801
    %v3803 = vpop.f32.mrb[0].mxu0
    %v3804 = vpop.f32.mrb[0].mxu0
    %v3805 = vadd.f32 0.0, %v3804
    %v3806 = vpop.f32.mrb[0].mxu0
    %3807 = vmatprep.mubr.bf16.mxu0 %v3546
    %3808 = vmatmul.mubr.bf16.gmra.mrb[0].mxu0 %v3545
    %v3809 = vpop.f32.mrb[0].mxu0
    %v3810 = vadd.f32 0.0, %v3809
    %v3811 = vpop.f32.mrb[0].mxu0
    %v3812 = vpop.f32.mrb[0].mxu0
    %v3813 = vadd.f32 0.0, %v3812
    %v3814 = vpop.f32.mrb[0].mxu0
    %3815 = vmatprep.mubr.bf16.mxu0 %v3548
    %3816 = vmatmul.mubr.bf16.gmra.mrb[0].mxu0 %v3547
    %v3817 = vpop.f32.mrb[0].mxu0
    %v3818 = vadd.f32 0.0, %v3817
    %v3819 = vpop.f32.mrb[0].mxu0
    %v3820 = vpop.f32.mrb[0].mxu0
    %v3821 = vadd.f32 0.0, %v3820
    %v3822 = vpop.f32.mrb[0].mxu0
    %3823 = vmatprep.mubr.bf16.mxu0 %v3550
    %3824 = vmatmul.mubr.bf16.gmra.mrb[0].mxu0 %v3549
    %v3825 = vpop.f32.mrb[0].mxu0
    %v3826 = vadd.f32 0.0, %v3825
    %v3827 = vpop.f32.mrb[0].mxu0
    %v3828 = vpop.f32.mrb[0].mxu0
    %v3829 = vadd.f32 0.0, %v3828
    %v3830 = vpop.f32.mrb[0].mxu0
    %3831 = vmatprep.mubr.bf16.mxu0 %v3552
    %3832 = vmatmul.mubr.bf16.gmra.mrb[0].mxu0 %v3551
    %v3833 = vpop.f32.mrb[0].mxu0
    %v3834 = vadd.f32 0.0, %v3833
    %v3835 = vpop.f32.mrb[0].mxu0
    %v3836 = vpop.f32.mrb[0].mxu0
    %v3837 = vadd.f32 0.0, %v3836
    %v3838 = vpop.f32.mrb[0].mxu0
    %3839 = vmatprep.mubr.bf16.mxu0 %v3554
    %3840 = vmatmul.mubr.bf16.gmra.mrb[0].mxu0 %v3553
    %v3841 = vpop.f32.mrb[0].mxu0
    %v3842 = vadd.f32 0.0, %v3841
    %v3843 = vpop.f32.mrb[0].mxu0
    %v3844 = vpop.f32.mrb[0].mxu0
    %v3845 = vadd.f32 0.0, %v3844
    %v3846 = vpop.f32.mrb[0].mxu0
    %3847 = vmatprep.mubr.bf16.mxu0 %v3556
    %3848 = vmatmul.mubr.bf16.gmra.mrb[0].mxu0 %v3555
    %v3849 = vpop.f32.mrb[0].mxu0
    %v3850 = vadd.f32 0.0, %v3849
    %v3851 = vpop.f32.mrb[0].mxu0
    %v3852 = vpop.f32.mrb[0].mxu0
    %v3853 = vadd.f32 0.0, %v3852
    %v3854 = vpop.f32.mrb[0].mxu0
    %3855 = vmatprep.mubr.bf16.mxu0 %v3558
    %3856 = vmatmul.mubr.bf16.gmra.mrb[0].mxu0 %v3557
    %v3857 = vpop.f32.mrb[0].mxu0
    %v3858 = vadd.f32 0.0, %v3857
    %v3859 = vpop.f32.mrb[0].mxu0
    %v3860 = vpop.f32.mrb[0].mxu0
    %v3861 = vadd.f32 0.0, %v3860
    %v3862 = vpop.f32.mrb[0].mxu0
    %3863 = vmatprep.mubr.bf16.mxu0 %v3560
    %3864 = vmatmul.mubr.bf16.gmra.mrb[0].mxu0 %v3559
    %v3865 = vpop.f32.mrb[0].mxu0
    %v3866 = vadd.f32 0.0, %v3865
    %v3867 = vpop.f32.mrb[0].mxu0
    %v3868 = vpop.f32.mrb[0].mxu0
    %v3869 = vadd.f32 0.0, %v3868
    %v3870 = vpop.f32.mrb[0].mxu0
    %3871 = vmatprep.mubr.bf16.mxu0 %v3562
    %3872 = vmatmul.mubr.bf16.gmra.mrb[0].mxu0 %v3561
    %v3873 = vpop.f32.mrb[0].mxu0
    %v3874 = vadd.f32 0.0, %v3873
    %v3875 = vpop.f32.mrb[0].mxu0
    %v3876 = vpop.f32.mrb[0].mxu0
    %v3877 = vadd.f32 0.0, %v3876
    %v3878 = vpop.f32.mrb[0].mxu0
    %3879 = vmatprep.mubr.bf16.mxu0 %v3564
    %3880 = vmatmul.mubr.bf16.gmra.mrb[0].mxu0 %v3563
    %v3881 = vpop.f32.mrb[0].mxu0
    %v3882 = vadd.f32 0.0, %v3881
    %v3883 = vpop.f32.mrb[0].mxu0
    %v3884 = vpop.f32.mrb[0].mxu0
    %v3885 = vadd.f32 0.0, %v3884
    %v3886 = vpop.f32.mrb[0].mxu0
    %3887 = vmatprep.mubr.bf16.mxu0 %v3566
    %3888 = vmatmul.mubr.bf16.gmra.mrb[0].mxu0 %v3565
    %v3889 = vpop.f32.mrb[0].mxu0
    %v3890 = vadd.f32 0.0, %v3889
    %v3891 = vpop.f32.mrb[0].mxu0
    %v3892 = vpop.f32.mrb[0].mxu0
    %v3893 = vadd.f32 0.0, %v3892
    %v3894 = vpop.f32.mrb[0].mxu0
    %3895 = vmatprep.mubr.bf16.mxu0 %v3568
    %3896 = vmatmul.mubr.bf16.gmra.mrb[0].mxu0 %v3567
    %v3897 = vpop.f32.mrb[0].mxu0
    %v3898 = vadd.f32 0.0, %v3897
    %v3899 = vpop.f32.mrb[0].mxu0
    %v3900 = vpop.f32.mrb[0].mxu0
    %v3901 = vadd.f32 0.0, %v3900
    %v3902 = vpop.f32.mrb[0].mxu0
    %3903 = vmatprep.mubr.bf16.mxu0 %v3570
    %3904 = vmatmul.mubr.bf16.gmra.mrb[0].mxu0 %v3569
    %v3905 = vpop.f32.mrb[0].mxu0
    %v3906 = vadd.f32 0.0, %v3905
    %v3907 = vpop.f32.mrb[0].mxu0
    %v3908 = vpop.f32.mrb[0].mxu0
    %v3909 = vadd.f32 0.0, %v3908
    %v3910 = vpop.f32.mrb[0].mxu0
    %3911 = vmatprep.mubr.bf16.mxu0 %v3572
    %3912 = vmatmul.mubr.bf16.gmra.mrb[0].mxu0 %v3571
    %v3913 = vpop.f32.mrb[0].mxu0
    %v3914 = vadd.f32 0.0, %v3913
    %v3915 = vpop.f32.mrb[0].mxu0
    %v3916 = vpop.f32.mrb[0].mxu0
    %v3917 = vadd.f32 0.0, %v3916
    %v3918 = vpop.f32.mrb[0].mxu0
    %3919 = vmatprep.mubr.bf16.mxu0 %v3574
    %3920 = vmatmul.mubr.bf16.gmra.mrb[0].mxu0 %v3573
    %v3921 = vpop.f32.mrb[0].mxu0
    %v3922 = vadd.f32 0.0, %v3921
    %v3923 = vpop.f32.mrb[0].mxu0
    %v3924 = vpop.f32.mrb[0].mxu0
    %v3925 = vadd.f32 0.0, %v3924
    %v3926 = vpop.f32.mrb[0].mxu0
    %3927 = vdwg.mxu0
    %v3928 = vld [vmem:[%s2 + $0x60] sm:$0xff]
    %v3929 = vld [vmem:[%s2 + $0x68] sm:$0xff]
    %v3930 = vld [vmem:[%s2 + $0x70] sm:$0xff]
    %v3931 = vld [vmem:[%s2 + $0x78] sm:$0xff]
    %v3932 = vld [vmem:[%s2 + $0x80] sm:$0xff]
    %v3933 = vld [vmem:[%s2 + $0x88] sm:$0xff]
    %v3934 = vld [vmem:[%s2 + $0x90] sm:$0xff]
    %v3935 = vld [vmem:[%s2 + $0x98] sm:$0xff]
    %3937 = vset.pattern.permute.xlu0 0
    %3938 = vperm.xlu0 %3937, %v3928
    %v3939 = vpop.permute.xlu0 %3938
    %3942 = vset.pattern.permute.xlu0 0
    %3943 = vperm.xlu0 %3942, %v3929
    %v3944 = vpop.permute.xlu0 %3943
    %3947 = vset.pattern.permute.xlu0 0
    %3948 = vperm.xlu0 %3947, %v3930
    %v3949 = vpop.permute.xlu0 %3948
    %3952 = vset.pattern.permute.xlu0 0
    %3953 = vperm.xlu0 %3952, %v3931
    %v3954 = vpop.permute.xlu0 %3953
    %3957 = vset.pattern.permute.xlu0 0
    %3958 = vperm.xlu0 %3957, %v3932
    %v3959 = vpop.permute.xlu0 %3958
    %3962 = vset.pattern.permute.xlu0 0
    %3963 = vperm.xlu0 %3962, %v3933
    %v3964 = vpop.permute.xlu0 %3963
    %3967 = vset.pattern.permute.xlu0 0
    %3968 = vperm.xlu0 %3967, %v3934
    %v3969 = vpop.permute.xlu0 %3968
    %3972 = vset.pattern.permute.xlu0 0
    %3973 = vperm.xlu0 %3972, %v3935
    %v3974 = vpop.permute.xlu0 %3973
    %v3976 = vadd.f32 %v3674, %v3939
    %v3977 = vadd.f32 %v3677, %v3944
    %v3978 = vadd.f32 %v3682, %v3949
    %v3979 = vadd.f32 %v3685, %v3954
    %v3980 = vadd.f32 %v3690, %v3959
    %v3981 = vadd.f32 %v3693, %v3964
    %v3982 = vadd.f32 %v3698, %v3969
    %v3983 = vadd.f32 %v3701, %v3974
    %v3984 = vadd.f32 %v3706, %v3939
    %v3985 = vadd.f32 %v3709, %v3944
    %v3986 = vadd.f32 %v3714, %v3949
    %v3987 = vadd.f32 %v3717, %v3954
    %v3988 = vadd.f32 %v3722, %v3959
    %v3989 = vadd.f32 %v3725, %v3964
    %v3990 = vadd.f32 %v3730, %v3969
    %v3991 = vadd.f32 %v3733, %v3974
    %v3992 = vadd.f32 %v3738, %v3939
    %v3993 = vadd.f32 %v3741, %v3944
    %v3994 = vadd.f32 %v3746, %v3949
    %v3995 = vadd.f32 %v3749, %v3954
    %v3996 = vadd.f32 %v3754, %v3959
    %v3997 = vadd.f32 %v3757, %v3964
    %v3998 = vadd.f32 %v3762, %v3969
    %v3999 = vadd.f32 %v3765, %v3974
    %v4000 = vadd.f32 %v3770, %v3939
    %v4001 = vadd.f32 %v3773, %v3944
    %v4002 = vadd.f32 %v3778, %v3949
    %v4003 = vadd.f32 %v3781, %v3954
    %v4004 = vadd.f32 %v3786, %v3959
    %v4005 = vadd.f32 %v3789, %v3964
    %v4006 = vadd.f32 %v3794, %v3969
    %v4007 = vadd.f32 %v3797, %v3974
    %v4008 = vadd.f32 %v3802, %v3939
    %v4009 = vadd.f32 %v3805, %v3944
    %v4010 = vadd.f32 %v3810, %v3949
    %v4011 = vadd.f32 %v3813, %v3954
    %v4012 = vadd.f32 %v3818, %v3959
    %v4013 = vadd.f32 %v3821, %v3964
    %v4014 = vadd.f32 %v3826, %v3969
    %v4015 = vadd.f32 %v3829, %v3974
    %v4016 = vadd.f32 %v3834, %v3939
    %v4017 = vadd.f32 %v3837, %v3944
    %v4018 = vadd.f32 %v3842, %v3949
    %v4019 = vadd.f32 %v3845, %v3954
    %v4020 = vadd.f32 %v3850, %v3959
    %v4021 = vadd.f32 %v3853, %v3964
    %v4022 = vadd.f32 %v3858, %v3969
    %v4023 = vadd.f32 %v3861, %v3974
    %v4024 = vadd.f32 %v3866, %v3939
    %v4025 = vadd.f32 %v3869, %v3944
    %v4026 = vadd.f32 %v3874, %v3949
    %v4027 = vadd.f32 %v3877, %v3954
    %v4028 = vadd.f32 %v3882, %v3959
    %v4029 = vadd.f32 %v3885, %v3964
    %v4030 = vadd.f32 %v3890, %v3969
    %v4031 = vadd.f32 %v3893, %v3974
    %v4032 = vadd.f32 %v3898, %v3939
    %v4033 = vadd.f32 %v3901, %v3944
    %v4034 = vadd.f32 %v3906, %v3949
    %v4035 = vadd.f32 %v3909, %v3954
    %v4036 = vadd.f32 %v3914, %v3959
    %v4037 = vadd.f32 %v3917, %v3964
    %v4038 = vadd.f32 %v3922, %v3969
    %v4039 = vadd.f32 %v3925, %v3974
    %v4040 = vmax.f32 %v3976, 0.0
    %v4041 = vmax.f32 %v3977, 0.0
    %v4042 = vmax.f32 %v3978, 0.0
    %v4043 = vmax.f32 %v3979, 0.0
    %v4044 = vmax.f32 %v3980, 0.0
    %v4045 = vmax.f32 %v3981, 0.0
    %v4046 = vmax.f32 %v3982, 0.0
    %v4047 = vmax.f32 %v3983, 0.0
    %v4048 = vmax.f32 %v3984, 0.0
    %v4049 = vmax.f32 %v3985, 0.0
    %v4050 = vmax.f32 %v3986, 0.0
    %v4051 = vmax.f32 %v3987, 0.0
    %v4052 = vmax.f32 %v3988, 0.0
    %v4053 = vmax.f32 %v3989, 0.0
    %v4054 = vmax.f32 %v3990, 0.0
    %v4055 = vmax.f32 %v3991, 0.0
    %v4056 = vmax.f32 %v3992, 0.0
    %v4057 = vmax.f32 %v3993, 0.0
    %v4058 = vmax.f32 %v3994, 0.0
    %v4059 = vmax.f32 %v3995, 0.0
    %v4060 = vmax.f32 %v3996, 0.0
    %v4061 = vmax.f32 %v3997, 0.0
    %v4062 = vmax.f32 %v3998, 0.0
    %v4063 = vmax.f32 %v3999, 0.0
    %v4064 = vmax.f32 %v4000, 0.0
    %v4065 = vmax.f32 %v4001, 0.0
    %v4066 = vmax.f32 %v4002, 0.0
    %v4067 = vmax.f32 %v4003, 0.0
    %v4068 = vmax.f32 %v4004, 0.0
    %v4069 = vmax.f32 %v4005, 0.0
    %v4070 = vmax.f32 %v4006, 0.0
    %v4071 = vmax.f32 %v4007, 0.0
    %v4072 = vmax.f32 %v4008, 0.0
    %v4073 = vmax.f32 %v4009, 0.0
    %v4074 = vmax.f32 %v4010, 0.0
    %v4075 = vmax.f32 %v4011, 0.0
    %v4076 = vmax.f32 %v4012, 0.0
    %v4077 = vmax.f32 %v4013, 0.0
    %v4078 = vmax.f32 %v4014, 0.0
    %v4079 = vmax.f32 %v4015, 0.0
    %v4080 = vmax.f32 %v4016, 0.0
    %v4081 = vmax.f32 %v4017, 0.0
    %v4082 = vmax.f32 %v4018, 0.0
    %v4083 = vmax.f32 %v4019, 0.0
    %v4084 = vmax.f32 %v4020, 0.0
    %v4085 = vmax.f32 %v4021, 0.0
    %v4086 = vmax.f32 %v4022, 0.0
    %v4087 = vmax.f32 %v4023, 0.0
    %v4088 = vmax.f32 %v4024, 0.0
    %v4089 = vmax.f32 %v4025, 0.0
    %v4090 = vmax.f32 %v4026, 0.0
    %v4091 = vmax.f32 %v4027, 0.0
    %v4092 = vmax.f32 %v4028, 0.0
    %v4093 = vmax.f32 %v4029, 0.0
    %v4094 = vmax.f32 %v4030, 0.0
    %v4095 = vmax.f32 %v4031, 0.0
    %v4096 = vmax.f32 %v4032, 0.0
    %v4097 = vmax.f32 %v4033, 0.0
    %v4098 = vmax.f32 %v4034, 0.0
    %v4099 = vmax.f32 %v4035, 0.0
    %v4100 = vmax.f32 %v4036, 0.0
    %v4101 = vmax.f32 %v4037, 0.0
    %v4102 = vmax.f32 %v4038, 0.0
    %v4103 = vmax.f32 %v4039, 0.0
    %v4104 = vld [vmem:[%s2 + $0xa0] sm:$0xff]
    %v4105 = vld [vmem:[%s2 + $0xa8] sm:$0xff]
    %v4106 = vld [vmem:[%s2 + $0xb0] sm:$0xff]
    %v4107 = vld [vmem:[%s2 + $0xb8] sm:$0xff]
    %v4108 = vld [vmem:[%s2 + $0xc0] sm:$0xff]
    %v4109 = vld [vmem:[%s2 + $0xc8] sm:$0xff]
    %v4110 = vld [vmem:[%s2 + $0xd0] sm:$0xff]
    %v4111 = vld [vmem:[%s2 + $0xd8] sm:$0xff]
    %4113 = vset.pattern.permute.xlu0 0
    %4114 = vperm.xlu0 %4113, %v4104
    %v4115 = vpop.permute.xlu0 %4114
    %4118 = vset.pattern.permute.xlu0 0
    %4119 = vperm.xlu0 %4118, %v4105
    %v4120 = vpop.permute.xlu0 %4119
    %4123 = vset.pattern.permute.xlu0 0
    %4124 = vperm.xlu0 %4123, %v4106
    %v4125 = vpop.permute.xlu0 %4124
    %4128 = vset.pattern.permute.xlu0 0
    %4129 = vperm.xlu0 %4128, %v4107
    %v4130 = vpop.permute.xlu0 %4129
    %4133 = vset.pattern.permute.xlu0 0
    %4134 = vperm.xlu0 %4133, %v4108
    %v4135 = vpop.permute.xlu0 %4134
    %4138 = vset.pattern.permute.xlu0 0
    %4139 = vperm.xlu0 %4138, %v4109
    %v4140 = vpop.permute.xlu0 %4139
    %4143 = vset.pattern.permute.xlu0 0
    %4144 = vperm.xlu0 %4143, %v4110
    %v4145 = vpop.permute.xlu0 %4144
    %4148 = vset.pattern.permute.xlu0 0
    %4149 = vperm.xlu0 %4148, %v4111
    %v4150 = vpop.permute.xlu0 %4149
    %v4152 = vmul.f32 %v4040, %v4115
    %v4153 = vmul.f32 %v4041, %v4120
    %v4154 = vmul.f32 %v4042, %v4125
    %v4155 = vmul.f32 %v4043, %v4130
    %v4156 = vmul.f32 %v4044, %v4135
    %v4157 = vmul.f32 %v4045, %v4140
    %v4158 = vmul.f32 %v4046, %v4145
    %v4159 = vmul.f32 %v4047, %v4150
    %v4160 = vmul.f32 %v4048, %v4115
    %v4161 = vmul.f32 %v4049, %v4120
    %v4162 = vmul.f32 %v4050, %v4125
    %v4163 = vmul.f32 %v4051, %v4130
    %v4164 = vmul.f32 %v4052, %v4135
    %v4165 = vmul.f32 %v4053, %v4140
    %v4166 = vmul.f32 %v4054, %v4145
    %v4167 = vmul.f32 %v4055, %v4150
    %v4168 = vmul.f32 %v4056, %v4115
    %v4169 = vmul.f32 %v4057, %v4120
    %v4170 = vmul.f32 %v4058, %v4125
    %v4171 = vmul.f32 %v4059, %v4130
    %v4172 = vmul.f32 %v4060, %v4135
    %v4173 = vmul.f32 %v4061, %v4140
    %v4174 = vmul.f32 %v4062, %v4145
    %v4175 = vmul.f32 %v4063, %v4150
    %v4176 = vmul.f32 %v4064, %v4115
    %v4177 = vmul.f32 %v4065, %v4120
    %v4178 = vmul.f32 %v4066, %v4125
    %v4179 = vmul.f32 %v4067, %v4130
    %v4180 = vmul.f32 %v4068, %v4135
    %v4181 = vmul.f32 %v4069, %v4140
    %v4182 = vmul.f32 %v4070, %v4145
    %v4183 = vmul.f32 %v4071, %v4150
    %v4184 = vmul.f32 %v4072, %v4115
    %v4185 = vmul.f32 %v4073, %v4120
    %v4186 = vmul.f32 %v4074, %v4125
    %v4187 = vmul.f32 %v4075, %v4130
    %v4188 = vmul.f32 %v4076, %v4135
    %v4189 = vmul.f32 %v4077, %v4140
    %v4190 = vmul.f32 %v4078, %v4145
    %v4191 = vmul.f32 %v4079, %v4150
    %v4192 = vmul.f32 %v4080, %v4115
    %v4193 = vmul.f32 %v4081, %v4120
    %v4194 = vmul.f32 %v4082, %v4125
    %v4195 = vmul.f32 %v4083, %v4130
    %v4196 = vmul.f32 %v4084, %v4135
    %v4197 = vmul.f32 %v4085, %v4140
    %v4198 = vmul.f32 %v4086, %v4145
    %v4199 = vmul.f32 %v4087, %v4150
    %v4200 = vmul.f32 %v4088, %v4115
    %v4201 = vmul.f32 %v4089, %v4120
    %v4202 = vmul.f32 %v4090, %v4125
    %v4203 = vmul.f32 %v4091, %v4130
    %v4204 = vmul.f32 %v4092, %v4135
    %v4205 = vmul.f32 %v4093, %v4140
    %v4206 = vmul.f32 %v4094, %v4145
    %v4207 = vmul.f32 %v4095, %v4150
    %v4208 = vmul.f32 %v4096, %v4115
    %v4209 = vmul.f32 %v4097, %v4120
    %v4210 = vmul.f32 %v4098, %v4125
    %v4211 = vmul.f32 %v4099, %v4130
    %v4212 = vmul.f32 %v4100, %v4135
    %v4213 = vmul.f32 %v4101, %v4140
    %v4214 = vmul.f32 %v4102, %v4145
    %v4215 = vmul.f32 %v4103, %v4150
    %v4216 = vadd.f32 %v4152, %v4153
    %v4217 = vadd.f32 %v4216, %v4154
    %v4218 = vadd.f32 %v4217, %v4155
    %v4219 = vadd.f32 %v4218, %v4156
    %v4220 = vadd.f32 %v4219, %v4157
    %v4221 = vadd.f32 %v4220, %v4158
    %v4222 = vadd.f32 %v4221, %v4159
    %v4223 = vrot.slane %v4222, 4
    %v4224 = vadd.f32 %v4222, %v4223
    %v4225 = vrot.slane %v4224, 2
    %v4226 = vadd.f32 %v4224, %v4225
    %v4227 = vrot.slane %v4226, 1
    %v4228 = vadd.f32 %v4226, %v4227
    %v4229 = vadd.f32 %v4160, %v4161
    %v4230 = vadd.f32 %v4229, %v4162
    %v4231 = vadd.f32 %v4230, %v4163
    %v4232 = vadd.f32 %v4231, %v4164
    %v4233 = vadd.f32 %v4232, %v4165
    %v4234 = vadd.f32 %v4233, %v4166
    %v4235 = vadd.f32 %v4234, %v4167
    %v4236 = vrot.slane %v4235, 4
    %v4237 = vadd.f32 %v4235, %v4236
    %v4238 = vrot.slane %v4237, 2
    %v4239 = vadd.f32 %v4237, %v4238
    %v4240 = vrot.slane %v4239, 1
    %v4241 = vadd.f32 %v4239, %v4240
    %v4242 = vadd.f32 %v4168, %v4169
    %v4243 = vadd.f32 %v4242, %v4170
    %v4244 = vadd.f32 %v4243, %v4171
    %v4245 = vadd.f32 %v4244, %v4172
    %v4246 = vadd.f32 %v4245, %v4173
    %v4247 = vadd.f32 %v4246, %v4174
    %v4248 = vadd.f32 %v4247, %v4175
    %v4249 = vrot.slane %v4248, 4
    %v4250 = vadd.f32 %v4248, %v4249
    %v4251 = vrot.slane %v4250, 2
    %v4252 = vadd.f32 %v4250, %v4251
    %v4253 = vrot.slane %v4252, 1
    %v4254 = vadd.f32 %v4252, %v4253
    %v4255 = vadd.f32 %v4176, %v4177
    %v4256 = vadd.f32 %v4255, %v4178
    %v4257 = vadd.f32 %v4256, %v4179
    %v4258 = vadd.f32 %v4257, %v4180
    %v4259 = vadd.f32 %v4258, %v4181
    %v4260 = vadd.f32 %v4259, %v4182
    %v4261 = vadd.f32 %v4260, %v4183
    %v4262 = vrot.slane %v4261, 4
    %v4263 = vadd.f32 %v4261, %v4262
    %v4264 = vrot.slane %v4263, 2
    %v4265 = vadd.f32 %v4263, %v4264
    %v4266 = vrot.slane %v4265, 1
    %v4267 = vadd.f32 %v4265, %v4266
    %v4268 = vadd.f32 %v4184, %v4185
    %v4269 = vadd.f32 %v4268, %v4186
    %v4270 = vadd.f32 %v4269, %v4187
    %v4271 = vadd.f32 %v4270, %v4188
    %v4272 = vadd.f32 %v4271, %v4189
    %v4273 = vadd.f32 %v4272, %v4190
    %v4274 = vadd.f32 %v4273, %v4191
    %v4275 = vrot.slane %v4274, 4
    %v4276 = vadd.f32 %v4274, %v4275
    %v4277 = vrot.slane %v4276, 2
    %v4278 = vadd.f32 %v4276, %v4277
    %v4279 = vrot.slane %v4278, 1
    %v4280 = vadd.f32 %v4278, %v4279
    %v4281 = vadd.f32 %v4192, %v4193
    %v4282 = vadd.f32 %v4281, %v4194
    %v4283 = vadd.f32 %v4282, %v4195
    %v4284 = vadd.f32 %v4283, %v4196
    %v4285 = vadd.f32 %v4284, %v4197
    %v4286 = vadd.f32 %v4285, %v4198
    %v4287 = vadd.f32 %v4286, %v4199
    %v4288 = vrot.slane %v4287, 4
    %v4289 = vadd.f32 %v4287, %v4288
    %v4290 = vrot.slane %v4289, 2
    %v4291 = vadd.f32 %v4289, %v4290
    %v4292 = vrot.slane %v4291, 1
    %v4293 = vadd.f32 %v4291, %v4292
    %v4294 = vadd.f32 %v4200, %v4201
    %v4295 = vadd.f32 %v4294, %v4202
    %v4296 = vadd.f32 %v4295, %v4203
    %v4297 = vadd.f32 %v4296, %v4204
    %v4298 = vadd.f32 %v4297, %v4205
    %v4299 = vadd.f32 %v4298, %v4206
    %v4300 = vadd.f32 %v4299, %v4207
    %v4301 = vrot.slane %v4300, 4
    %v4302 = vadd.f32 %v4300, %v4301
    %v4303 = vrot.slane %v4302, 2
    %v4304 = vadd.f32 %v4302, %v4303
    %v4305 = vrot.slane %v4304, 1
    %v4306 = vadd.f32 %v4304, %v4305
    %v4307 = vadd.f32 %v4208, %v4209
    %v4308 = vadd.f32 %v4307, %v4210
    %v4309 = vadd.f32 %v4308, %v4211
    %v4310 = vadd.f32 %v4309, %v4212
    %v4311 = vadd.f32 %v4310, %v4213
    %v4312 = vadd.f32 %v4311, %v4214
    %v4313 = vadd.f32 %v4312, %v4215
    %v4314 = vrot.slane %v4313, 4
    %v4315 = vadd.f32 %v4313, %v4314
    %v4316 = vrot.slane %v4315, 2
    %v4317 = vadd.f32 %v4315, %v4316
    %v4318 = vrot.slane %v4317, 1
    %v4319 = vadd.f32 %v4317, %v4318
    %v4320 = vld [vmem:[%s2 + $0xe0] sm:$0x1]
    %s4322 = vtos %v4320
    %v4323 = vstv %s4322
    %v4325 = vadd.f32 %v4228, %v4323
    %v4326 = vadd.f32 %v4241, %v4323
    %v4327 = vadd.f32 %v4254, %v4323
    %v4328 = vadd.f32 %v4267, %v4323
    %v4329 = vadd.f32 %v4280, %v4323
    %v4330 = vadd.f32 %v4293, %v4323
    %v4331 = vadd.f32 %v4306, %v4323
    %v4332 = vadd.f32 %v4319, %v4323
    %v4341 = vsel %vm1224, %v4326, %v4325
    %v4342 = vsel %vm1227, %v4327, %v4341
    %v4343 = vsel %vm1230, %v4328, %v4342
    %v4344 = vsel %vm1233, %v4329, %v4343
    %v4345 = vsel %vm1236, %v4330, %v4344
    %v4346 = vsel %vm1239, %v4331, %v4345
    %v4347 = vsel %vm1242, %v4332, %v4346
    %4349 = vst [vmem:[#allocation7] sm:$0xff] %v4347
    // Predicated region
    $region26: #{tpu_custom_call.1} parent=1 // pred_check
      _
    $region27: #{tpu_custom_call.1} parent=1 // pred_check_branch
      %4351 = sbr.rel (0) target = $region29
    $region28: #{tpu_custom_call.1} parent=1 // pred_region
      %s4353 = ssub.s32 128, 128
      %4354 = vsyncadd [#allocation4], %s4353
      %s4356 = sshll.u32 [#allocation7], 4
      %s4357 = int_to_ptr.vmem [resolvable:$true] %s4356
      %4359 = dma.vmem_to_hbm [thread:$0]  %s4357, 128, %s4, [#allocation4]
    $region29: #{tpu_custom_call.1} parent=1 // pred_fallthru
      _
    // Predicated region
    $region30: #{tpu_custom_call.1} parent=1 // pred_check
      _
    $region31: #{tpu_custom_call.1} parent=1 // pred_check_branch
      %4361 = sbr.rel (0) target = $region33
    $region32: #{tpu_custom_call.1} parent=1 // pred_region
      %4362 = dma.done [#allocation4], 128
    $region33: #{tpu_custom_call.1} parent=1 // pred_fallthru
      _
    %4363 = vsyncpa [#allocation3], 1
    %4364 = vsyncpa [#allocation6], 1
    %4365 = vsyncpa [#allocation4], 1

</llo_original>
